<compile_context>
chip_gen: v6e
topology: v6e:2x2x1
jax: 0.10.0
libtpu: 0.0.40
codegen_flags: <defaults>
</compile_context>

<pallas_src>
import functools

import jax
import jax.numpy as jnp
from jax import lax
from jax.experimental import pallas as pl
from jax.experimental.pallas import tpu as pltpu


# ----------------------------------------------------------------------------
# Small helpers
# ----------------------------------------------------------------------------
def _round_up(x, m):
    return (x + m - 1) // m * m


def _vmem_ceiling():
    # Generation-aware ceiling: ~3/4 of physical VMEM (headroom for compiler
    # internal scratch / double buffers).  Falls back to a v7x-safe value.
    try:
        cap = int(pltpu.get_tpu_info().vmem_capacity_bytes)
    except Exception:  # query unavailable -> assume smallest (v7x: 64 MiB)
        cap = 64 << 20
    return max(min(cap * 3 // 4, 112 << 20), 32 << 20)


def _vmem_limit(bytes_needed):
    return int(min(max(2 * bytes_needed, 16 << 20), _vmem_ceiling()))


def _pick_batch_tile(Bp):
    # 256 rows fill the v6e/v7x MXU; below 512 rows keep two 128-tiles so both
    # v7x TensorCores get work; tiny batches use a single tile.
    if Bp >= 512:
        return 256
    if Bp >= 128:
        return 128
    return Bp


def _pick_h4_chunk(H4):
    # Bound the [tb, chunk] ReLU intermediate's live range (vreg pressure).
    for c in (256, 128):
        if H4 > c and H4 % c == 0:
            return c
    return H4


# ----------------------------------------------------------------------------
# Fused forward kernel: embed + all FC_Net_Layer blocks + classifier head.
# Grid = (batch_tiles,).  All parameters are VMEM-resident (constant index
# maps); the activation stays in the f32 scratch h_ref for the whole network.
# ----------------------------------------------------------------------------
def fc_net_kernel(x_ref, we_ref, be_ref, g_ref, bt_ref, w1_ref, b1_ref,
                  w2_ref, b2_ref, wc_ref, bc_ref, o_ref, h_ref, *, h4_chunk):
    # ---- embed: h = x @ We + be  (bf16 MXU operands, f32 accumulation) ----
    h = jnp.dot(x_ref[...].astype(we_ref.dtype), we_ref[...],
                preferred_element_type=jnp.float32)
    h_ref[...] = h + be_ref[...]

    num_layers = g_ref.shape[0]
    H4 = w1_ref.shape[-1]
    n_chunks = H4 // h4_chunk

    def layer_body(l, carry):
        x = h_ref[...]                                   # [tb, H] f32 resident

        # LayerNorm (eps=1e-5, biased variance), statistics in f32.
        mu = jnp.mean(x, axis=-1, keepdims=True)
        xc = x - mu
        var = jnp.mean(xc * xc, axis=-1, keepdims=True)
        n = xc * lax.rsqrt(var + 1e-5)
        n = n * g_ref[l] + bt_ref[l]
        n_lo = n.astype(w1_ref.dtype)                    # bf16 operand for MXU

        # Linear1 -> ReLU -> Linear2, chunked over the 4H dimension so the
        # [tb, 4H] intermediate never lives in registers all at once.
        h2 = jnp.zeros_like(x)
        for c in range(n_chunks):                        # static chunk slices
            c0 = c * h4_chunk
            h1 = jnp.dot(n_lo, w1_ref[l, :, pl.ds(c0, h4_chunk)],
                         preferred_element_type=jnp.float32)
            h1 = jnp.maximum(h1 + b1_ref[l, :, pl.ds(c0, h4_chunk)], 0.0)
            h2 = h2 + jnp.dot(h1.astype(w2_ref.dtype),
                              w2_ref[l, pl.ds(c0, h4_chunk), :],
                              preferred_element_type=jnp.float32)

        h_ref[...] = h2 + b2_ref[l] + x                  # bias + residual
        return carry

    lax.fori_loop(0, num_layers, layer_body, 0, unroll=True)

    # ---- classifier head (lane-dense padded output) ----
    y = jnp.dot(h_ref[...].astype(wc_ref.dtype), wc_ref[...],
                preferred_element_type=jnp.float32)
    o_ref[...] = (y + bc_ref[...]).astype(o_ref.dtype)


# ----------------------------------------------------------------------------
# Wrapper
# ----------------------------------------------------------------------------
def pallas_fc_net(x, params):
    """Full FC_Net forward in a single pallas_call.  x: [B, input_size] f32."""
    we, be_ = params["embed"]
    g, bt, w1s, b1s, w2s, b2s = params["layers"]
    wc, bc = params["clf"]

    B, K = x.shape
    H = we.shape[1]
    L, _, H4 = w1s.shape
    Out = wc.shape[1]

    # Lane-dense zero padding (exact math, avoids masked loads / vst.msk).
    Kp = _round_up(K, 128)
    Op = _round_up(Out, 128)
    if Kp != K:
        x = jnp.pad(x, ((0, 0), (0, Kp - K)))
        we = jnp.pad(we, ((0, Kp - K), (0, 0)))
    if Op != Out:
        wc = jnp.pad(wc, ((0, 0), (0, Op - Out)))
        bc = jnp.pad(bc, ((0, 0), (0, Op - Out)))

    Bp = _round_up(B, 8)
    tb = _pick_batch_tile(Bp)
    Bp = _round_up(Bp, tb)
    if Bp != B:
        x = jnp.pad(x, ((0, Bp - B), (0, 0)))

    h4_chunk = _pick_h4_chunk(H4)

    w_isz = jnp.dtype(w1s.dtype).itemsize
    # Parameters are read exactly once (VMEM-resident across all batch tiles).
    weight_bytes = (w_isz * (Kp * H + H * Op + L * 2 * H * H4)
                    + 4 * (H + Op + L * (3 * H + H4)))
    cost = pl.CostEstimate(
        flops=2 * Bp * (Kp * H + H * Op) + 4 * Bp * H * H4 * L,
        transcendentals=Bp * L,                          # rsqrt per row per layer
        bytes_accessed=4 * Bp * (Kp + Op) + weight_bytes)

    # TODO(synk): for hidden sizes where the full bf16 weight stack no longer
    # fits VMEM, fall back to streaming layers over a grid axis instead of the
    # resident stack.
    per_step_bytes = (2 * weight_bytes                   # resident params (2x buffered, conservative)
                      + 2 * 4 * tb * (Kp + Op)           # x / out tiles, double-buffered
                      + 4 * tb * H                       # f32 activation scratch
                      + 4 * tb * (H + h4_chunk))         # h2 accumulator + h1 chunk

    out = pl.pallas_call(
        functools.partial(fc_net_kernel, h4_chunk=h4_chunk),
        out_shape=jax.ShapeDtypeStruct((Bp, Op), jnp.float32),
        grid=(Bp // tb,),
        in_specs=[
            pl.BlockSpec((tb, Kp), lambda i: (i, 0)),          # x (per batch tile)
            pl.BlockSpec((Kp, H), lambda i: (0, 0)),           # embed W  (resident)
            pl.BlockSpec((1, H), lambda i: (0, 0)),            # embed b
            pl.BlockSpec((L, 1, H), lambda i: (0, 0, 0)),      # LN gamma stack
            pl.BlockSpec((L, 1, H), lambda i: (0, 0, 0)),      # LN beta stack
            pl.BlockSpec((L, H, H4), lambda i: (0, 0, 0)),     # W1 stack  (resident)
            pl.BlockSpec((L, 1, H4), lambda i: (0, 0, 0)),     # b1 stack
            pl.BlockSpec((L, H4, H), lambda i: (0, 0, 0)),     # W2 stack  (resident)
            pl.BlockSpec((L, 1, H), lambda i: (0, 0, 0)),      # b2 stack
            pl.BlockSpec((H, Op), lambda i: (0, 0)),           # clf W    (resident)
            pl.BlockSpec((1, Op), lambda i: (0, 0)),           # clf b
        ],
        out_specs=pl.BlockSpec((tb, Op), lambda i: (i, 0)),
        scratch_shapes=[pltpu.VMEM((tb, H), jnp.float32)],     # resident activation
        compiler_params=pltpu.CompilerParams(
            dimension_semantics=("parallel",),
            vmem_limit_bytes=_vmem_limit(per_step_bytes)),
        cost_estimate=cost,
    )(x, we, be_, g, bt, w1s, b1s, w2s, b2s, wc, bc)
    return out[:B, :Out]


# ----------------------------------------------------------------------------
# Parameters (PyTorch nn.Linear-style uniform init).  Weight matrices are
# stored in bf16 (MXU operand dtype); biases / LN params stay f32.
# ----------------------------------------------------------------------------
def init_linear(key, fan_in, fan_out, w_dtype=jnp.bfloat16):
    kw, kb = jax.random.split(key)
    bound = 1.0 / jnp.sqrt(float(fan_in))
    w = jax.random.uniform(kw, (fan_in, fan_out), jnp.float32, -bound, bound)
    b = jax.random.uniform(kb, (1, fan_out), jnp.float32, -bound, bound)
    return w.astype(w_dtype), b


def init_fc_net(key, num_layers, input_size, hidden_size, output_size,
                w_dtype=jnp.bfloat16):
    keys = jax.random.split(key, num_layers + 2)
    params = {"embed": init_linear(keys[0], input_size, hidden_size, w_dtype)}
    g, be, w1, b1, w2, b2 = [], [], [], [], [], []
    for li in range(num_layers):
        k1, k2 = jax.random.split(keys[1 + li])
        g.append(jnp.ones((1, hidden_size), jnp.float32))
        be.append(jnp.zeros((1, hidden_size), jnp.float32))
        wa, ba = init_linear(k1, hidden_size, 4 * hidden_size, w_dtype)
        wb, bb = init_linear(k2, 4 * hidden_size, hidden_size, w_dtype)
        w1.append(wa); b1.append(ba); w2.append(wb); b2.append(bb)
    params["layers"] = tuple(jnp.stack(a) for a in (g, be, w1, b1, w2, b2))
    params["clf"] = init_linear(keys[-1], hidden_size, output_size, w_dtype)
    return params


# ----------------------------------------------------------------------------
# Forward pass (single pipeline rank: embed + all layers + clf)
# ----------------------------------------------------------------------------
# TODO(synk): multi-rank pipeline (AxoNN G_inter > 1) and
# checkpoint_activations are distribution/training concerns outside a
# single-chip forward kernel; this implements the full single-rank forward.
def fc_net_forward(params, x):
    x = x.reshape(x.shape[0], -1)          # flatten (x.view(B, -1))
    return pallas_fc_net(x, params)


# Pure-JAX reference mirroring the kernel's precision policy
# (bf16 matmul operands, f32 accumulation, f32 LayerNorm / bias / residual).
def fc_net_reference(params, x):
    def mm(a, w):
        return jnp.dot(a.astype(w.dtype), w, preferred_element_type=jnp.float32)

    x = x.reshape(x.shape[0], -1)
    we, be_ = params["embed"]
    h = mm(x, we) + be_
    g, bt, w1, b1, w2, b2 = params["layers"]
    for l in range(g.shape[0]):
        mu = jnp.mean(h, axis=-1, keepdims=True)
        var = jnp.mean((h - mu) ** 2, axis=-1, keepdims=True)
        n = (h - mu) * lax.rsqrt(var + 1e-5) * g[l] + bt[l]
        t = jnp.maximum(mm(n, w1[l]) + b1[l], 0.0)
        h = mm(t, w2[l]) + b2[l] + h
    wc, bc = params["clf"]
    return mm(h, wc) + bc


if __name__ == "__main__":
    num_layers = 4           # num_layers // G_inter with G_inter = 1
    batch = 256              # 2 batch tiles of 128 -> both v7x TCs get work
    spatial = 8              # x: [batch, 8, 8] -> flattened input_size = 64
    input_size = spatial * spatial
    hidden_size = 128
    output_size = 10

    root = jax.random.PRNGKey(0)
    pkey, xkey = jax.random.split(root)
    params = init_fc_net(pkey, num_layers, input_size, hidden_size, output_size)
    x = jax.random.normal(xkey, (batch, spatial, spatial), jnp.float32)

    fwd = jax.jit(fc_net_forward)
    out = jax.block_until_ready(fwd(params, x))
    ref = jax.block_until_ready(fc_net_reference(params, x))

    assert out.shape == (batch, output_size), out.shape
    err = float(jnp.max(jnp.abs(out - ref)))
    assert jnp.allclose(out, ref, atol=1e-2, rtol=1e-2), (
        f"mismatch vs reference, max abs err = {err}")
    print("KERNEL_OK")
</pallas_src>

<mosaic_0001>
module attributes {stable_mosaic.version = 11 : i64} {
  func.func @fc_net_kernel(%arg0: i32, %arg1: memref<128x128xf32, #tpu.memory_space<vmem>>, %arg2: memref<128x128xbf16, #tpu.memory_space<vmem>>, %arg3: memref<1x128xf32, #tpu.memory_space<vmem>>, %arg4: memref<4x1x128xf32, #tpu.memory_space<vmem>>, %arg5: memref<4x1x128xf32, #tpu.memory_space<vmem>>, %arg6: memref<4x128x512xbf16, #tpu.memory_space<vmem>>, %arg7: memref<4x1x512xf32, #tpu.memory_space<vmem>>, %arg8: memref<4x512x128xbf16, #tpu.memory_space<vmem>>, %arg9: memref<4x1x128xf32, #tpu.memory_space<vmem>>, %arg10: memref<128x128xbf16, #tpu.memory_space<vmem>>, %arg11: memref<1x128xf32, #tpu.memory_space<vmem>>, %arg12: memref<128x128xf32, #tpu.memory_space<vmem>>, %arg13: memref<128x128xf32, #tpu.memory_space<vmem>>) attributes {dimension_semantics = [#tpu.dimension_semantics<parallel>], iteration_bounds = array<i64: 2>, scalar_prefetch = 0 : i64, scratch_operands = 1 : i64, tpu.core_type = #tpu.core_type<tc>, window_params = [{transform_indices = @transform_0, window_bounds = array<i64: 128, 128>}, {pipeline_mode = #tpu.pipeline_mode<synchronous>, transform_indices = @transform_1, window_bounds = array<i64: 128, 128>}, {pipeline_mode = #tpu.pipeline_mode<synchronous>, transform_indices = @transform_2, window_bounds = array<i64: 1, 128>}, {pipeline_mode = #tpu.pipeline_mode<synchronous>, transform_indices = @transform_3, window_bounds = array<i64: 4, 1, 128>}, {pipeline_mode = #tpu.pipeline_mode<synchronous>, transform_indices = @transform_4, window_bounds = array<i64: 4, 1, 128>}, {pipeline_mode = #tpu.pipeline_mode<synchronous>, transform_indices = @transform_5, window_bounds = array<i64: 4, 128, 512>}, {pipeline_mode = #tpu.pipeline_mode<synchronous>, transform_indices = @transform_6, window_bounds = array<i64: 4, 1, 512>}, {pipeline_mode = #tpu.pipeline_mode<synchronous>, transform_indices = @transform_7, window_bounds = array<i64: 4, 512, 128>}, {pipeline_mode = #tpu.pipeline_mode<synchronous>, transform_indices = @transform_8, window_bounds = array<i64: 4, 1, 128>}, {pipeline_mode = #tpu.pipeline_mode<synchronous>, transform_indices = @transform_9, window_bounds = array<i64: 128, 128>}, {pipeline_mode = #tpu.pipeline_mode<synchronous>, transform_indices = @transform_10, window_bounds = array<i64: 1, 128>}, {transform_indices = @transform_11, window_bounds = array<i64: 128, 128>}]} {
    %c0 = arith.constant 0 : index
    %c0_0 = arith.constant 0 : index
    %0 = vector.load %arg1[%c0, %c0_0] : memref<128x128xf32, #tpu.memory_space<vmem>>, vector<128x128xf32>
    %1 = arith.truncf %0 : vector<128x128xf32> to vector<128x128xbf16>
    %c0_1 = arith.constant 0 : index
    %c0_2 = arith.constant 0 : index
    %2 = vector.load %arg2[%c0_1, %c0_2] : memref<128x128xbf16, #tpu.memory_space<vmem>>, vector<128x128xbf16>
    %cst = arith.constant dense<0.000000e+00> : vector<128x128xf32>
    %3 = tpu.matmul %1, %2, %cst {dimension_numbers = #tpu.dot_dimension_numbers<[1], [0], [0], [1], [0, 0, 1, 1], [], []>} : vector<128x128xbf16>, vector<128x128xbf16>, vector<128x128xf32> -> vector<128x128xf32>
    %c0_3 = arith.constant 0 : index
    %c0_4 = arith.constant 0 : index
    %4 = vector.load %arg3[%c0_3, %c0_4] : memref<1x128xf32, #tpu.memory_space<vmem>>, vector<1x128xf32>
    %5 = vector.broadcast %4 : vector<1x128xf32> to vector<128x128xf32>
    %6 = arith.addf %3, %5 : vector<128x128xf32>
    %c0_5 = arith.constant 0 : index
    %c0_6 = arith.constant 0 : index
    %7 = vector.load %arg13[%c0_5, %c0_6] : memref<128x128xf32, #tpu.memory_space<vmem>>, vector<128x128xf32>
    tpu.vector_store %arg13[%c0_5, %c0_6], %6 {strides = array<i32>} : memref<128x128xf32, #tpu.memory_space<vmem>>, vector<128x128xf32>,
    %c0_i32 = arith.constant 0 : i32
    %c0_7 = arith.constant 0 : index
    %c0_8 = arith.constant 0 : index
    %8 = vector.load %arg13[%c0_7, %c0_8] : memref<128x128xf32, #tpu.memory_space<vmem>>, vector<128x128xf32>
    %cst_9 = arith.constant dense<0.000000e+00> : vector<128xf32>
    %9 = vector.multi_reduction <add>, %8, %cst_9 [1] : vector<128x128xf32> to vector<128xf32>
    %10 = vector.shape_cast %9 : vector<128xf32> to vector<128x1xf32>
    %cst_10 = arith.constant 1.280000e+02 : f32
    %11 = vector.broadcast %cst_10 : f32 to vector<128x1xf32>
    %12 = arith.divf %10, %11 : vector<128x1xf32>
    %13 = vector.broadcast %12 : vector<128x1xf32> to vector<128x128xf32>
    %14 = arith.subf %8, %13 : vector<128x128xf32>
    %15 = arith.mulf %14, %14 : vector<128x128xf32>
    %cst_11 = arith.constant dense<0.000000e+00> : vector<128xf32>
    %16 = vector.multi_reduction <add>, %15, %cst_11 [1] : vector<128x128xf32> to vector<128xf32>
    %17 = vector.shape_cast %16 : vector<128xf32> to vector<128x1xf32>
    %cst_12 = arith.constant 1.280000e+02 : f32
    %18 = vector.broadcast %cst_12 : f32 to vector<128x1xf32>
    %19 = arith.divf %17, %18 : vector<128x1xf32>
    %cst_13 = arith.constant 9.99999974E-6 : f32
    %20 = vector.broadcast %cst_13 : f32 to vector<128x1xf32>
    %21 = arith.addf %19, %20 : vector<128x1xf32>
    %22 = math.rsqrt %21 : vector<128x1xf32>
    %23 = vector.broadcast %22 : vector<128x1xf32> to vector<128x128xf32>
    %24 = arith.mulf %14, %23 : vector<128x128xf32>
    %25 = arith.index_cast %c0_i32 : i32 to index
    %c0_14 = arith.constant 0 : index
    %c0_15 = arith.constant 0 : index
    %26 = vector.load %arg4[%25, %c0_14, %c0_15] : memref<4x1x128xf32, #tpu.memory_space<vmem>>, vector<1x1x128xf32>
    %27 = vector.shape_cast %26 : vector<1x1x128xf32> to vector<1x128xf32>
    %28 = vector.broadcast %27 : vector<1x128xf32> to vector<128x128xf32>
    %29 = arith.mulf %24, %28 : vector<128x128xf32>
    %30 = arith.index_cast %c0_i32 : i32 to index
    %c0_16 = arith.constant 0 : index
    %c0_17 = arith.constant 0 : index
    %31 = vector.load %arg5[%30, %c0_16, %c0_17] : memref<4x1x128xf32, #tpu.memory_space<vmem>>, vector<1x1x128xf32>
    %32 = vector.shape_cast %31 : vector<1x1x128xf32> to vector<1x128xf32>
    %33 = vector.broadcast %32 : vector<1x128xf32> to vector<128x128xf32>
    %34 = arith.addf %29, %33 : vector<128x128xf32>
    %35 = arith.truncf %34 : vector<128x128xf32> to vector<128x128xbf16>
    %cst_18 = arith.constant 0.000000e+00 : f32
    %36 = vector.broadcast %cst_18 : f32 to vector<128x128xf32>
    %37 = arith.index_cast %c0_i32 : i32 to index
    %c0_19 = arith.constant 0 : index
    %c0_20 = arith.constant 0 : index
    %38 = vector.load %arg6[%37, %c0_19, %c0_20] : memref<4x128x512xbf16, #tpu.memory_space<vmem>>, vector<1x128x256xbf16>
    %39 = vector.shape_cast %38 : vector<1x128x256xbf16> to vector<128x256xbf16>
    %cst_21 = arith.constant dense<0.000000e+00> : vector<128x256xf32>
    %40 = tpu.matmul %35, %39, %cst_21 {dimension_numbers = #tpu.dot_dimension_numbers<[1], [0], [0], [1], [0, 0, 1, 1], [], []>} : vector<128x128xbf16>, vector<128x256xbf16>, vector<128x256xf32> -> vector<128x256xf32>
    %41 = arith.index_cast %c0_i32 : i32 to index
    %c0_22 = arith.constant 0 : index
    %c0_23 = arith.constant 0 : index
    %42 = vector.load %arg7[%41, %c0_22, %c0_23] : memref<4x1x512xf32, #tpu.memory_space<vmem>>, vector<1x1x256xf32>
    %43 = vector.shape_cast %42 : vector<1x1x256xf32> to vector<1x256xf32>
    %44 = vector.broadcast %43 : vector<1x256xf32> to vector<128x256xf32>
    %45 = arith.addf %40, %44 : vector<128x256xf32>
    %cst_24 = arith.constant 0.000000e+00 : f32
    %46 = vector.broadcast %cst_24 : f32 to vector<128x256xf32>
    %47 = arith.maximumf %45, %46 : vector<128x256xf32>
    %48 = arith.truncf %47 : vector<128x256xf32> to vector<128x256xbf16>
    %49 = arith.index_cast %c0_i32 : i32 to index
    %c0_25 = arith.constant 0 : index
    %c0_26 = arith.constant 0 : index
    %50 = vector.load %arg8[%49, %c0_25, %c0_26] : memref<4x512x128xbf16, #tpu.memory_space<vmem>>, vector<1x256x128xbf16>
    %51 = vector.shape_cast %50 : vector<1x256x128xbf16> to vector<256x128xbf16>
    %cst_27 = arith.constant dense<0.000000e+00> : vector<128x128xf32>
    %52 = tpu.matmul %48, %51, %cst_27 {dimension_numbers = #tpu.dot_dimension_numbers<[1], [0], [0], [1], [0, 0, 1, 1], [], []>} : vector<128x256xbf16>, vector<256x128xbf16>, vector<128x128xf32> -> vector<128x128xf32>
    %53 = arith.addf %36, %52 : vector<128x128xf32>
    %54 = arith.index_cast %c0_i32 : i32 to index
    %c0_28 = arith.constant 0 : index
    %c256 = arith.constant 256 : index
    %55 = vector.load %arg6[%54, %c0_28, %c256] : memref<4x128x512xbf16, #tpu.memory_space<vmem>>, vector<1x128x256xbf16>
    %56 = vector.shape_cast %55 : vector<1x128x256xbf16> to vector<128x256xbf16>
    %cst_29 = arith.constant dense<0.000000e+00> : vector<128x256xf32>
    %57 = tpu.matmul %35, %56, %cst_29 {dimension_numbers = #tpu.dot_dimension_numbers<[1], [0], [0], [1], [0, 0, 1, 1], [], []>} : vector<128x128xbf16>, vector<128x256xbf16>, vector<128x256xf32> -> vector<128x256xf32>
    %58 = arith.index_cast %c0_i32 : i32 to index
    %c0_30 = arith.constant 0 : index
    %c256_31 = arith.constant 256 : index
    %59 = vector.load %arg7[%58, %c0_30, %c256_31] : memref<4x1x512xf32, #tpu.memory_space<vmem>>, vector<1x1x256xf32>
    %60 = vector.shape_cast %59 : vector<1x1x256xf32> to vector<1x256xf32>
    %61 = vector.broadcast %60 : vector<1x256xf32> to vector<128x256xf32>
    %62 = arith.addf %57, %61 : vector<128x256xf32>
    %cst_32 = arith.constant 0.000000e+00 : f32
    %63 = vector.broadcast %cst_32 : f32 to vector<128x256xf32>
    %64 = arith.maximumf %62, %63 : vector<128x256xf32>
    %65 = arith.truncf %64 : vector<128x256xf32> to vector<128x256xbf16>
    %66 = arith.index_cast %c0_i32 : i32 to index
    %c256_33 = arith.constant 256 : index
    %c0_34 = arith.constant 0 : index
    %67 = vector.load %arg8[%66, %c256_33, %c0_34] : memref<4x512x128xbf16, #tpu.memory_space<vmem>>, vector<1x256x128xbf16>
    %68 = vector.shape_cast %67 : vector<1x256x128xbf16> to vector<256x128xbf16>
    %cst_35 = arith.constant dense<0.000000e+00> : vector<128x128xf32>
    %69 = tpu.matmul %65, %68, %cst_35 {dimension_numbers = #tpu.dot_dimension_numbers<[1], [0], [0], [1], [0, 0, 1, 1], [], []>} : vector<128x256xbf16>, vector<256x128xbf16>, vector<128x128xf32> -> vector<128x128xf32>
    %70 = arith.addf %53, %69 : vector<128x128xf32>
    %71 = arith.index_cast %c0_i32 : i32 to index
    %c0_36 = arith.constant 0 : index
    %c0_37 = arith.constant 0 : index
    %72 = vector.load %arg9[%71, %c0_36, %c0_37] : memref<4x1x128xf32, #tpu.memory_space<vmem>>, vector<1x1x128xf32>
    %73 = vector.shape_cast %72 : vector<1x1x128xf32> to vector<1x128xf32>
    %74 = vector.broadcast %73 : vector<1x128xf32> to vector<128x128xf32>
    %75 = arith.addf %70, %74 : vector<128x128xf32>
    %76 = arith.addf %75, %8 : vector<128x128xf32>
    %c0_38 = arith.constant 0 : index
    %c0_39 = arith.constant 0 : index
    %77 = vector.load %arg13[%c0_38, %c0_39] : memref<128x128xf32, #tpu.memory_space<vmem>>, vector<128x128xf32>
    tpu.vector_store %arg13[%c0_38, %c0_39], %76 {strides = array<i32>} : memref<128x128xf32, #tpu.memory_space<vmem>>, vector<128x128xf32>,
    %c1_i32 = arith.constant 1 : i32
    %c0_40 = arith.constant 0 : index
    %c0_41 = arith.constant 0 : index
    %78 = vector.load %arg13[%c0_40, %c0_41] : memref<128x128xf32, #tpu.memory_space<vmem>>, vector<128x128xf32>
    %cst_42 = arith.constant dense<0.000000e+00> : vector<128xf32>
    %79 = vector.multi_reduction <add>, %78, %cst_42 [1] : vector<128x128xf32> to vector<128xf32>
    %80 = vector.shape_cast %79 : vector<128xf32> to vector<128x1xf32>
    %cst_43 = arith.constant 1.280000e+02 : f32
    %81 = vector.broadcast %cst_43 : f32 to vector<128x1xf32>
    %82 = arith.divf %80, %81 : vector<128x1xf32>
    %83 = vector.broadcast %82 : vector<128x1xf32> to vector<128x128xf32>
    %84 = arith.subf %78, %83 : vector<128x128xf32>
    %85 = arith.mulf %84, %84 : vector<128x128xf32>
    %cst_44 = arith.constant dense<0.000000e+00> : vector<128xf32>
    %86 = vector.multi_reduction <add>, %85, %cst_44 [1] : vector<128x128xf32> to vector<128xf32>
    %87 = vector.shape_cast %86 : vector<128xf32> to vector<128x1xf32>
    %cst_45 = arith.constant 1.280000e+02 : f32
    %88 = vector.broadcast %cst_45 : f32 to vector<128x1xf32>
    %89 = arith.divf %87, %88 : vector<128x1xf32>
    %cst_46 = arith.constant 9.99999974E-6 : f32
    %90 = vector.broadcast %cst_46 : f32 to vector<128x1xf32>
    %91 = arith.addf %89, %90 : vector<128x1xf32>
    %92 = math.rsqrt %91 : vector<128x1xf32>
    %93 = vector.broadcast %92 : vector<128x1xf32> to vector<128x128xf32>
    %94 = arith.mulf %84, %93 : vector<128x128xf32>
    %95 = arith.index_cast %c1_i32 : i32 to index
    %c0_47 = arith.constant 0 : index
    %c0_48 = arith.constant 0 : index
    %96 = vector.load %arg4[%95, %c0_47, %c0_48] : memref<4x1x128xf32, #tpu.memory_space<vmem>>, vector<1x1x128xf32>
    %97 = vector.shape_cast %96 : vector<1x1x128xf32> to vector<1x128xf32>
    %98 = vector.broadcast %97 : vector<1x128xf32> to vector<128x128xf32>
    %99 = arith.mulf %94, %98 : vector<128x128xf32>
    %100 = arith.index_cast %c1_i32 : i32 to index
    %c0_49 = arith.constant 0 : index
    %c0_50 = arith.constant 0 : index
    %101 = vector.load %arg5[%100, %c0_49, %c0_50] : memref<4x1x128xf32, #tpu.memory_space<vmem>>, vector<1x1x128xf32>
    %102 = vector.shape_cast %101 : vector<1x1x128xf32> to vector<1x128xf32>
    %103 = vector.broadcast %102 : vector<1x128xf32> to vector<128x128xf32>
    %104 = arith.addf %99, %103 : vector<128x128xf32>
    %105 = arith.truncf %104 : vector<128x128xf32> to vector<128x128xbf16>
    %cst_51 = arith.constant 0.000000e+00 : f32
    %106 = vector.broadcast %cst_51 : f32 to vector<128x128xf32>
    %107 = arith.index_cast %c1_i32 : i32 to index
    %c0_52 = arith.constant 0 : index
    %c0_53 = arith.constant 0 : index
    %108 = vector.load %arg6[%107, %c0_52, %c0_53] : memref<4x128x512xbf16, #tpu.memory_space<vmem>>, vector<1x128x256xbf16>
    %109 = vector.shape_cast %108 : vector<1x128x256xbf16> to vector<128x256xbf16>
    %cst_54 = arith.constant dense<0.000000e+00> : vector<128x256xf32>
    %110 = tpu.matmul %105, %109, %cst_54 {dimension_numbers = #tpu.dot_dimension_numbers<[1], [0], [0], [1], [0, 0, 1, 1], [], []>} : vector<128x128xbf16>, vector<128x256xbf16>, vector<128x256xf32> -> vector<128x256xf32>
    %111 = arith.index_cast %c1_i32 : i32 to index
    %c0_55 = arith.constant 0 : index
    %c0_56 = arith.constant 0 : index
    %112 = vector.load %arg7[%111, %c0_55, %c0_56] : memref<4x1x512xf32, #tpu.memory_space<vmem>>, vector<1x1x256xf32>
    %113 = vector.shape_cast %112 : vector<1x1x256xf32> to vector<1x256xf32>
    %114 = vector.broadcast %113 : vector<1x256xf32> to vector<128x256xf32>
    %115 = arith.addf %110, %114 : vector<128x256xf32>
    %cst_57 = arith.constant 0.000000e+00 : f32
    %116 = vector.broadcast %cst_57 : f32 to vector<128x256xf32>
    %117 = arith.maximumf %115, %116 : vector<128x256xf32>
    %118 = arith.truncf %117 : vector<128x256xf32> to vector<128x256xbf16>
    %119 = arith.index_cast %c1_i32 : i32 to index
    %c0_58 = arith.constant 0 : index
    %c0_59 = arith.constant 0 : index
    %120 = vector.load %arg8[%119, %c0_58, %c0_59] : memref<4x512x128xbf16, #tpu.memory_space<vmem>>, vector<1x256x128xbf16>
    %121 = vector.shape_cast %120 : vector<1x256x128xbf16> to vector<256x128xbf16>
    %cst_60 = arith.constant dense<0.000000e+00> : vector<128x128xf32>
    %122 = tpu.matmul %118, %121, %cst_60 {dimension_numbers = #tpu.dot_dimension_numbers<[1], [0], [0], [1], [0, 0, 1, 1], [], []>} : vector<128x256xbf16>, vector<256x128xbf16>, vector<128x128xf32> -> vector<128x128xf32>
    %123 = arith.addf %106, %122 : vector<128x128xf32>
    %124 = arith.index_cast %c1_i32 : i32 to index
    %c0_61 = arith.constant 0 : index
    %c256_62 = arith.constant 256 : index
    %125 = vector.load %arg6[%124, %c0_61, %c256_62] : memref<4x128x512xbf16, #tpu.memory_space<vmem>>, vector<1x128x256xbf16>
    %126 = vector.shape_cast %125 : vector<1x128x256xbf16> to vector<128x256xbf16>
    %cst_63 = arith.constant dense<0.000000e+00> : vector<128x256xf32>
    %127 = tpu.matmul %105, %126, %cst_63 {dimension_numbers = #tpu.dot_dimension_numbers<[1], [0], [0], [1], [0, 0, 1, 1], [], []>} : vector<128x128xbf16>, vector<128x256xbf16>, vector<128x256xf32> -> vector<128x256xf32>
    %128 = arith.index_cast %c1_i32 : i32 to index
    %c0_64 = arith.constant 0 : index
    %c256_65 = arith.constant 256 : index
    %129 = vector.load %arg7[%128, %c0_64, %c256_65] : memref<4x1x512xf32, #tpu.memory_space<vmem>>, vector<1x1x256xf32>
    %130 = vector.shape_cast %129 : vector<1x1x256xf32> to vector<1x256xf32>
    %131 = vector.broadcast %130 : vector<1x256xf32> to vector<128x256xf32>
    %132 = arith.addf %127, %131 : vector<128x256xf32>
    %cst_66 = arith.constant 0.000000e+00 : f32
    %133 = vector.broadcast %cst_66 : f32 to vector<128x256xf32>
    %134 = arith.maximumf %132, %133 : vector<128x256xf32>
    %135 = arith.truncf %134 : vector<128x256xf32> to vector<128x256xbf16>
    %136 = arith.index_cast %c1_i32 : i32 to index
    %c256_67 = arith.constant 256 : index
    %c0_68 = arith.constant 0 : index
    %137 = vector.load %arg8[%136, %c256_67, %c0_68] : memref<4x512x128xbf16, #tpu.memory_space<vmem>>, vector<1x256x128xbf16>
    %138 = vector.shape_cast %137 : vector<1x256x128xbf16> to vector<256x128xbf16>
    %cst_69 = arith.constant dense<0.000000e+00> : vector<128x128xf32>
    %139 = tpu.matmul %135, %138, %cst_69 {dimension_numbers = #tpu.dot_dimension_numbers<[1], [0], [0], [1], [0, 0, 1, 1], [], []>} : vector<128x256xbf16>, vector<256x128xbf16>, vector<128x128xf32> -> vector<128x128xf32>
    %140 = arith.addf %123, %139 : vector<128x128xf32>
    %141 = arith.index_cast %c1_i32 : i32 to index
    %c0_70 = arith.constant 0 : index
    %c0_71 = arith.constant 0 : index
    %142 = vector.load %arg9[%141, %c0_70, %c0_71] : memref<4x1x128xf32, #tpu.memory_space<vmem>>, vector<1x1x128xf32>
    %143 = vector.shape_cast %142 : vector<1x1x128xf32> to vector<1x128xf32>
    %144 = vector.broadcast %143 : vector<1x128xf32> to vector<128x128xf32>
    %145 = arith.addf %140, %144 : vector<128x128xf32>
    %146 = arith.addf %145, %78 : vector<128x128xf32>
    %c0_72 = arith.constant 0 : index
    %c0_73 = arith.constant 0 : index
    %147 = vector.load %arg13[%c0_72, %c0_73] : memref<128x128xf32, #tpu.memory_space<vmem>>, vector<128x128xf32>
    tpu.vector_store %arg13[%c0_72, %c0_73], %146 {strides = array<i32>} : memref<128x128xf32, #tpu.memory_space<vmem>>, vector<128x128xf32>,
    %c2_i32 = arith.constant 2 : i32
    %c0_74 = arith.constant 0 : index
    %c0_75 = arith.constant 0 : index
    %148 = vector.load %arg13[%c0_74, %c0_75] : memref<128x128xf32, #tpu.memory_space<vmem>>, vector<128x128xf32>
    %cst_76 = arith.constant dense<0.000000e+00> : vector<128xf32>
    %149 = vector.multi_reduction <add>, %148, %cst_76 [1] : vector<128x128xf32> to vector<128xf32>
    %150 = vector.shape_cast %149 : vector<128xf32> to vector<128x1xf32>
    %cst_77 = arith.constant 1.280000e+02 : f32
    %151 = vector.broadcast %cst_77 : f32 to vector<128x1xf32>
    %152 = arith.divf %150, %151 : vector<128x1xf32>
    %153 = vector.broadcast %152 : vector<128x1xf32> to vector<128x128xf32>
    %154 = arith.subf %148, %153 : vector<128x128xf32>
    %155 = arith.mulf %154, %154 : vector<128x128xf32>
    %cst_78 = arith.constant dense<0.000000e+00> : vector<128xf32>
    %156 = vector.multi_reduction <add>, %155, %cst_78 [1] : vector<128x128xf32> to vector<128xf32>
    %157 = vector.shape_cast %156 : vector<128xf32> to vector<128x1xf32>
    %cst_79 = arith.constant 1.280000e+02 : f32
    %158 = vector.broadcast %cst_79 : f32 to vector<128x1xf32>
    %159 = arith.divf %157, %158 : vector<128x1xf32>
    %cst_80 = arith.constant 9.99999974E-6 : f32
    %160 = vector.broadcast %cst_80 : f32 to vector<128x1xf32>
    %161 = arith.addf %159, %160 : vector<128x1xf32>
    %162 = math.rsqrt %161 : vector<128x1xf32>
    %163 = vector.broadcast %162 : vector<128x1xf32> to vector<128x128xf32>
    %164 = arith.mulf %154, %163 : vector<128x128xf32>
    %165 = arith.index_cast %c2_i32 : i32 to index
    %c0_81 = arith.constant 0 : index
    %c0_82 = arith.constant 0 : index
    %166 = vector.load %arg4[%165, %c0_81, %c0_82] : memref<4x1x128xf32, #tpu.memory_space<vmem>>, vector<1x1x128xf32>
    %167 = vector.shape_cast %166 : vector<1x1x128xf32> to vector<1x128xf32>
    %168 = vector.broadcast %167 : vector<1x128xf32> to vector<128x128xf32>
    %169 = arith.mulf %164, %168 : vector<128x128xf32>
    %170 = arith.index_cast %c2_i32 : i32 to index
    %c0_83 = arith.constant 0 : index
    %c0_84 = arith.constant 0 : index
    %171 = vector.load %arg5[%170, %c0_83, %c0_84] : memref<4x1x128xf32, #tpu.memory_space<vmem>>, vector<1x1x128xf32>
    %172 = vector.shape_cast %171 : vector<1x1x128xf32> to vector<1x128xf32>
    %173 = vector.broadcast %172 : vector<1x128xf32> to vector<128x128xf32>
    %174 = arith.addf %169, %173 : vector<128x128xf32>
    %175 = arith.truncf %174 : vector<128x128xf32> to vector<128x128xbf16>
    %cst_85 = arith.constant 0.000000e+00 : f32
    %176 = vector.broadcast %cst_85 : f32 to vector<128x128xf32>
    %177 = arith.index_cast %c2_i32 : i32 to index
    %c0_86 = arith.constant 0 : index
    %c0_87 = arith.constant 0 : index
    %178 = vector.load %arg6[%177, %c0_86, %c0_87] : memref<4x128x512xbf16, #tpu.memory_space<vmem>>, vector<1x128x256xbf16>
    %179 = vector.shape_cast %178 : vector<1x128x256xbf16> to vector<128x256xbf16>
    %cst_88 = arith.constant dense<0.000000e+00> : vector<128x256xf32>
    %180 = tpu.matmul %175, %179, %cst_88 {dimension_numbers = #tpu.dot_dimension_numbers<[1], [0], [0], [1], [0, 0, 1, 1], [], []>} : vector<128x128xbf16>, vector<128x256xbf16>, vector<128x256xf32> -> vector<128x256xf32>
    %181 = arith.index_cast %c2_i32 : i32 to index
    %c0_89 = arith.constant 0 : index
    %c0_90 = arith.constant 0 : index
    %182 = vector.load %arg7[%181, %c0_89, %c0_90] : memref<4x1x512xf32, #tpu.memory_space<vmem>>, vector<1x1x256xf32>
    %183 = vector.shape_cast %182 : vector<1x1x256xf32> to vector<1x256xf32>
    %184 = vector.broadcast %183 : vector<1x256xf32> to vector<128x256xf32>
    %185 = arith.addf %180, %184 : vector<128x256xf32>
    %cst_91 = arith.constant 0.000000e+00 : f32
    %186 = vector.broadcast %cst_91 : f32 to vector<128x256xf32>
    %187 = arith.maximumf %185, %186 : vector<128x256xf32>
    %188 = arith.truncf %187 : vector<128x256xf32> to vector<128x256xbf16>
    %189 = arith.index_cast %c2_i32 : i32 to index
    %c0_92 = arith.constant 0 : index
    %c0_93 = arith.constant 0 : index
    %190 = vector.load %arg8[%189, %c0_92, %c0_93] : memref<4x512x128xbf16, #tpu.memory_space<vmem>>, vector<1x256x128xbf16>
    %191 = vector.shape_cast %190 : vector<1x256x128xbf16> to vector<256x128xbf16>
    %cst_94 = arith.constant dense<0.000000e+00> : vector<128x128xf32>
    %192 = tpu.matmul %188, %191, %cst_94 {dimension_numbers = #tpu.dot_dimension_numbers<[1], [0], [0], [1], [0, 0, 1, 1], [], []>} : vector<128x256xbf16>, vector<256x128xbf16>, vector<128x128xf32> -> vector<128x128xf32>
    %193 = arith.addf %176, %192 : vector<128x128xf32>
    %194 = arith.index_cast %c2_i32 : i32 to index
    %c0_95 = arith.constant 0 : index
    %c256_96 = arith.constant 256 : index
    %195 = vector.load %arg6[%194, %c0_95, %c256_96] : memref<4x128x512xbf16, #tpu.memory_space<vmem>>, vector<1x128x256xbf16>
    %196 = vector.shape_cast %195 : vector<1x128x256xbf16> to vector<128x256xbf16>
    %cst_97 = arith.constant dense<0.000000e+00> : vector<128x256xf32>
    %197 = tpu.matmul %175, %196, %cst_97 {dimension_numbers = #tpu.dot_dimension_numbers<[1], [0], [0], [1], [0, 0, 1, 1], [], []>} : vector<128x128xbf16>, vector<128x256xbf16>, vector<128x256xf32> -> vector<128x256xf32>
    %198 = arith.index_cast %c2_i32 : i32 to index
    %c0_98 = arith.constant 0 : index
    %c256_99 = arith.constant 256 : index
    %199 = vector.load %arg7[%198, %c0_98, %c256_99] : memref<4x1x512xf32, #tpu.memory_space<vmem>>, vector<1x1x256xf32>
    %200 = vector.shape_cast %199 : vector<1x1x256xf32> to vector<1x256xf32>
    %201 = vector.broadcast %200 : vector<1x256xf32> to vector<128x256xf32>
    %202 = arith.addf %197, %201 : vector<128x256xf32>
    %cst_100 = arith.constant 0.000000e+00 : f32
    %203 = vector.broadcast %cst_100 : f32 to vector<128x256xf32>
    %204 = arith.maximumf %202, %203 : vector<128x256xf32>
    %205 = arith.truncf %204 : vector<128x256xf32> to vector<128x256xbf16>
    %206 = arith.index_cast %c2_i32 : i32 to index
    %c256_101 = arith.constant 256 : index
    %c0_102 = arith.constant 0 : index
    %207 = vector.load %arg8[%206, %c256_101, %c0_102] : memref<4x512x128xbf16, #tpu.memory_space<vmem>>, vector<1x256x128xbf16>
    %208 = vector.shape_cast %207 : vector<1x256x128xbf16> to vector<256x128xbf16>
    %cst_103 = arith.constant dense<0.000000e+00> : vector<128x128xf32>
    %209 = tpu.matmul %205, %208, %cst_103 {dimension_numbers = #tpu.dot_dimension_numbers<[1], [0], [0], [1], [0, 0, 1, 1], [], []>} : vector<128x256xbf16>, vector<256x128xbf16>, vector<128x128xf32> -> vector<128x128xf32>
    %210 = arith.addf %193, %209 : vector<128x128xf32>
    %211 = arith.index_cast %c2_i32 : i32 to index
    %c0_104 = arith.constant 0 : index
    %c0_105 = arith.constant 0 : index
    %212 = vector.load %arg9[%211, %c0_104, %c0_105] : memref<4x1x128xf32, #tpu.memory_space<vmem>>, vector<1x1x128xf32>
    %213 = vector.shape_cast %212 : vector<1x1x128xf32> to vector<1x128xf32>
    %214 = vector.broadcast %213 : vector<1x128xf32> to vector<128x128xf32>
    %215 = arith.addf %210, %214 : vector<128x128xf32>
    %216 = arith.addf %215, %148 : vector<128x128xf32>
    %c0_106 = arith.constant 0 : index
    %c0_107 = arith.constant 0 : index
    %217 = vector.load %arg13[%c0_106, %c0_107] : memref<128x128xf32, #tpu.memory_space<vmem>>, vector<128x128xf32>
    tpu.vector_store %arg13[%c0_106, %c0_107], %216 {strides = array<i32>} : memref<128x128xf32, #tpu.memory_space<vmem>>, vector<128x128xf32>,
    %c3_i32 = arith.constant 3 : i32
    %c0_108 = arith.constant 0 : index
    %c0_109 = arith.constant 0 : index
    %218 = vector.load %arg13[%c0_108, %c0_109] : memref<128x128xf32, #tpu.memory_space<vmem>>, vector<128x128xf32>
    %cst_110 = arith.constant dense<0.000000e+00> : vector<128xf32>
    %219 = vector.multi_reduction <add>, %218, %cst_110 [1] : vector<128x128xf32> to vector<128xf32>
    %220 = vector.shape_cast %219 : vector<128xf32> to vector<128x1xf32>
    %cst_111 = arith.constant 1.280000e+02 : f32
    %221 = vector.broadcast %cst_111 : f32 to vector<128x1xf32>
    %222 = arith.divf %220, %221 : vector<128x1xf32>
    %223 = vector.broadcast %222 : vector<128x1xf32> to vector<128x128xf32>
    %224 = arith.subf %218, %223 : vector<128x128xf32>
    %225 = arith.mulf %224, %224 : vector<128x128xf32>
    %cst_112 = arith.constant dense<0.000000e+00> : vector<128xf32>
    %226 = vector.multi_reduction <add>, %225, %cst_112 [1] : vector<128x128xf32> to vector<128xf32>
    %227 = vector.shape_cast %226 : vector<128xf32> to vector<128x1xf32>
    %cst_113 = arith.constant 1.280000e+02 : f32
    %228 = vector.broadcast %cst_113 : f32 to vector<128x1xf32>
    %229 = arith.divf %227, %228 : vector<128x1xf32>
    %cst_114 = arith.constant 9.99999974E-6 : f32
    %230 = vector.broadcast %cst_114 : f32 to vector<128x1xf32>
    %231 = arith.addf %229, %230 : vector<128x1xf32>
    %232 = math.rsqrt %231 : vector<128x1xf32>
    %233 = vector.broadcast %232 : vector<128x1xf32> to vector<128x128xf32>
    %234 = arith.mulf %224, %233 : vector<128x128xf32>
    %235 = arith.index_cast %c3_i32 : i32 to index
    %c0_115 = arith.constant 0 : index
    %c0_116 = arith.constant 0 : index
    %236 = vector.load %arg4[%235, %c0_115, %c0_116] : memref<4x1x128xf32, #tpu.memory_space<vmem>>, vector<1x1x128xf32>
    %237 = vector.shape_cast %236 : vector<1x1x128xf32> to vector<1x128xf32>
    %238 = vector.broadcast %237 : vector<1x128xf32> to vector<128x128xf32>
    %239 = arith.mulf %234, %238 : vector<128x128xf32>
    %240 = arith.index_cast %c3_i32 : i32 to index
    %c0_117 = arith.constant 0 : index
    %c0_118 = arith.constant 0 : index
    %241 = vector.load %arg5[%240, %c0_117, %c0_118] : memref<4x1x128xf32, #tpu.memory_space<vmem>>, vector<1x1x128xf32>
    %242 = vector.shape_cast %241 : vector<1x1x128xf32> to vector<1x128xf32>
    %243 = vector.broadcast %242 : vector<1x128xf32> to vector<128x128xf32>
    %244 = arith.addf %239, %243 : vector<128x128xf32>
    %245 = arith.truncf %244 : vector<128x128xf32> to vector<128x128xbf16>
    %cst_119 = arith.constant 0.000000e+00 : f32
    %246 = vector.broadcast %cst_119 : f32 to vector<128x128xf32>
    %247 = arith.index_cast %c3_i32 : i32 to index
    %c0_120 = arith.constant 0 : index
    %c0_121 = arith.constant 0 : index
    %248 = vector.load %arg6[%247, %c0_120, %c0_121] : memref<4x128x512xbf16, #tpu.memory_space<vmem>>, vector<1x128x256xbf16>
    %249 = vector.shape_cast %248 : vector<1x128x256xbf16> to vector<128x256xbf16>
    %cst_122 = arith.constant dense<0.000000e+00> : vector<128x256xf32>
    %250 = tpu.matmul %245, %249, %cst_122 {dimension_numbers = #tpu.dot_dimension_numbers<[1], [0], [0], [1], [0, 0, 1, 1], [], []>} : vector<128x128xbf16>, vector<128x256xbf16>, vector<128x256xf32> -> vector<128x256xf32>
    %251 = arith.index_cast %c3_i32 : i32 to index
    %c0_123 = arith.constant 0 : index
    %c0_124 = arith.constant 0 : index
    %252 = vector.load %arg7[%251, %c0_123, %c0_124] : memref<4x1x512xf32, #tpu.memory_space<vmem>>, vector<1x1x256xf32>
    %253 = vector.shape_cast %252 : vector<1x1x256xf32> to vector<1x256xf32>
    %254 = vector.broadcast %253 : vector<1x256xf32> to vector<128x256xf32>
    %255 = arith.addf %250, %254 : vector<128x256xf32>
    %cst_125 = arith.constant 0.000000e+00 : f32
    %256 = vector.broadcast %cst_125 : f32 to vector<128x256xf32>
    %257 = arith.maximumf %255, %256 : vector<128x256xf32>
    %258 = arith.truncf %257 : vector<128x256xf32> to vector<128x256xbf16>
    %259 = arith.index_cast %c3_i32 : i32 to index
    %c0_126 = arith.constant 0 : index
    %c0_127 = arith.constant 0 : index
    %260 = vector.load %arg8[%259, %c0_126, %c0_127] : memref<4x512x128xbf16, #tpu.memory_space<vmem>>, vector<1x256x128xbf16>
    %261 = vector.shape_cast %260 : vector<1x256x128xbf16> to vector<256x128xbf16>
    %cst_128 = arith.constant dense<0.000000e+00> : vector<128x128xf32>
    %262 = tpu.matmul %258, %261, %cst_128 {dimension_numbers = #tpu.dot_dimension_numbers<[1], [0], [0], [1], [0, 0, 1, 1], [], []>} : vector<128x256xbf16>, vector<256x128xbf16>, vector<128x128xf32> -> vector<128x128xf32>
    %263 = arith.addf %246, %262 : vector<128x128xf32>
    %264 = arith.index_cast %c3_i32 : i32 to index
    %c0_129 = arith.constant 0 : index
    %c256_130 = arith.constant 256 : index
    %265 = vector.load %arg6[%264, %c0_129, %c256_130] : memref<4x128x512xbf16, #tpu.memory_space<vmem>>, vector<1x128x256xbf16>
    %266 = vector.shape_cast %265 : vector<1x128x256xbf16> to vector<128x256xbf16>
    %cst_131 = arith.constant dense<0.000000e+00> : vector<128x256xf32>
    %267 = tpu.matmul %245, %266, %cst_131 {dimension_numbers = #tpu.dot_dimension_numbers<[1], [0], [0], [1], [0, 0, 1, 1], [], []>} : vector<128x128xbf16>, vector<128x256xbf16>, vector<128x256xf32> -> vector<128x256xf32>
    %268 = arith.index_cast %c3_i32 : i32 to index
    %c0_132 = arith.constant 0 : index
    %c256_133 = arith.constant 256 : index
    %269 = vector.load %arg7[%268, %c0_132, %c256_133] : memref<4x1x512xf32, #tpu.memory_space<vmem>>, vector<1x1x256xf32>
    %270 = vector.shape_cast %269 : vector<1x1x256xf32> to vector<1x256xf32>
    %271 = vector.broadcast %270 : vector<1x256xf32> to vector<128x256xf32>
    %272 = arith.addf %267, %271 : vector<128x256xf32>
    %cst_134 = arith.constant 0.000000e+00 : f32
    %273 = vector.broadcast %cst_134 : f32 to vector<128x256xf32>
    %274 = arith.maximumf %272, %273 : vector<128x256xf32>
    %275 = arith.truncf %274 : vector<128x256xf32> to vector<128x256xbf16>
    %276 = arith.index_cast %c3_i32 : i32 to index
    %c256_135 = arith.constant 256 : index
    %c0_136 = arith.constant 0 : index
    %277 = vector.load %arg8[%276, %c256_135, %c0_136] : memref<4x512x128xbf16, #tpu.memory_space<vmem>>, vector<1x256x128xbf16>
    %278 = vector.shape_cast %277 : vector<1x256x128xbf16> to vector<256x128xbf16>
    %cst_137 = arith.constant dense<0.000000e+00> : vector<128x128xf32>
    %279 = tpu.matmul %275, %278, %cst_137 {dimension_numbers = #tpu.dot_dimension_numbers<[1], [0], [0], [1], [0, 0, 1, 1], [], []>} : vector<128x256xbf16>, vector<256x128xbf16>, vector<128x128xf32> -> vector<128x128xf32>
    %280 = arith.addf %263, %279 : vector<128x128xf32>
    %281 = arith.index_cast %c3_i32 : i32 to index
    %c0_138 = arith.constant 0 : index
    %c0_139 = arith.constant 0 : index
    %282 = vector.load %arg9[%281, %c0_138, %c0_139] : memref<4x1x128xf32, #tpu.memory_space<vmem>>, vector<1x1x128xf32>
    %283 = vector.shape_cast %282 : vector<1x1x128xf32> to vector<1x128xf32>
    %284 = vector.broadcast %283 : vector<1x128xf32> to vector<128x128xf32>
    %285 = arith.addf %280, %284 : vector<128x128xf32>
    %286 = arith.addf %285, %218 : vector<128x128xf32>
    %c0_140 = arith.constant 0 : index
    %c0_141 = arith.constant 0 : index
    %287 = vector.load %arg13[%c0_140, %c0_141] : memref<128x128xf32, #tpu.memory_space<vmem>>, vector<128x128xf32>
    tpu.vector_store %arg13[%c0_140, %c0_141], %286 {strides = array<i32>} : memref<128x128xf32, #tpu.memory_space<vmem>>, vector<128x128xf32>,
    %c4_i32 = arith.constant 4 : i32
    %c0_142 = arith.constant 0 : index
    %c0_143 = arith.constant 0 : index
    %288 = vector.load %arg13[%c0_142, %c0_143] : memref<128x128xf32, #tpu.memory_space<vmem>>, vector<128x128xf32>
    %289 = arith.truncf %288 : vector<128x128xf32> to vector<128x128xbf16>
    %c0_144 = arith.constant 0 : index
    %c0_145 = arith.constant 0 : index
    %290 = vector.load %arg10[%c0_144, %c0_145] : memref<128x128xbf16, #tpu.memory_space<vmem>>, vector<128x128xbf16>
    %cst_146 = arith.constant dense<0.000000e+00> : vector<128x128xf32>
    %291 = tpu.matmul %289, %290, %cst_146 {dimension_numbers = #tpu.dot_dimension_numbers<[1], [0], [0], [1], [0, 0, 1, 1], [], []>} : vector<128x128xbf16>, vector<128x128xbf16>, vector<128x128xf32> -> vector<128x128xf32>
    %c0_147 = arith.constant 0 : index
    %c0_148 = arith.constant 0 : index
    %292 = vector.load %arg11[%c0_147, %c0_148] : memref<1x128xf32, #tpu.memory_space<vmem>>, vector<1x128xf32>
    %293 = vector.broadcast %292 : vector<1x128xf32> to vector<128x128xf32>
    %294 = arith.addf %291, %293 : vector<128x128xf32>
    %c0_149 = arith.constant 0 : index
    %c0_150 = arith.constant 0 : index
    %295 = vector.load %arg12[%c0_149, %c0_150] : memref<128x128xf32, #tpu.memory_space<vmem>>, vector<128x128xf32>
    tpu.vector_store %arg12[%c0_149, %c0_150], %294 {strides = array<i32>} : memref<128x128xf32, #tpu.memory_space<vmem>>, vector<128x128xf32>,
    return
  }
  func.func @transform_0(%arg0: i32) -> (i32, i32) {
    %c0_i32 = arith.constant 0 : i32
    %c0_i32_0 = arith.constant 0 : i32
    return %arg0, %c0_i32 : i32, i32
  }
  func.func @transform_1(%arg0: i32) -> (i32, i32) {
    %c0_i32 = arith.constant 0 : i32
    %c0_i32_0 = arith.constant 0 : i32
    %c0_i32_1 = arith.constant 0 : i32
    return %c0_i32, %c0_i32_0 : i32, i32
  }
  func.func @transform_2(%arg0: i32) -> (i32, i32) {
    %c0_i32 = arith.constant 0 : i32
    %c0_i32_0 = arith.constant 0 : i32
    %c0_i32_1 = arith.constant 0 : i32
    return %c0_i32, %c0_i32_0 : i32, i32
  }
  func.func @transform_3(%arg0: i32) -> (i32, i32, i32) {
    %c0_i32 = arith.constant 0 : i32
    %c0_i32_0 = arith.constant 0 : i32
    %c0_i32_1 = arith.constant 0 : i32
    %c0_i32_2 = arith.constant 0 : i32
    return %c0_i32, %c0_i32_0, %c0_i32_1 : i32, i32, i32
  }
  func.func @transform_4(%arg0: i32) -> (i32, i32, i32) {
    %c0_i32 = arith.constant 0 : i32
    %c0_i32_0 = arith.constant 0 : i32
    %c0_i32_1 = arith.constant 0 : i32
    %c0_i32_2 = arith.constant 0 : i32
    return %c0_i32, %c0_i32_0, %c0_i32_1 : i32, i32, i32
  }
  func.func @transform_5(%arg0: i32) -> (i32, i32, i32) {
    %c0_i32 = arith.constant 0 : i32
    %c0_i32_0 = arith.constant 0 : i32
    %c0_i32_1 = arith.constant 0 : i32
    %c0_i32_2 = arith.constant 0 : i32
    return %c0_i32, %c0_i32_0, %c0_i32_1 : i32, i32, i32
  }
  func.func @transform_6(%arg0: i32) -> (i32, i32, i32) {
    %c0_i32 = arith.constant 0 : i32
    %c0_i32_0 = arith.constant 0 : i32
    %c0_i32_1 = arith.constant 0 : i32
    %c0_i32_2 = arith.constant 0 : i32
    return %c0_i32, %c0_i32_0, %c0_i32_1 : i32, i32, i32
  }
  func.func @transform_7(%arg0: i32) -> (i32, i32, i32) {
    %c0_i32 = arith.constant 0 : i32
    %c0_i32_0 = arith.constant 0 : i32
    %c0_i32_1 = arith.constant 0 : i32
    %c0_i32_2 = arith.constant 0 : i32
    return %c0_i32, %c0_i32_0, %c0_i32_1 : i32, i32, i32
  }
  func.func @transform_8(%arg0: i32) -> (i32, i32, i32) {
    %c0_i32 = arith.constant 0 : i32
    %c0_i32_0 = arith.constant 0 : i32
    %c0_i32_1 = arith.constant 0 : i32
    %c0_i32_2 = arith.constant 0 : i32
    return %c0_i32, %c0_i32_0, %c0_i32_1 : i32, i32, i32
  }
  func.func @transform_9(%arg0: i32) -> (i32, i32) {
    %c0_i32 = arith.constant 0 : i32
    %c0_i32_0 = arith.constant 0 : i32
    %c0_i32_1 = arith.constant 0 : i32
    return %c0_i32, %c0_i32_0 : i32, i32
  }
  func.func @transform_10(%arg0: i32) -> (i32, i32) {
    %c0_i32 = arith.constant 0 : i32
    %c0_i32_0 = arith.constant 0 : i32
    %c0_i32_1 = arith.constant 0 : i32
    return %c0_i32, %c0_i32_0 : i32, i32
  }
  func.func @transform_11(%arg0: i32) -> (i32, i32) {
    %c0_i32 = arith.constant 0 : i32
    %c0_i32_0 = arith.constant 0 : i32
    return %arg0, %c0_i32 : i32, i32
  }
}

</mosaic_0001>

<llo_original>
// kernel: fc_net_forward.1
$region0: #{fc_net_forward.1}
  #allocation0 [shape = 'u32[]', space=smem, size = 0x4, offset = 0x4, fixed_abs, tag = 'smem constant byte address 0x4 - core index']
  #allocation1 [shape = 'u32[144,128]{1,0:T(1,128)}', space=vmem, size = 0x12000, scoped, tag = 'internal scratch']
  #allocation2 [shape = 'f32[128,128]{1,0:T(8,128)}', space=vmem, size = 0x10000, scoped, tag = 'scratch operand']
  %s0 = inlined_call_operand.vmem [shape: f32[256,128], index: 0, kind: input, shape index: {}]
  %s1 = inlined_call_operand.vmem [shape: bf16[128,128], index: 1, kind: input, shape index: {}]
  %s2 = inlined_call_operand.vmem [shape: f32[1,128], index: 2, kind: input, shape index: {}]
  %s3 = inlined_call_operand.vmem [shape: f32[4,1,128], index: 3, kind: input, shape index: {}]
  %s4 = inlined_call_operand.vmem [shape: f32[4,1,128], index: 4, kind: input, shape index: {}]
  %s5 = inlined_call_operand.vmem [shape: bf16[4,128,512], index: 5, kind: input, shape index: {}]
  %s6 = inlined_call_operand.vmem [shape: f32[4,1,512], index: 6, kind: input, shape index: {}]
  %s7 = inlined_call_operand.hbm [shape: bf16[4,512,128], index: 7, kind: input, shape index: {}]
  %s8 = inlined_call_operand.vmem [shape: f32[4,1,128], index: 8, kind: input, shape index: {}]
  %s9 = inlined_call_operand.vmem [shape: bf16[128,128], index: 9, kind: input, shape index: {}]
  %s10 = inlined_call_operand.vmem [shape: f32[1,128], index: 10, kind: input, shape index: {}]
  %s11 = inlined_call_operand.vmem [shape: f32[256,128], index: 11, kind: output, shape index: {}]
  %s12 = sld [smem:[#allocation0]]
  $region81: #{fc_net_forward.1} parent=0
    _
  %s14 = ssub.s32 1, %s12
  %s15 = scalar_select 0, %s14, %s12
  $region1: #{fc_net_forward.1} parent=0
    #allocation3 [shape = 'u8[524288]{0}', space=vmem, size = 0x80000, scoped, tag = 'input window, operand 7, single buffered']
    #allocation4 [shape = 's32[2]{0}', space=sflag, size = 0x8, scoped, tag = 'scoped memory for fc_net_forward.1']
    %16 = vsyncpa [#allocation4], 0
    loop: start=0, step=1, limit=4
    $region2: #{fc_net_forward.1} parent=1 // loop_pre_header
      _
    $region3: #{fc_net_forward.1} parent=1 // loop_header
      %s18 = sphi 0, %s22
      %p19 = scmp.ge.s32.totalorder %s18, 4
      %s28 = sphi 0, %s30
      %s31 = sphi 0, %s28
      %s32 = sphi 0, %s31
      %s48 = sphi 0, %s32
      %s52 = sphi 0, %s52
      %s54 = sphi 0, %s52
      %s55 = sphi 0, %s54
      %s69 = sphi 0, %s55
      %s73 = sphi 0, %s73
      %s75 = sphi 0, %s73
      %s76 = sphi 0, %s75
      %s90 = sphi 0, %s76
      %s94 = sphi 0, %s94
      %s96 = sphi 0, %s94
      %s97 = sphi 0, %s96
      %s111 = sphi 0, %s97
      %s115 = sphi 0, %s115
      %s117 = sphi 0, %s115
      %s118 = sphi 0, %s117
      %s132 = sphi 0, %s118
      %s136 = sphi 0, %s136
      %s138 = sphi 0, %s136
      %s139 = sphi 0, %s138
      %s153 = sphi 0, %s139
      %s157 = sphi 0, %s157
      %s159 = sphi 0, %s157
      %s160 = sphi 0, %s159
      %s174 = sphi 0, %s160
      %s178 = sphi 0, %s178
      %s180 = sphi 0, %s178
      %s181 = sphi 0, %s180
      %s195 = sphi 0, %s181
      %s199 = sphi 0, %s199
      %s201 = sphi 0, %s199
      %s202 = sphi 0, %s201
      %s216 = sphi 0, %s202
      %s220 = sphi 0, %s220
      %s222 = sphi 0, %s220
      %s223 = sphi 0, %s222
      %s237 = sphi 0, %s223
      %s241 = sphi 0, %s241
      %s243 = sphi 0, %s241
      %s244 = sphi 0, %s243
      %s258 = sphi 0, %s244
      %s264 = sphi 0, %s266
      %s267 = sphi 0, %s264
      %s268 = sphi 0, %s267
      %s284 = sphi 0, %s268
    $region4: #{fc_net_forward.1} parent=1 // loop_header_branch
      %21 = sbr.rel (%p19) target = $region8
    $region5: #{fc_net_forward.1} parent=1 // loop_body
      %s23 = ssub.s32 %s18, 1
      %s24 = ssub.s32 %s18, 2
      %s25 = sadd.s32 %s18, 1
      %s26 = ssub.s32 %s18, %s25
      %p27 = scmp.eq.s32.totalorder %s26, 0
      %s29 = sadd.s32 %s28, 1
      %s30 = scalar_select %p27, %s28, %s29
      %p33 = pneg %p27
      %p34 = scmp.eq.s32.totalorder %s18, 1
      %p35 = por %p33, %p34
      %p36 = scmp.ne.s32.totalorder %s28, %s31
      %p37 = scmp.eq.s32.totalorder %s18, 0
      %p38 = por %p36, %p37
      %p39 = scmp.ne.s32.totalorder %s28, %s31
      %p40 = scmp.eq.s32.totalorder %s23, 1
      %p41 = por %p39, %p40
      %p42 = scmp.ne.s32.totalorder %s31, %s32
      %p43 = scmp.eq.s32.totalorder %s23, 0
      %p44 = por %p42, %p43
      %p45 = scmp.ne.s32.totalorder %s31, %s32
      %p46 = scmp.eq.s32.totalorder %s24, 1
      %p47 = por %p45, %p46
      %p49 = scmp.ne.s32.totalorder %s32, %s48
      %p50 = scmp.eq.s32.totalorder %s24, 0
      %p51 = por %p49, %p50
      %s53 = sadd.s32 %s52, 1
      %p56 = scmp.eq.s32.totalorder %s18, 1
      %p57 = scmp.ne.s32.totalorder %s52, %s54
      %p58 = scmp.eq.s32.totalorder %s18, 0
      %p59 = por %p57, %p58
      %p60 = scmp.ne.s32.totalorder %s52, %s54
      %p61 = scmp.eq.s32.totalorder %s23, 1
      %p62 = por %p60, %p61
      %p63 = scmp.ne.s32.totalorder %s54, %s55
      %p64 = scmp.eq.s32.totalorder %s23, 0
      %p65 = por %p63, %p64
      %p66 = scmp.ne.s32.totalorder %s54, %s55
      %p67 = scmp.eq.s32.totalorder %s24, 1
      %p68 = por %p66, %p67
      %p70 = scmp.ne.s32.totalorder %s55, %s69
      %p71 = scmp.eq.s32.totalorder %s24, 0
      %p72 = por %p70, %p71
      %s74 = sadd.s32 %s73, 1
      %p77 = scmp.eq.s32.totalorder %s18, 1
      %p78 = scmp.ne.s32.totalorder %s73, %s75
      %p79 = scmp.eq.s32.totalorder %s18, 0
      %p80 = por %p78, %p79
      %p81 = scmp.ne.s32.totalorder %s73, %s75
      %p82 = scmp.eq.s32.totalorder %s23, 1
      %p83 = por %p81, %p82
      %p84 = scmp.ne.s32.totalorder %s75, %s76
      %p85 = scmp.eq.s32.totalorder %s23, 0
      %p86 = por %p84, %p85
      %p87 = scmp.ne.s32.totalorder %s75, %s76
      %p88 = scmp.eq.s32.totalorder %s24, 1
      %p89 = por %p87, %p88
      %p91 = scmp.ne.s32.totalorder %s76, %s90
      %p92 = scmp.eq.s32.totalorder %s24, 0
      %p93 = por %p91, %p92
      %s95 = sadd.s32 %s94, 1
      %p98 = scmp.eq.s32.totalorder %s18, 1
      %p99 = scmp.ne.s32.totalorder %s94, %s96
      %p100 = scmp.eq.s32.totalorder %s18, 0
      %p101 = por %p99, %p100
      %p102 = scmp.ne.s32.totalorder %s94, %s96
      %p103 = scmp.eq.s32.totalorder %s23, 1
      %p104 = por %p102, %p103
      %p105 = scmp.ne.s32.totalorder %s96, %s97
      %p106 = scmp.eq.s32.totalorder %s23, 0
      %p107 = por %p105, %p106
      %p108 = scmp.ne.s32.totalorder %s96, %s97
      %p109 = scmp.eq.s32.totalorder %s24, 1
      %p110 = por %p108, %p109
      %p112 = scmp.ne.s32.totalorder %s97, %s111
      %p113 = scmp.eq.s32.totalorder %s24, 0
      %p114 = por %p112, %p113
      %s116 = sadd.s32 %s115, 1
      %p119 = scmp.eq.s32.totalorder %s18, 1
      %p120 = scmp.ne.s32.totalorder %s115, %s117
      %p121 = scmp.eq.s32.totalorder %s18, 0
      %p122 = por %p120, %p121
      %p123 = scmp.ne.s32.totalorder %s115, %s117
      %p124 = scmp.eq.s32.totalorder %s23, 1
      %p125 = por %p123, %p124
      %p126 = scmp.ne.s32.totalorder %s117, %s118
      %p127 = scmp.eq.s32.totalorder %s23, 0
      %p128 = por %p126, %p127
      %p129 = scmp.ne.s32.totalorder %s117, %s118
      %p130 = scmp.eq.s32.totalorder %s24, 1
      %p131 = por %p129, %p130
      %p133 = scmp.ne.s32.totalorder %s118, %s132
      %p134 = scmp.eq.s32.totalorder %s24, 0
      %p135 = por %p133, %p134
      %s137 = sadd.s32 %s136, 1
      %p140 = scmp.eq.s32.totalorder %s18, 1
      %p141 = scmp.ne.s32.totalorder %s136, %s138
      %p142 = scmp.eq.s32.totalorder %s18, 0
      %p143 = por %p141, %p142
      %p144 = scmp.ne.s32.totalorder %s136, %s138
      %p145 = scmp.eq.s32.totalorder %s23, 1
      %p146 = por %p144, %p145
      %p147 = scmp.ne.s32.totalorder %s138, %s139
      %p148 = scmp.eq.s32.totalorder %s23, 0
      %p149 = por %p147, %p148
      %p150 = scmp.ne.s32.totalorder %s138, %s139
      %p151 = scmp.eq.s32.totalorder %s24, 1
      %p152 = por %p150, %p151
      %p154 = scmp.ne.s32.totalorder %s139, %s153
      %p155 = scmp.eq.s32.totalorder %s24, 0
      %p156 = por %p154, %p155
      %s158 = sadd.s32 %s157, 1
      %p161 = scmp.eq.s32.totalorder %s18, 1
      %p162 = scmp.ne.s32.totalorder %s157, %s159
      %p163 = scmp.eq.s32.totalorder %s18, 0
      %p164 = por %p162, %p163
      %p165 = scmp.ne.s32.totalorder %s157, %s159
      %p166 = scmp.eq.s32.totalorder %s23, 1
      %p167 = por %p165, %p166
      %p168 = scmp.ne.s32.totalorder %s159, %s160
      %p169 = scmp.eq.s32.totalorder %s23, 0
      %p170 = por %p168, %p169
      %p171 = scmp.ne.s32.totalorder %s159, %s160
      %p172 = scmp.eq.s32.totalorder %s24, 1
      %p173 = por %p171, %p172
      %p175 = scmp.ne.s32.totalorder %s160, %s174
      %p176 = scmp.eq.s32.totalorder %s24, 0
      %p177 = por %p175, %p176
      %s179 = sadd.s32 %s178, 1
      %p182 = scmp.eq.s32.totalorder %s18, 1
      %p183 = scmp.ne.s32.totalorder %s178, %s180
      %p184 = scmp.eq.s32.totalorder %s18, 0
      %p185 = por %p183, %p184
      %p186 = scmp.ne.s32.totalorder %s178, %s180
      %p187 = scmp.eq.s32.totalorder %s23, 1
      %p188 = por %p186, %p187
      %p189 = scmp.ne.s32.totalorder %s180, %s181
      %p190 = scmp.eq.s32.totalorder %s23, 0
      %p191 = por %p189, %p190
      %p192 = scmp.ne.s32.totalorder %s180, %s181
      %p193 = scmp.eq.s32.totalorder %s24, 1
      %p194 = por %p192, %p193
      %p196 = scmp.ne.s32.totalorder %s181, %s195
      %p197 = scmp.eq.s32.totalorder %s24, 0
      %p198 = por %p196, %p197
      %s200 = sadd.s32 %s199, 1
      %p203 = scmp.eq.s32.totalorder %s18, 1
      %p204 = scmp.ne.s32.totalorder %s199, %s201
      %p205 = scmp.eq.s32.totalorder %s18, 0
      %p206 = por %p204, %p205
      %p207 = scmp.ne.s32.totalorder %s199, %s201
      %p208 = scmp.eq.s32.totalorder %s23, 1
      %p209 = por %p207, %p208
      %p210 = scmp.ne.s32.totalorder %s201, %s202
      %p211 = scmp.eq.s32.totalorder %s23, 0
      %p212 = por %p210, %p211
      %p213 = scmp.ne.s32.totalorder %s201, %s202
      %p214 = scmp.eq.s32.totalorder %s24, 1
      %p215 = por %p213, %p214
      %p217 = scmp.ne.s32.totalorder %s202, %s216
      %p218 = scmp.eq.s32.totalorder %s24, 0
      %p219 = por %p217, %p218
      %s221 = sadd.s32 %s220, 1
      %p224 = scmp.eq.s32.totalorder %s18, 1
      %p225 = scmp.ne.s32.totalorder %s220, %s222
      %p226 = scmp.eq.s32.totalorder %s18, 0
      %p227 = por %p225, %p226
      %p228 = scmp.ne.s32.totalorder %s220, %s222
      %p229 = scmp.eq.s32.totalorder %s23, 1
      %p230 = por %p228, %p229
      %p231 = scmp.ne.s32.totalorder %s222, %s223
      %p232 = scmp.eq.s32.totalorder %s23, 0
      %p233 = por %p231, %p232
      %p234 = scmp.ne.s32.totalorder %s222, %s223
      %p235 = scmp.eq.s32.totalorder %s24, 1
      %p236 = por %p234, %p235
      %p238 = scmp.ne.s32.totalorder %s223, %s237
      %p239 = scmp.eq.s32.totalorder %s24, 0
      %p240 = por %p238, %p239
      %s242 = sadd.s32 %s241, 1
      %p245 = scmp.eq.s32.totalorder %s18, 1
      %p246 = scmp.ne.s32.totalorder %s241, %s243
      %p247 = scmp.eq.s32.totalorder %s18, 0
      %p248 = por %p246, %p247
      %p249 = scmp.ne.s32.totalorder %s241, %s243
      %p250 = scmp.eq.s32.totalorder %s23, 1
      %p251 = por %p249, %p250
      %p252 = scmp.ne.s32.totalorder %s243, %s244
      %p253 = scmp.eq.s32.totalorder %s23, 0
      %p254 = por %p252, %p253
      %p255 = scmp.ne.s32.totalorder %s243, %s244
      %p256 = scmp.eq.s32.totalorder %s24, 1
      %p257 = por %p255, %p256
      %p259 = scmp.ne.s32.totalorder %s244, %s258
      %p260 = scmp.eq.s32.totalorder %s24, 0
      %p261 = por %p259, %p260
      %s262 = ssub.s32 %s18, %s25
      %p263 = scmp.eq.s32.totalorder %s262, 0
      %s265 = sadd.s32 %s264, 1
      %s266 = scalar_select %p263, %s264, %s265
      %p269 = pneg %p263
      %p270 = scmp.eq.s32.totalorder %s18, 1
      %p271 = por %p269, %p270
      %p272 = scmp.ne.s32.totalorder %s264, %s267
      %p273 = scmp.eq.s32.totalorder %s18, 0
      %p274 = por %p272, %p273
      %p275 = scmp.ne.s32.totalorder %s264, %s267
      %p276 = scmp.eq.s32.totalorder %s23, 1
      %p277 = por %p275, %p276
      %p278 = scmp.ne.s32.totalorder %s267, %s268
      %p279 = scmp.eq.s32.totalorder %s23, 0
      %p280 = por %p278, %p279
      %p281 = scmp.ne.s32.totalorder %s267, %s268
      %p282 = scmp.eq.s32.totalorder %s24, 1
      %p283 = por %p281, %p282
      %p285 = scmp.ne.s32.totalorder %s268, %s284
      %p286 = scmp.eq.s32.totalorder %s24, 0
      %p287 = por %p285, %p286
      %p288 = scmp.le.s32.totalorder 1, %s18
      %p289 = scmp.lt.s32.totalorder %s18, 3
      %p290 = pnand %p288, %p289
      %p291 = pneg %p290
      // Predicated region
      $region9: #{fc_net_forward.1} parent=5 // pred_check
        _
      $region10: #{fc_net_forward.1} parent=5 // pred_check_branch
        %293 = sbr.rel (%p290) target = $region12
      $region11: #{fc_net_forward.1} parent=5 // pred_region
        %s294 = ssub.s32 %s18, 1
        // Predicated region
        $region13: #{fc_net_forward.1} parent=11 // pred_check
          %p295 = pneg %p65
        $region14: #{fc_net_forward.1} parent=11 // pred_check_branch
          %297 = sbr.rel (%p295) target = $region16
        $region15: #{fc_net_forward.1} parent=11 // pred_region
          _
        $region16: #{fc_net_forward.1} parent=11 // pred_fallthru
          _
        // Predicated region
        $region17: #{fc_net_forward.1} parent=11 // pred_check
          %p298 = pneg %p86
        $region18: #{fc_net_forward.1} parent=11 // pred_check_branch
          %300 = sbr.rel (%p298) target = $region20
        $region19: #{fc_net_forward.1} parent=11 // pred_region
          _
        $region20: #{fc_net_forward.1} parent=11 // pred_fallthru
          _
        // Predicated region
        $region21: #{fc_net_forward.1} parent=11 // pred_check
          %p301 = pneg %p107
        $region22: #{fc_net_forward.1} parent=11 // pred_check_branch
          %303 = sbr.rel (%p301) target = $region24
        $region23: #{fc_net_forward.1} parent=11 // pred_region
          _
        $region24: #{fc_net_forward.1} parent=11 // pred_fallthru
          _
        // Predicated region
        $region25: #{fc_net_forward.1} parent=11 // pred_check
          %p304 = pneg %p128
        $region26: #{fc_net_forward.1} parent=11 // pred_check_branch
          %306 = sbr.rel (%p304) target = $region28
        $region27: #{fc_net_forward.1} parent=11 // pred_region
          _
        $region28: #{fc_net_forward.1} parent=11 // pred_fallthru
          _
        // Predicated region
        $region29: #{fc_net_forward.1} parent=11 // pred_check
          %p307 = pneg %p149
        $region30: #{fc_net_forward.1} parent=11 // pred_check_branch
          %309 = sbr.rel (%p307) target = $region32
        $region31: #{fc_net_forward.1} parent=11 // pred_region
          _
        $region32: #{fc_net_forward.1} parent=11 // pred_fallthru
          _
        // Predicated region
        $region33: #{fc_net_forward.1} parent=11 // pred_check
          %p310 = pneg %p170
        $region34: #{fc_net_forward.1} parent=11 // pred_check_branch
          %312 = sbr.rel (%p310) target = $region36
        $region35: #{fc_net_forward.1} parent=11 // pred_region
          _
        $region36: #{fc_net_forward.1} parent=11 // pred_fallthru
          _
        // Predicated region
        $region37: #{fc_net_forward.1} parent=11 // pred_check
          %p313 = pneg %p191
        $region38: #{fc_net_forward.1} parent=11 // pred_check_branch
          %315 = sbr.rel (%p313) target = $region40
        $region39: #{fc_net_forward.1} parent=11 // pred_region
          %s317 = ssub.s32 16384, 16384
          %318 = vsyncadd [#allocation4], %s317
          %s319 = sshll.u32 [#allocation3], 4
          %s320 = int_to_ptr.vmem [resolvable:$true] %s319
          %325 = dma.hbm_to_vmem [thread:$0]  %s7, 16384, %s320, [#allocation4], 64, 64, 4
        $region40: #{fc_net_forward.1} parent=11 // pred_fallthru
          _
        // Predicated region
        $region41: #{fc_net_forward.1} parent=11 // pred_check
          %p326 = pneg %p212
        $region42: #{fc_net_forward.1} parent=11 // pred_check_branch
          %328 = sbr.rel (%p326) target = $region44
        $region43: #{fc_net_forward.1} parent=11 // pred_region
          _
        $region44: #{fc_net_forward.1} parent=11 // pred_fallthru
          _
        // Predicated region
        $region45: #{fc_net_forward.1} parent=11 // pred_check
          %p329 = pneg %p233
        $region46: #{fc_net_forward.1} parent=11 // pred_check_branch
          %331 = sbr.rel (%p329) target = $region48
        $region47: #{fc_net_forward.1} parent=11 // pred_region
          _
        $region48: #{fc_net_forward.1} parent=11 // pred_fallthru
          _
        // Predicated region
        $region49: #{fc_net_forward.1} parent=11 // pred_check
          %p332 = pneg %p254
        $region50: #{fc_net_forward.1} parent=11 // pred_check_branch
          %334 = sbr.rel (%p332) target = $region52
        $region51: #{fc_net_forward.1} parent=11 // pred_region
          _
        $region52: #{fc_net_forward.1} parent=11 // pred_fallthru
          _
      $region12: #{fc_net_forward.1} parent=5 // pred_fallthru
        _
      %p335 = scmp.lt.s32.totalorder %s18, 2
      // Predicated region
      $region53: #{fc_net_forward.1} parent=5 // pred_check
        %p336 = pneg %p335
      $region54: #{fc_net_forward.1} parent=5 // pred_check_branch
        %338 = sbr.rel (%p336) target = $region56
      $region55: #{fc_net_forward.1} parent=5 // pred_region
        // Predicated region
        $region57: #{fc_net_forward.1} parent=55 // pred_check
          %p339 = pneg %p38
        $region58: #{fc_net_forward.1} parent=55 // pred_check_branch
          %341 = sbr.rel (%p339) target = $region60
        $region59: #{fc_net_forward.1} parent=55 // pred_region
          %s342 = smul.u32 16, %s18
          %p343 = scmp.lt.s32.totalorder %s342, 31
          %s344 = scalar_select %p343, %s342, 31
          %s345 = smul.addr %s344, 8
          %s346 = scalar_lea.vmem %s0, %s345
          %s347 = smul.u32 16, %s18
        $region60: #{fc_net_forward.1} parent=55 // pred_fallthru
          _
      $region56: #{fc_net_forward.1} parent=5 // pred_fallthru
        _
      %p348 = scmp.le.s32.totalorder 1, %s18
      %p349 = scmp.lt.s32.totalorder %s18, 3
      %p350 = pnand %p348, %p349
      %p351 = pneg %p350
      // Predicated region
      $region61: #{fc_net_forward.1} parent=5 // pred_check
        _
      $region62: #{fc_net_forward.1} parent=5 // pred_check_branch
        %353 = sbr.rel (%p350) target = $region64
      $region63: #{fc_net_forward.1} parent=5 // pred_region
        %s354 = ssub.s32 %s18, 1
        // Predicated region
        $region65: #{fc_net_forward.1} parent=63 // pred_check
          %p355 = pneg %p191
        $region66: #{fc_net_forward.1} parent=63 // pred_check_branch
          %357 = sbr.rel (%p355) target = $region68
        $region67: #{fc_net_forward.1} parent=63 // pred_region
          %358 = dma.done [#allocation4], 16384
        $region68: #{fc_net_forward.1} parent=63 // pred_fallthru
          _
        %s359 = smul.u32 16, %s23
        %p360 = scmp.lt.s32.totalorder %s359, 31
        %s361 = scalar_select %p360, %s359, 31
        %s362 = smul.addr %s361, 8
        %s363 = scalar_lea.vmem %s0, %s362
        %p364 = pneg %p44
        %p365 = pneg %p41
        %p366 = pneg %p65
        %p367 = pneg %p62
        %p368 = pneg %p86
        %p369 = pneg %p83
        %p370 = pneg %p107
        %p371 = pneg %p104
        %p372 = pneg %p128
        %p373 = pneg %p125
        %p374 = pneg %p149
        %p375 = pneg %p146
        %p376 = pneg %p170
        %p377 = pneg %p167
        %p378 = pneg %p191
        %p379 = pneg %p188
        %p380 = pneg %p212
        %p381 = pneg %p209
        %p382 = pneg %p233
        %p383 = pneg %p230
        %p384 = pneg %p254
        %p385 = pneg %p251
        %p386 = pneg %p280
        %p387 = pneg %p277
        %s388 = smul.u32 16, %s23
        %p389 = scmp.lt.s32.totalorder %s388, 31
        %s390 = scalar_select %p389, %s388, 31
        %s391 = smul.addr %s390, 8
        %s392 = scalar_lea.vmem %s11, %s391
        %s393 = smul.u32 16, %s23
        %p394 = scmp.lt.s32.totalorder %s393, 31
        %s395 = scalar_select %p394, %s393, 31
        %s396 = smul.addr %s395, 8
        %s397 = scalar_lea.vmem %s0, %s396
        %s398 = smul.u32 16, %s23
        %s399 = smul.u32 16, %s23
        %p400 = scmp.lt.s32.totalorder %s399, 31
        %s401 = scalar_select %p400, %s399, 31
        %s402 = smul.addr %s401, 8
        %s403 = scalar_lea.vmem %s11, %s402
        %s404 = smul.u32 16, %s23
        %v406 = vld [vmem:[%s397] sm:$0xff]
        %v407 = vld [vmem:[%s397 + $0x8] sm:$0xff]
        %v408 = vld [vmem:[%s397 + $0x10] sm:$0xff]
        %v409 = vld [vmem:[%s397 + $0x18] sm:$0xff]
        %v410 = vld [vmem:[%s397 + $0x20] sm:$0xff]
        %v411 = vld [vmem:[%s397 + $0x28] sm:$0xff]
        %v412 = vld [vmem:[%s397 + $0x30] sm:$0xff]
        %v413 = vld [vmem:[%s397 + $0x38] sm:$0xff]
        %v414 = vld [vmem:[%s397 + $0x40] sm:$0xff]
        %v415 = vld [vmem:[%s397 + $0x48] sm:$0xff]
        %v416 = vld [vmem:[%s397 + $0x50] sm:$0xff]
        %v417 = vld [vmem:[%s397 + $0x58] sm:$0xff]
        %v418 = vld [vmem:[%s397 + $0x60] sm:$0xff]
        %v419 = vld [vmem:[%s397 + $0x68] sm:$0xff]
        %v420 = vld [vmem:[%s397 + $0x70] sm:$0xff]
        %v421 = vld [vmem:[%s397 + $0x78] sm:$0xff]
        %v422 = vpack.c.bf16 %v407, %v406
        %v423 = vpack.c.bf16 %v409, %v408
        %v424 = vpack.c.bf16 %v411, %v410
        %v425 = vpack.c.bf16 %v413, %v412
        %v426 = vpack.c.bf16 %v415, %v414
        %v427 = vpack.c.bf16 %v417, %v416
        %v428 = vpack.c.bf16 %v419, %v418
        %v429 = vpack.c.bf16 %v421, %v420
        %v430 = vld [vmem:[%s1] sm:$0xf]
        %v431 = vld [vmem:[%s1 + $0x4] sm:$0xf]
        %v432 = vld [vmem:[%s1 + $0x8] sm:$0xf]
        %v433 = vld [vmem:[%s1 + $0xc] sm:$0xf]
        %v434 = vld [vmem:[%s1 + $0x10] sm:$0xf]
        %v435 = vld [vmem:[%s1 + $0x14] sm:$0xf]
        %v436 = vld [vmem:[%s1 + $0x18] sm:$0xf]
        %v437 = vld [vmem:[%s1 + $0x1c] sm:$0xf]
        %v438 = vld [vmem:[%s1 + $0x20] sm:$0xf]
        %v439 = vld [vmem:[%s1 + $0x24] sm:$0xf]
        %v440 = vld [vmem:[%s1 + $0x28] sm:$0xf]
        %v441 = vld [vmem:[%s1 + $0x2c] sm:$0xf]
        %v442 = vld [vmem:[%s1 + $0x30] sm:$0xf]
        %v443 = vld [vmem:[%s1 + $0x34] sm:$0xf]
        %v444 = vld [vmem:[%s1 + $0x38] sm:$0xf]
        %v445 = vld [vmem:[%s1 + $0x3c] sm:$0xf]
        %v446 = vld [vmem:[%s2] sm:$0x1]
        %v448 = vlaneseq
        %v449 = vshrl.u32 %v448, 7
        %v450 = vsub.s32 0, %v449
        %v451 = vrot.slane %v446, %v450
        %v469 = vunpack.c.l.b16 %v430
        %v470 = vunpack.c.l.b16 %v431
        %v471 = vunpack.c.l.b16 %v432
        %v472 = vunpack.c.l.b16 %v433
        %v473 = vunpack.c.l.b16 %v434
        %v474 = vunpack.c.l.b16 %v435
        %v475 = vunpack.c.l.b16 %v436
        %v476 = vunpack.c.l.b16 %v437
        %v477 = vunpack.c.l.b16 %v438
        %v478 = vunpack.c.l.b16 %v439
        %v479 = vunpack.c.l.b16 %v440
        %v480 = vunpack.c.l.b16 %v441
        %v481 = vunpack.c.l.b16 %v442
        %v482 = vunpack.c.l.b16 %v443
        %v483 = vunpack.c.l.b16 %v444
        %v484 = vunpack.c.l.b16 %v445
        %v485 = vpack.c.b16 %v470, %v469
        %v486 = vpack.c.b16 %v472, %v471
        %v487 = vpack.c.b16 %v474, %v473
        %v488 = vpack.c.b16 %v476, %v475
        %v489 = vpack.c.b16 %v478, %v477
        %v490 = vpack.c.b16 %v480, %v479
        %v491 = vpack.c.b16 %v482, %v481
        %v492 = vpack.c.b16 %v484, %v483
        %501 = vmatprep.subr.bf16.mxu0 0
        %502 = vmatpush1.bf16.msra.mxu0 %v492
        %503 = vmatprep.subr.bf16.mxu0 0
        %504 = vmatpush1.bf16.msra.mxu0 %v491
        %505 = vmatprep.subr.bf16.mxu0 0
        %506 = vmatpush1.bf16.msra.mxu0 %v490
        %507 = vmatprep.subr.bf16.mxu0 0
        %508 = vmatpush1.bf16.msra.mxu0 %v489
        %509 = vmatprep.subr.bf16.mxu0 0
        %510 = vmatpush1.bf16.msra.mxu0 %v488
        %511 = vmatprep.subr.bf16.mxu0 0
        %512 = vmatpush1.bf16.msra.mxu0 %v487
        %513 = vmatprep.subr.bf16.mxu0 0
        %514 = vmatpush1.bf16.msra.mxu0 %v486
        %515 = vmatprep.subr.bf16.mxu0 0
        %516 = vmatpush1.bf16.msra.mxu0 %v485
        %517 = vmatprep.subr.bf16.mxu0 0
        %518 = vmatpush2.bf16.msra.mxu0 0
        %519 = vmatprep.subr.bf16.mxu0 0
        %520 = vmatpush2.bf16.msra.mxu0 0
        %521 = vmatprep.subr.bf16.mxu0 0
        %522 = vmatpush2.bf16.msra.mxu0 0
        %523 = vmatprep.subr.bf16.mxu0 0
        %524 = vmatpush2.bf16.msra.mxu0 0
        %525 = vmatprep.subr.bf16.mxu0 0
        %526 = vmatpush2.bf16.msra.mxu0 0
        %527 = vmatprep.subr.bf16.mxu0 0
        %528 = vmatpush2.bf16.msra.mxu0 0
        %529 = vmatprep.subr.bf16.mxu0 0
        %530 = vmatpush2.bf16.msra.mxu0 0
        %531 = vmatprep.subr.bf16.mxu0 0
        %532 = vmatpush2.bf16.msra.mxu0 0
        %533 = vmatprep.mubr.bf16.mxu0 0
        %534 = vmatmul.mubr.bf16.gmra.mxu0 %v422
        %v535 = vpop.f32.mrf.mxu0
        %v536 = vadd.f32 %v451, %v535
        %v537 = vpop.f32.mrf.mxu0
        %v538 = vpop.f32.mrf.mxu0
        %v539 = vadd.f32 %v451, %v538
        %v540 = vpop.f32.mrf.mxu0
        %541 = vmatprep.mubr.bf16.mxu0 0
        %542 = vmatmul.mubr.bf16.gmra.mxu0 %v423
        %v543 = vpop.f32.mrf.mxu0
        %v544 = vadd.f32 %v451, %v543
        %v545 = vpop.f32.mrf.mxu0
        %v546 = vpop.f32.mrf.mxu0
        %v547 = vadd.f32 %v451, %v546
        %v548 = vpop.f32.mrf.mxu0
        %549 = vmatprep.mubr.bf16.mxu0 0
        %550 = vmatmul.mubr.bf16.gmra.mxu0 %v424
        %v551 = vpop.f32.mrf.mxu0
        %v552 = vadd.f32 %v451, %v551
        %v553 = vpop.f32.mrf.mxu0
        %v554 = vpop.f32.mrf.mxu0
        %v555 = vadd.f32 %v451, %v554
        %v556 = vpop.f32.mrf.mxu0
        %557 = vmatprep.mubr.bf16.mxu0 0
        %558 = vmatmul.mubr.bf16.gmra.mxu0 %v425
        %v559 = vpop.f32.mrf.mxu0
        %v560 = vadd.f32 %v451, %v559
        %v561 = vpop.f32.mrf.mxu0
        %v562 = vpop.f32.mrf.mxu0
        %v563 = vadd.f32 %v451, %v562
        %v564 = vpop.f32.mrf.mxu0
        %565 = vmatprep.mubr.bf16.mxu0 0
        %566 = vmatmul.mubr.bf16.gmra.mxu0 %v426
        %v567 = vpop.f32.mrf.mxu0
        %v568 = vadd.f32 %v451, %v567
        %v569 = vpop.f32.mrf.mxu0
        %v570 = vpop.f32.mrf.mxu0
        %v571 = vadd.f32 %v451, %v570
        %v572 = vpop.f32.mrf.mxu0
        %573 = vmatprep.mubr.bf16.mxu0 0
        %574 = vmatmul.mubr.bf16.gmra.mxu0 %v427
        %v575 = vpop.f32.mrf.mxu0
        %v576 = vadd.f32 %v451, %v575
        %v577 = vpop.f32.mrf.mxu0
        %v578 = vpop.f32.mrf.mxu0
        %v579 = vadd.f32 %v451, %v578
        %v580 = vpop.f32.mrf.mxu0
        %581 = vmatprep.mubr.bf16.mxu0 0
        %582 = vmatmul.mubr.bf16.gmra.mxu0 %v428
        %v583 = vpop.f32.mrf.mxu0
        %v584 = vadd.f32 %v451, %v583
        %v585 = vpop.f32.mrf.mxu0
        %v586 = vpop.f32.mrf.mxu0
        %v587 = vadd.f32 %v451, %v586
        %v588 = vpop.f32.mrf.mxu0
        %589 = vmatprep.mubr.bf16.mxu0 0
        %590 = vmatmul.mubr.bf16.gmra.mxu0 %v429
        %v591 = vpop.f32.mrf.mxu0
        %v592 = vadd.f32 %v451, %v591
        %v593 = vpop.f32.mrf.mxu0
        %v594 = vpop.f32.mrf.mxu0
        %v595 = vadd.f32 %v451, %v594
        %v596 = vpop.f32.mrf.mxu0
        %597 = vdwg.mxu0
        %598 = vst [vmem:[#allocation2] sm:$0xff] %v536
        %599 = vst [vmem:[#allocation2 + $0x8] sm:$0xff] %v539
        %600 = vst [vmem:[#allocation2 + $0x10] sm:$0xff] %v544
        %601 = vst [vmem:[#allocation2 + $0x18] sm:$0xff] %v547
        %602 = vst [vmem:[#allocation2 + $0x20] sm:$0xff] %v552
        %603 = vst [vmem:[#allocation2 + $0x28] sm:$0xff] %v555
        %604 = vst [vmem:[#allocation2 + $0x30] sm:$0xff] %v560
        %605 = vst [vmem:[#allocation2 + $0x38] sm:$0xff] %v563
        %606 = vst [vmem:[#allocation2 + $0x40] sm:$0xff] %v568
        %607 = vst [vmem:[#allocation2 + $0x48] sm:$0xff] %v571
        %608 = vst [vmem:[#allocation2 + $0x50] sm:$0xff] %v576
        %609 = vst [vmem:[#allocation2 + $0x58] sm:$0xff] %v579
        %610 = vst [vmem:[#allocation2 + $0x60] sm:$0xff] %v584
        %611 = vst [vmem:[#allocation2 + $0x68] sm:$0xff] %v587
        %612 = vst [vmem:[#allocation2 + $0x70] sm:$0xff] %v592
        %613 = vst [vmem:[#allocation2 + $0x78] sm:$0xff] %v595
        %v614 = vld [vmem:[#allocation2] sm:$0xff]
        %v615 = vld [vmem:[#allocation2 + $0x8] sm:$0xff]
        %v616 = vld [vmem:[#allocation2 + $0x10] sm:$0xff]
        %v617 = vld [vmem:[#allocation2 + $0x18] sm:$0xff]
        %v618 = vld [vmem:[#allocation2 + $0x20] sm:$0xff]
        %v619 = vld [vmem:[#allocation2 + $0x28] sm:$0xff]
        %v620 = vld [vmem:[#allocation2 + $0x30] sm:$0xff]
        %v621 = vld [vmem:[#allocation2 + $0x38] sm:$0xff]
        %v622 = vld [vmem:[#allocation2 + $0x40] sm:$0xff]
        %v623 = vld [vmem:[#allocation2 + $0x48] sm:$0xff]
        %v624 = vld [vmem:[#allocation2 + $0x50] sm:$0xff]
        %v625 = vld [vmem:[#allocation2 + $0x58] sm:$0xff]
        %v626 = vld [vmem:[#allocation2 + $0x60] sm:$0xff]
        %v627 = vld [vmem:[#allocation2 + $0x68] sm:$0xff]
        %v628 = vld [vmem:[#allocation2 + $0x70] sm:$0xff]
        %v629 = vld [vmem:[#allocation2 + $0x78] sm:$0xff]
        %630 = vadd.xlane.f32.xlu0 %v614
        %v631 = vpop.xlane.xlu0 %630
        %632 = vadd.xlane.f32.xlu0 %v615
        %v633 = vpop.xlane.xlu0 %632
        %634 = vadd.xlane.f32.xlu0 %v616
        %v635 = vpop.xlane.xlu0 %634
        %636 = vadd.xlane.f32.xlu0 %v617
        %v637 = vpop.xlane.xlu0 %636
        %638 = vadd.xlane.f32.xlu0 %v618
        %v639 = vpop.xlane.xlu0 %638
        %640 = vadd.xlane.f32.xlu0 %v619
        %v641 = vpop.xlane.xlu0 %640
        %642 = vadd.xlane.f32.xlu0 %v620
        %v643 = vpop.xlane.xlu0 %642
        %644 = vadd.xlane.f32.xlu0 %v621
        %v645 = vpop.xlane.xlu0 %644
        %646 = vadd.xlane.f32.xlu0 %v622
        %v647 = vpop.xlane.xlu0 %646
        %648 = vadd.xlane.f32.xlu0 %v623
        %v649 = vpop.xlane.xlu0 %648
        %650 = vadd.xlane.f32.xlu0 %v624
        %v651 = vpop.xlane.xlu0 %650
        %652 = vadd.xlane.f32.xlu0 %v625
        %v653 = vpop.xlane.xlu0 %652
        %654 = vadd.xlane.f32.xlu0 %v626
        %v655 = vpop.xlane.xlu0 %654
        %656 = vadd.xlane.f32.xlu0 %v627
        %v657 = vpop.xlane.xlu0 %656
        %658 = vadd.xlane.f32.xlu0 %v628
        %v659 = vpop.xlane.xlu0 %658
        %660 = vadd.xlane.f32.xlu0 %v629
        %v661 = vpop.xlane.xlu0 %660
        %v662 = vrcp.pop 128.0
        %v663 = vmul.f32 %v631, %v662
        %v664 = vmul.f32 %v633, %v662
        %v665 = vmul.f32 %v635, %v662
        %v666 = vmul.f32 %v637, %v662
        %v667 = vmul.f32 %v639, %v662
        %v668 = vmul.f32 %v641, %v662
        %v669 = vmul.f32 %v643, %v662
        %v670 = vmul.f32 %v645, %v662
        %v671 = vmul.f32 %v647, %v662
        %v672 = vmul.f32 %v649, %v662
        %v673 = vmul.f32 %v651, %v662
        %v674 = vmul.f32 %v653, %v662
        %v675 = vmul.f32 %v655, %v662
        %v676 = vmul.f32 %v657, %v662
        %v677 = vmul.f32 %v659, %v662
        %v678 = vmul.f32 %v661, %v662
        %v679 = vsub.f32 %v614, %v663
        %v680 = vsub.f32 %v615, %v664
        %v681 = vsub.f32 %v616, %v665
        %v682 = vsub.f32 %v617, %v666
        %v683 = vsub.f32 %v618, %v667
        %v684 = vsub.f32 %v619, %v668
        %v685 = vsub.f32 %v620, %v669
        %v686 = vsub.f32 %v621, %v670
        %v687 = vsub.f32 %v622, %v671
        %v688 = vsub.f32 %v623, %v672
        %v689 = vsub.f32 %v624, %v673
        %v690 = vsub.f32 %v625, %v674
        %v691 = vsub.f32 %v626, %v675
        %v692 = vsub.f32 %v627, %v676
        %v693 = vsub.f32 %v628, %v677
        %v694 = vsub.f32 %v629, %v678
        %v695 = vmul.f32 %v679, %v679
        %v696 = vmul.f32 %v680, %v680
        %v697 = vmul.f32 %v681, %v681
        %v698 = vmul.f32 %v682, %v682
        %v699 = vmul.f32 %v683, %v683
        %v700 = vmul.f32 %v684, %v684
        %v701 = vmul.f32 %v685, %v685
        %v702 = vmul.f32 %v686, %v686
        %v703 = vmul.f32 %v687, %v687
        %v704 = vmul.f32 %v688, %v688
        %v705 = vmul.f32 %v689, %v689
        %v706 = vmul.f32 %v690, %v690
        %v707 = vmul.f32 %v691, %v691
        %v708 = vmul.f32 %v692, %v692
        %v709 = vmul.f32 %v693, %v693
        %v710 = vmul.f32 %v694, %v694
        %711 = vadd.xlane.f32.xlu0 %v695
        %v712 = vpop.xlane.xlu0 %711
        %713 = vadd.xlane.f32.xlu0 %v696
        %v714 = vpop.xlane.xlu0 %713
        %715 = vadd.xlane.f32.xlu0 %v697
        %v716 = vpop.xlane.xlu0 %715
        %717 = vadd.xlane.f32.xlu0 %v698
        %v718 = vpop.xlane.xlu0 %717
        %719 = vadd.xlane.f32.xlu0 %v699
        %v720 = vpop.xlane.xlu0 %719
        %721 = vadd.xlane.f32.xlu0 %v700
        %v722 = vpop.xlane.xlu0 %721
        %723 = vadd.xlane.f32.xlu0 %v701
        %v724 = vpop.xlane.xlu0 %723
        %725 = vadd.xlane.f32.xlu0 %v702
        %v726 = vpop.xlane.xlu0 %725
        %727 = vadd.xlane.f32.xlu0 %v703
        %v728 = vpop.xlane.xlu0 %727
        %729 = vadd.xlane.f32.xlu0 %v704
        %v730 = vpop.xlane.xlu0 %729
        %731 = vadd.xlane.f32.xlu0 %v705
        %v732 = vpop.xlane.xlu0 %731
        %733 = vadd.xlane.f32.xlu0 %v706
        %v734 = vpop.xlane.xlu0 %733
        %735 = vadd.xlane.f32.xlu0 %v707
        %v736 = vpop.xlane.xlu0 %735
        %737 = vadd.xlane.f32.xlu0 %v708
        %v738 = vpop.xlane.xlu0 %737
        %739 = vadd.xlane.f32.xlu0 %v709
        %v740 = vpop.xlane.xlu0 %739
        %741 = vadd.xlane.f32.xlu0 %v710
        %v742 = vpop.xlane.xlu0 %741
        %v743 = vmul.f32 %v712, %v662
        %v744 = vmul.f32 %v714, %v662
        %v745 = vmul.f32 %v716, %v662
        %v746 = vmul.f32 %v718, %v662
        %v747 = vmul.f32 %v720, %v662
        %v748 = vmul.f32 %v722, %v662
        %v749 = vmul.f32 %v724, %v662
        %v750 = vmul.f32 %v726, %v662
        %v751 = vmul.f32 %v728, %v662
        %v752 = vmul.f32 %v730, %v662
        %v753 = vmul.f32 %v732, %v662
        %v754 = vmul.f32 %v734, %v662
        %v755 = vmul.f32 %v736, %v662
        %v756 = vmul.f32 %v738, %v662
        %v757 = vmul.f32 %v740, %v662
        %v758 = vmul.f32 %v742, %v662
        %v759 = vadd.f32 %v743, 1e-05
        %v760 = vadd.f32 %v744, 1e-05
        %v761 = vadd.f32 %v745, 1e-05
        %v762 = vadd.f32 %v746, 1e-05
        %v763 = vadd.f32 %v747, 1e-05
        %v764 = vadd.f32 %v748, 1e-05
        %v765 = vadd.f32 %v749, 1e-05
        %v766 = vadd.f32 %v750, 1e-05
        %v767 = vadd.f32 %v751, 1e-05
        %v768 = vadd.f32 %v752, 1e-05
        %v769 = vadd.f32 %v753, 1e-05
        %v770 = vadd.f32 %v754, 1e-05
        %v771 = vadd.f32 %v755, 1e-05
        %v772 = vadd.f32 %v756, 1e-05
        %v773 = vadd.f32 %v757, 1e-05
        %v774 = vadd.f32 %v758, 1e-05
        %v775 = vrsqrt.pop %v759
        %v776 = vrsqrt.pop %v760
        %v777 = vrsqrt.pop %v761
        %v778 = vrsqrt.pop %v762
        %v779 = vrsqrt.pop %v763
        %v780 = vrsqrt.pop %v764
        %v781 = vrsqrt.pop %v765
        %v782 = vrsqrt.pop %v766
        %v783 = vrsqrt.pop %v767
        %v784 = vrsqrt.pop %v768
        %v785 = vrsqrt.pop %v769
        %v786 = vrsqrt.pop %v770
        %v787 = vrsqrt.pop %v771
        %v788 = vrsqrt.pop %v772
        %v789 = vrsqrt.pop %v773
        %v790 = vrsqrt.pop %v774
        %v791 = vmul.f32 %v679, %v775
        %v792 = vmul.f32 %v680, %v776
        %v793 = vmul.f32 %v681, %v777
        %v794 = vmul.f32 %v682, %v778
        %v795 = vmul.f32 %v683, %v779
        %v796 = vmul.f32 %v684, %v780
        %v797 = vmul.f32 %v685, %v781
        %v798 = vmul.f32 %v686, %v782
        %v799 = vmul.f32 %v687, %v783
        %v800 = vmul.f32 %v688, %v784
        %v801 = vmul.f32 %v689, %v785
        %v802 = vmul.f32 %v690, %v786
        %v803 = vmul.f32 %v691, %v787
        %v804 = vmul.f32 %v692, %v788
        %v805 = vmul.f32 %v693, %v789
        %v806 = vmul.f32 %v694, %v790
        %v807 = vld [vmem:[%s3] sm:$0x1]
        %v809 = vlaneseq
        %v810 = vshrl.u32 %v809, 7
        %v811 = vsub.s32 0, %v810
        %v812 = vrot.slane %v807, %v811
        %v814 = vmul.f32 %v791, %v812
        %v815 = vmul.f32 %v792, %v812
        %v816 = vmul.f32 %v793, %v812
        %v817 = vmul.f32 %v794, %v812
        %v818 = vmul.f32 %v795, %v812
        %v819 = vmul.f32 %v796, %v812
        %v820 = vmul.f32 %v797, %v812
        %v821 = vmul.f32 %v798, %v812
        %v822 = vmul.f32 %v799, %v812
        %v823 = vmul.f32 %v800, %v812
        %v824 = vmul.f32 %v801, %v812
        %v825 = vmul.f32 %v802, %v812
        %v826 = vmul.f32 %v803, %v812
        %v827 = vmul.f32 %v804, %v812
        %v828 = vmul.f32 %v805, %v812
        %v829 = vmul.f32 %v806, %v812
        %v830 = vld [vmem:[%s4] sm:$0x1]
        %v832 = vlaneseq
        %v833 = vshrl.u32 %v832, 7
        %v834 = vsub.s32 0, %v833
        %v835 = vrot.slane %v830, %v834
        %v837 = vadd.f32 %v814, %v835
        %v838 = vadd.f32 %v815, %v835
        %v839 = vadd.f32 %v816, %v835
        %v840 = vadd.f32 %v817, %v835
        %v841 = vadd.f32 %v818, %v835
        %v842 = vadd.f32 %v819, %v835
        %v843 = vadd.f32 %v820, %v835
        %v844 = vadd.f32 %v821, %v835
        %v845 = vadd.f32 %v822, %v835
        %v846 = vadd.f32 %v823, %v835
        %v847 = vadd.f32 %v824, %v835
        %v848 = vadd.f32 %v825, %v835
        %v849 = vadd.f32 %v826, %v835
        %v850 = vadd.f32 %v827, %v835
        %v851 = vadd.f32 %v828, %v835
        %v852 = vadd.f32 %v829, %v835
        %v853 = vpack.c.bf16 %v838, %v837
        %v854 = vpack.c.bf16 %v840, %v839
        %v855 = vpack.c.bf16 %v842, %v841
        %v856 = vpack.c.bf16 %v844, %v843
        %v857 = vpack.c.bf16 %v846, %v845
        %v858 = vpack.c.bf16 %v848, %v847
        %v859 = vpack.c.bf16 %v850, %v849
        %v860 = vpack.c.bf16 %v852, %v851
        %v861 = vld [vmem:[%s5] sm:$0xff]
        %v862 = vld [vmem:[%s5 + $0x10] sm:$0xff]
        %v863 = vld [vmem:[%s5 + $0x20] sm:$0xff]
        %v864 = vld [vmem:[%s5 + $0x30] sm:$0xff]
        %v865 = vld [vmem:[%s5 + $0x40] sm:$0xff]
        %v866 = vld [vmem:[%s5 + $0x50] sm:$0xff]
        %v867 = vld [vmem:[%s5 + $0x60] sm:$0xff]
        %v868 = vld [vmem:[%s5 + $0x70] sm:$0xff]
        %v869 = vld [vmem:[%s5 + $0x80] sm:$0xff]
        %v870 = vld [vmem:[%s5 + $0x90] sm:$0xff]
        %v871 = vld [vmem:[%s5 + $0xa0] sm:$0xff]
        %v872 = vld [vmem:[%s5 + $0xb0] sm:$0xff]
        %v873 = vld [vmem:[%s5 + $0xc0] sm:$0xff]
        %v874 = vld [vmem:[%s5 + $0xd0] sm:$0xff]
        %v875 = vld [vmem:[%s5 + $0xe0] sm:$0xff]
        %v876 = vld [vmem:[%s5 + $0xf0] sm:$0xff]
        %v877 = vld [vmem:[%s6] sm:$0x3]
        %v879 = vlaneseq
        %v880 = vshrl.u32 %v879, 7
        %v881 = vsub.s32 0, %v880
        %v882 = vrot.slane %v877, %v881
        %v883 = vlaneseq
        %v884 = vshrl.u32 %v883, 7
        %v885 = vsub.s32 1, %v884
        %v886 = vrot.slane %v877, %v885
        %v905 = vunpack.c.l.b16 %v861
        %v906 = vunpack.c.h.b16 %v861
        %v907 = vunpack.c.l.b16 %v862
        %v908 = vunpack.c.h.b16 %v862
        %v909 = vunpack.c.l.b16 %v863
        %v910 = vunpack.c.h.b16 %v863
        %v911 = vunpack.c.l.b16 %v864
        %v912 = vunpack.c.h.b16 %v864
        %v913 = vunpack.c.l.b16 %v865
        %v914 = vunpack.c.h.b16 %v865
        %v915 = vunpack.c.l.b16 %v866
        %v916 = vunpack.c.h.b16 %v866
        %v917 = vunpack.c.l.b16 %v867
        %v918 = vunpack.c.h.b16 %v867
        %v919 = vunpack.c.l.b16 %v868
        %v920 = vunpack.c.h.b16 %v868
        %v921 = vunpack.c.l.b16 %v869
        %v922 = vunpack.c.h.b16 %v869
        %v923 = vunpack.c.l.b16 %v870
        %v924 = vunpack.c.h.b16 %v870
        %v925 = vunpack.c.l.b16 %v871
        %v926 = vunpack.c.h.b16 %v871
        %v927 = vunpack.c.l.b16 %v872
        %v928 = vunpack.c.h.b16 %v872
        %v929 = vunpack.c.l.b16 %v873
        %v930 = vunpack.c.h.b16 %v873
        %v931 = vunpack.c.l.b16 %v874
        %v932 = vunpack.c.h.b16 %v874
        %v933 = vunpack.c.l.b16 %v875
        %v934 = vunpack.c.h.b16 %v875
        %v935 = vunpack.c.l.b16 %v876
        %v936 = vunpack.c.h.b16 %v876
        %v937 = vpack.c.b16 %v907, %v905
        %v938 = vpack.c.b16 %v908, %v906
        %v939 = vpack.c.b16 %v911, %v909
        %v940 = vpack.c.b16 %v912, %v910
        %v941 = vpack.c.b16 %v915, %v913
        %v942 = vpack.c.b16 %v916, %v914
        %v943 = vpack.c.b16 %v919, %v917
        %v944 = vpack.c.b16 %v920, %v918
        %v945 = vpack.c.b16 %v923, %v921
        %v946 = vpack.c.b16 %v924, %v922
        %v947 = vpack.c.b16 %v927, %v925
        %v948 = vpack.c.b16 %v928, %v926
        %v949 = vpack.c.b16 %v931, %v929
        %v950 = vpack.c.b16 %v932, %v930
        %v951 = vpack.c.b16 %v935, %v933
        %v952 = vpack.c.b16 %v936, %v934
        %969 = vmatprep.subr.bf16.mxu0 %v952
        %970 = vmatpush1.bf16.msra.mxu0 %v951
        %971 = vmatprep.subr.bf16.mxu0 %v950
        %972 = vmatpush1.bf16.msra.mxu0 %v949
        %973 = vmatprep.subr.bf16.mxu0 %v948
        %974 = vmatpush1.bf16.msra.mxu0 %v947
        %975 = vmatprep.subr.bf16.mxu0 %v946
        %976 = vmatpush1.bf16.msra.mxu0 %v945
        %977 = vmatprep.subr.bf16.mxu0 %v944
        %978 = vmatpush1.bf16.msra.mxu0 %v943
        %979 = vmatprep.subr.bf16.mxu0 %v942
        %980 = vmatpush1.bf16.msra.mxu0 %v941
        %981 = vmatprep.subr.bf16.mxu0 %v940
        %982 = vmatpush1.bf16.msra.mxu0 %v939
        %983 = vmatprep.subr.bf16.mxu0 %v938
        %984 = vmatpush1.bf16.msra.mxu0 %v937
        %985 = vmatprep.subr.bf16.mxu0 0
        %986 = vmatpush2.bf16.msra.mxu0 0
        %987 = vmatprep.subr.bf16.mxu0 0
        %988 = vmatpush2.bf16.msra.mxu0 0
        %989 = vmatprep.subr.bf16.mxu0 0
        %990 = vmatpush2.bf16.msra.mxu0 0
        %991 = vmatprep.subr.bf16.mxu0 0
        %992 = vmatpush2.bf16.msra.mxu0 0
        %993 = vmatprep.subr.bf16.mxu0 0
        %994 = vmatpush2.bf16.msra.mxu0 0
        %995 = vmatprep.subr.bf16.mxu0 0
        %996 = vmatpush2.bf16.msra.mxu0 0
        %997 = vmatprep.subr.bf16.mxu0 0
        %998 = vmatpush2.bf16.msra.mxu0 0
        %999 = vmatprep.subr.bf16.mxu0 0
        %1000 = vmatpush2.bf16.msra.mxu0 0
        %1001 = vmatprep.mubr.bf16.mxu0 0
        %1002 = vmatmul.mubr.bf16.gmra.mxu0 %v853
        %v1003 = vpop.f32.mrf.mxu0
        %v1004 = vadd.f32 %v882, %v1003
        %v1005 = vpop.f32.mrf.mxu0
        %v1006 = vadd.f32 %v886, %v1005
        %v1007 = vpop.f32.mrf.mxu0
        %v1008 = vadd.f32 %v882, %v1007
        %v1009 = vpop.f32.mrf.mxu0
        %v1010 = vadd.f32 %v886, %v1009
        %1011 = vmatprep.mubr.bf16.mxu0 0
        %1012 = vmatmul.mubr.bf16.gmra.mxu0 %v854
        %v1013 = vpop.f32.mrf.mxu0
        %v1014 = vadd.f32 %v882, %v1013
        %v1015 = vpop.f32.mrf.mxu0
        %v1016 = vadd.f32 %v886, %v1015
        %v1017 = vpop.f32.mrf.mxu0
        %v1018 = vadd.f32 %v882, %v1017
        %v1019 = vpop.f32.mrf.mxu0
        %v1020 = vadd.f32 %v886, %v1019
        %1021 = vmatprep.mubr.bf16.mxu0 0
        %1022 = vmatmul.mubr.bf16.gmra.mxu0 %v855
        %v1023 = vpop.f32.mrf.mxu0
        %v1024 = vadd.f32 %v882, %v1023
        %v1025 = vpop.f32.mrf.mxu0
        %v1026 = vadd.f32 %v886, %v1025
        %v1027 = vpop.f32.mrf.mxu0
        %v1028 = vadd.f32 %v882, %v1027
        %v1029 = vpop.f32.mrf.mxu0
        %v1030 = vadd.f32 %v886, %v1029
        %1031 = vmatprep.mubr.bf16.mxu0 0
        %1032 = vmatmul.mubr.bf16.gmra.mxu0 %v856
        %v1033 = vpop.f32.mrf.mxu0
        %v1034 = vadd.f32 %v882, %v1033
        %v1035 = vpop.f32.mrf.mxu0
        %v1036 = vadd.f32 %v886, %v1035
        %v1037 = vpop.f32.mrf.mxu0
        %v1038 = vadd.f32 %v882, %v1037
        %v1039 = vpop.f32.mrf.mxu0
        %v1040 = vadd.f32 %v886, %v1039
        %1041 = vmatprep.mubr.bf16.mxu0 0
        %1042 = vmatmul.mubr.bf16.gmra.mxu0 %v857
        %v1043 = vpop.f32.mrf.mxu0
        %v1044 = vadd.f32 %v882, %v1043
        %v1045 = vpop.f32.mrf.mxu0
        %v1046 = vadd.f32 %v886, %v1045
        %v1047 = vpop.f32.mrf.mxu0
        %v1048 = vadd.f32 %v882, %v1047
        %v1049 = vpop.f32.mrf.mxu0
        %v1050 = vadd.f32 %v886, %v1049
        %1051 = vmatprep.mubr.bf16.mxu0 0
        %1052 = vmatmul.mubr.bf16.gmra.mxu0 %v858
        %v1053 = vpop.f32.mrf.mxu0
        %v1054 = vadd.f32 %v882, %v1053
        %v1055 = vpop.f32.mrf.mxu0
        %v1056 = vadd.f32 %v886, %v1055
        %v1057 = vpop.f32.mrf.mxu0
        %v1058 = vadd.f32 %v882, %v1057
        %v1059 = vpop.f32.mrf.mxu0
        %v1060 = vadd.f32 %v886, %v1059
        %1061 = vmatprep.mubr.bf16.mxu0 0
        %1062 = vmatmul.mubr.bf16.gmra.mxu0 %v859
        %v1063 = vpop.f32.mrf.mxu0
        %v1064 = vadd.f32 %v882, %v1063
        %v1065 = vpop.f32.mrf.mxu0
        %v1066 = vadd.f32 %v886, %v1065
        %v1067 = vpop.f32.mrf.mxu0
        %v1068 = vadd.f32 %v882, %v1067
        %v1069 = vpop.f32.mrf.mxu0
        %v1070 = vadd.f32 %v886, %v1069
        %1071 = vmatprep.mubr.bf16.mxu0 0
        %1072 = vmatmul.mubr.bf16.gmra.mxu0 %v860
        %v1073 = vpop.f32.mrf.mxu0
        %v1074 = vadd.f32 %v882, %v1073
        %v1075 = vpop.f32.mrf.mxu0
        %v1076 = vadd.f32 %v886, %v1075
        %v1077 = vpop.f32.mrf.mxu0
        %v1078 = vadd.f32 %v882, %v1077
        %v1079 = vpop.f32.mrf.mxu0
        %v1080 = vadd.f32 %v886, %v1079
        %1081 = vdwg.mxu0
        %v1082 = vmax.f32 %v1004, 0.0
        %v1083 = vmax.f32 %v1006, 0.0
        %v1084 = vmax.f32 %v1008, 0.0
        %v1085 = vmax.f32 %v1010, 0.0
        %v1086 = vmax.f32 %v1014, 0.0
        %v1087 = vmax.f32 %v1016, 0.0
        %v1088 = vmax.f32 %v1018, 0.0
        %v1089 = vmax.f32 %v1020, 0.0
        %v1090 = vmax.f32 %v1024, 0.0
        %v1091 = vmax.f32 %v1026, 0.0
        %v1092 = vmax.f32 %v1028, 0.0
        %v1093 = vmax.f32 %v1030, 0.0
        %v1094 = vmax.f32 %v1034, 0.0
        %v1095 = vmax.f32 %v1036, 0.0
        %v1096 = vmax.f32 %v1038, 0.0
        %v1097 = vmax.f32 %v1040, 0.0
        %v1098 = vmax.f32 %v1044, 0.0
        %v1099 = vmax.f32 %v1046, 0.0
        %v1100 = vmax.f32 %v1048, 0.0
        %v1101 = vmax.f32 %v1050, 0.0
        %v1102 = vmax.f32 %v1054, 0.0
        %v1103 = vmax.f32 %v1056, 0.0
        %v1104 = vmax.f32 %v1058, 0.0
        %v1105 = vmax.f32 %v1060, 0.0
        %v1106 = vmax.f32 %v1064, 0.0
        %v1107 = vmax.f32 %v1066, 0.0
        %v1108 = vmax.f32 %v1068, 0.0
        %v1109 = vmax.f32 %v1070, 0.0
        %v1110 = vmax.f32 %v1074, 0.0
        %v1111 = vmax.f32 %v1076, 0.0
        %v1112 = vmax.f32 %v1078, 0.0
        %v1113 = vmax.f32 %v1080, 0.0
        %v1114 = vpack.c.bf16 %v1084, %v1082
        %v1115 = vpack.c.bf16 %v1085, %v1083
        %v1116 = vpack.c.bf16 %v1088, %v1086
        %v1117 = vpack.c.bf16 %v1089, %v1087
        %v1118 = vpack.c.bf16 %v1092, %v1090
        %v1119 = vpack.c.bf16 %v1093, %v1091
        %v1120 = vpack.c.bf16 %v1096, %v1094
        %v1121 = vpack.c.bf16 %v1097, %v1095
        %v1122 = vpack.c.bf16 %v1100, %v1098
        %v1123 = vpack.c.bf16 %v1101, %v1099
        %v1124 = vpack.c.bf16 %v1104, %v1102
        %v1125 = vpack.c.bf16 %v1105, %v1103
        %v1126 = vpack.c.bf16 %v1108, %v1106
        %v1127 = vpack.c.bf16 %v1109, %v1107
        %v1128 = vpack.c.bf16 %v1112, %v1110
        %v1129 = vpack.c.bf16 %v1113, %v1111
        %v1130 = vld [vmem:[#allocation3] sm:$0xf]
        %v1131 = vld [vmem:[#allocation3 + $0x4] sm:$0xf]
        %v1132 = vld [vmem:[#allocation3 + $0x8] sm:$0xf]
        %v1133 = vld [vmem:[#allocation3 + $0xc] sm:$0xf]
        %v1134 = vld [vmem:[#allocation3 + $0x10] sm:$0xf]
        %v1135 = vld [vmem:[#allocation3 + $0x14] sm:$0xf]
        %v1136 = vld [vmem:[#allocation3 + $0x18] sm:$0xf]
        %v1137 = vld [vmem:[#allocation3 + $0x1c] sm:$0xf]
        %v1138 = vld [vmem:[#allocation3 + $0x20] sm:$0xf]
        %v1139 = vld [vmem:[#allocation3 + $0x24] sm:$0xf]
        %v1140 = vld [vmem:[#allocation3 + $0x28] sm:$0xf]
        %v1141 = vld [vmem:[#allocation3 + $0x2c] sm:$0xf]
        %v1142 = vld [vmem:[#allocation3 + $0x30] sm:$0xf]
        %v1143 = vld [vmem:[#allocation3 + $0x34] sm:$0xf]
        %v1144 = vld [vmem:[#allocation3 + $0x38] sm:$0xf]
        %v1145 = vld [vmem:[#allocation3 + $0x3c] sm:$0xf]
        %v1146 = vld [vmem:[#allocation3 + $0x40] sm:$0xf]
        %v1147 = vld [vmem:[#allocation3 + $0x44] sm:$0xf]
        %v1148 = vld [vmem:[#allocation3 + $0x48] sm:$0xf]
        %v1149 = vld [vmem:[#allocation3 + $0x4c] sm:$0xf]
        %v1150 = vld [vmem:[#allocation3 + $0x50] sm:$0xf]
        %v1151 = vld [vmem:[#allocation3 + $0x54] sm:$0xf]
        %v1152 = vld [vmem:[#allocation3 + $0x58] sm:$0xf]
        %v1153 = vld [vmem:[#allocation3 + $0x5c] sm:$0xf]
        %v1154 = vld [vmem:[#allocation3 + $0x60] sm:$0xf]
        %v1155 = vld [vmem:[#allocation3 + $0x64] sm:$0xf]
        %v1156 = vld [vmem:[#allocation3 + $0x68] sm:$0xf]
        %v1157 = vld [vmem:[#allocation3 + $0x6c] sm:$0xf]
        %v1158 = vld [vmem:[#allocation3 + $0x70] sm:$0xf]
        %v1159 = vld [vmem:[#allocation3 + $0x74] sm:$0xf]
        %v1160 = vld [vmem:[#allocation3 + $0x78] sm:$0xf]
        %v1161 = vld [vmem:[#allocation3 + $0x7c] sm:$0xf]
        %v1162 = vld [vmem:[%s5 + $0x8] sm:$0xff]
        %v1163 = vld [vmem:[%s5 + $0x18] sm:$0xff]
        %v1164 = vld [vmem:[%s5 + $0x28] sm:$0xff]
        %v1165 = vld [vmem:[%s5 + $0x38] sm:$0xff]
        %v1166 = vld [vmem:[%s5 + $0x48] sm:$0xff]
        %v1167 = vld [vmem:[%s5 + $0x58] sm:$0xff]
        %v1168 = vld [vmem:[%s5 + $0x68] sm:$0xff]
        %v1169 = vld [vmem:[%s5 + $0x78] sm:$0xff]
        %v1170 = vld [vmem:[%s5 + $0x88] sm:$0xff]
        %v1171 = vld [vmem:[%s5 + $0x98] sm:$0xff]
        %v1172 = vld [vmem:[%s5 + $0xa8] sm:$0xff]
        %v1173 = vld [vmem:[%s5 + $0xb8] sm:$0xff]
        %v1174 = vld [vmem:[%s5 + $0xc8] sm:$0xff]
        %v1175 = vld [vmem:[%s5 + $0xd8] sm:$0xff]
        %v1176 = vld [vmem:[%s5 + $0xe8] sm:$0xff]
        %v1177 = vld [vmem:[%s5 + $0xf8] sm:$0xff]
        %v1178 = vld [vmem:[%s6 + $0x2] sm:$0x3]
        %v1180 = vlaneseq
        %v1181 = vshrl.u32 %v1180, 7
        %v1182 = vsub.s32 0, %v1181
        %v1183 = vrot.slane %v1178, %v1182
        %v1184 = vlaneseq
        %v1185 = vshrl.u32 %v1184, 7
        %v1186 = vsub.s32 1, %v1185
        %v1187 = vrot.slane %v1178, %v1186
        %v1206 = vunpack.c.l.b16 %v1162
        %v1207 = vunpack.c.h.b16 %v1162
        %v1208 = vunpack.c.l.b16 %v1163
        %v1209 = vunpack.c.h.b16 %v1163
        %v1210 = vunpack.c.l.b16 %v1164
        %v1211 = vunpack.c.h.b16 %v1164
        %v1212 = vunpack.c.l.b16 %v1165
        %v1213 = vunpack.c.h.b16 %v1165
        %v1214 = vunpack.c.l.b16 %v1166
        %v1215 = vunpack.c.h.b16 %v1166
        %v1216 = vunpack.c.l.b16 %v1167
        %v1217 = vunpack.c.h.b16 %v1167
        %v1218 = vunpack.c.l.b16 %v1168
        %v1219 = vunpack.c.h.b16 %v1168
        %v1220 = vunpack.c.l.b16 %v1169
        %v1221 = vunpack.c.h.b16 %v1169
        %v1222 = vunpack.c.l.b16 %v1170
        %v1223 = vunpack.c.h.b16 %v1170
        %v1224 = vunpack.c.l.b16 %v1171
        %v1225 = vunpack.c.h.b16 %v1171
        %v1226 = vunpack.c.l.b16 %v1172
        %v1227 = vunpack.c.h.b16 %v1172
        %v1228 = vunpack.c.l.b16 %v1173
        %v1229 = vunpack.c.h.b16 %v1173
        %v1230 = vunpack.c.l.b16 %v1174
        %v1231 = vunpack.c.h.b16 %v1174
        %v1232 = vunpack.c.l.b16 %v1175
        %v1233 = vunpack.c.h.b16 %v1175
        %v1234 = vunpack.c.l.b16 %v1176
        %v1235 = vunpack.c.h.b16 %v1176
        %v1236 = vunpack.c.l.b16 %v1177
        %v1237 = vunpack.c.h.b16 %v1177
        %v1238 = vpack.c.b16 %v1208, %v1206
        %v1239 = vpack.c.b16 %v1209, %v1207
        %v1240 = vpack.c.b16 %v1212, %v1210
        %v1241 = vpack.c.b16 %v1213, %v1211
        %v1242 = vpack.c.b16 %v1216, %v1214
        %v1243 = vpack.c.b16 %v1217, %v1215
        %v1244 = vpack.c.b16 %v1220, %v1218
        %v1245 = vpack.c.b16 %v1221, %v1219
        %v1246 = vpack.c.b16 %v1224, %v1222
        %v1247 = vpack.c.b16 %v1225, %v1223
        %v1248 = vpack.c.b16 %v1228, %v1226
        %v1249 = vpack.c.b16 %v1229, %v1227
        %v1250 = vpack.c.b16 %v1232, %v1230
        %v1251 = vpack.c.b16 %v1233, %v1231
        %v1252 = vpack.c.b16 %v1236, %v1234
        %v1253 = vpack.c.b16 %v1237, %v1235
        %1270 = vmatprep.subr.bf16.mxu0 %v1253
        %1271 = vmatpush1.bf16.msra.mxu0 %v1252
        %1272 = vmatprep.subr.bf16.mxu0 %v1251
        %1273 = vmatpush1.bf16.msra.mxu0 %v1250
        %1274 = vmatprep.subr.bf16.mxu0 %v1249
        %1275 = vmatpush1.bf16.msra.mxu0 %v1248
        %1276 = vmatprep.subr.bf16.mxu0 %v1247
        %1277 = vmatpush1.bf16.msra.mxu0 %v1246
        %1278 = vmatprep.subr.bf16.mxu0 %v1245
        %1279 = vmatpush1.bf16.msra.mxu0 %v1244
        %1280 = vmatprep.subr.bf16.mxu0 %v1243
        %1281 = vmatpush1.bf16.msra.mxu0 %v1242
        %1282 = vmatprep.subr.bf16.mxu0 %v1241
        %1283 = vmatpush1.bf16.msra.mxu0 %v1240
        %1284 = vmatprep.subr.bf16.mxu0 %v1239
        %1285 = vmatpush1.bf16.msra.mxu0 %v1238
        %1286 = vmatprep.subr.bf16.mxu0 0
        %1287 = vmatpush2.bf16.msra.mxu0 0
        %1288 = vmatprep.subr.bf16.mxu0 0
        %1289 = vmatpush2.bf16.msra.mxu0 0
        %1290 = vmatprep.subr.bf16.mxu0 0
        %1291 = vmatpush2.bf16.msra.mxu0 0
        %1292 = vmatprep.subr.bf16.mxu0 0
        %1293 = vmatpush2.bf16.msra.mxu0 0
        %1294 = vmatprep.subr.bf16.mxu0 0
        %1295 = vmatpush2.bf16.msra.mxu0 0
        %1296 = vmatprep.subr.bf16.mxu0 0
        %1297 = vmatpush2.bf16.msra.mxu0 0
        %1298 = vmatprep.subr.bf16.mxu0 0
        %1299 = vmatpush2.bf16.msra.mxu0 0
        %1300 = vmatprep.subr.bf16.mxu0 0
        %1301 = vmatpush2.bf16.msra.mxu0 0
        %1302 = vmatprep.mubr.bf16.mxu0 0
        %1303 = vmatmul.mubr.bf16.gmra.mxu0 %v853
        %v1304 = vpop.f32.mrf.mxu0
        %v1305 = vadd.f32 %v1183, %v1304
        %v1306 = vpop.f32.mrf.mxu0
        %v1307 = vadd.f32 %v1187, %v1306
        %v1308 = vpop.f32.mrf.mxu0
        %v1309 = vadd.f32 %v1183, %v1308
        %v1310 = vpop.f32.mrf.mxu0
        %v1311 = vadd.f32 %v1187, %v1310
        %1312 = vmatprep.mubr.bf16.mxu0 0
        %1313 = vmatmul.mubr.bf16.gmra.mxu0 %v854
        %v1314 = vpop.f32.mrf.mxu0
        %v1315 = vadd.f32 %v1183, %v1314
        %v1316 = vpop.f32.mrf.mxu0
        %v1317 = vadd.f32 %v1187, %v1316
        %v1318 = vpop.f32.mrf.mxu0
        %v1319 = vadd.f32 %v1183, %v1318
        %v1320 = vpop.f32.mrf.mxu0
        %v1321 = vadd.f32 %v1187, %v1320
        %1322 = vmatprep.mubr.bf16.mxu0 0
        %1323 = vmatmul.mubr.bf16.gmra.mxu0 %v855
        %v1324 = vpop.f32.mrf.mxu0
        %v1325 = vadd.f32 %v1183, %v1324
        %v1326 = vpop.f32.mrf.mxu0
        %v1327 = vadd.f32 %v1187, %v1326
        %v1328 = vpop.f32.mrf.mxu0
        %v1329 = vadd.f32 %v1183, %v1328
        %v1330 = vpop.f32.mrf.mxu0
        %v1331 = vadd.f32 %v1187, %v1330
        %1332 = vmatprep.mubr.bf16.mxu0 0
        %1333 = vmatmul.mubr.bf16.gmra.mxu0 %v856
        %v1334 = vpop.f32.mrf.mxu0
        %v1335 = vadd.f32 %v1183, %v1334
        %v1336 = vpop.f32.mrf.mxu0
        %v1337 = vadd.f32 %v1187, %v1336
        %v1338 = vpop.f32.mrf.mxu0
        %v1339 = vadd.f32 %v1183, %v1338
        %v1340 = vpop.f32.mrf.mxu0
        %v1341 = vadd.f32 %v1187, %v1340
        %1342 = vmatprep.mubr.bf16.mxu0 0
        %1343 = vmatmul.mubr.bf16.gmra.mxu0 %v857
        %v1344 = vpop.f32.mrf.mxu0
        %v1345 = vadd.f32 %v1183, %v1344
        %v1346 = vpop.f32.mrf.mxu0
        %v1347 = vadd.f32 %v1187, %v1346
        %v1348 = vpop.f32.mrf.mxu0
        %v1349 = vadd.f32 %v1183, %v1348
        %v1350 = vpop.f32.mrf.mxu0
        %v1351 = vadd.f32 %v1187, %v1350
        %1352 = vmatprep.mubr.bf16.mxu0 0
        %1353 = vmatmul.mubr.bf16.gmra.mxu0 %v858
        %v1354 = vpop.f32.mrf.mxu0
        %v1355 = vadd.f32 %v1183, %v1354
        %v1356 = vpop.f32.mrf.mxu0
        %v1357 = vadd.f32 %v1187, %v1356
        %v1358 = vpop.f32.mrf.mxu0
        %v1359 = vadd.f32 %v1183, %v1358
        %v1360 = vpop.f32.mrf.mxu0
        %v1361 = vadd.f32 %v1187, %v1360
        %1362 = vmatprep.mubr.bf16.mxu0 0
        %1363 = vmatmul.mubr.bf16.gmra.mxu0 %v859
        %v1364 = vpop.f32.mrf.mxu0
        %v1365 = vadd.f32 %v1183, %v1364
        %v1366 = vpop.f32.mrf.mxu0
        %v1367 = vadd.f32 %v1187, %v1366
        %v1368 = vpop.f32.mrf.mxu0
        %v1369 = vadd.f32 %v1183, %v1368
        %v1370 = vpop.f32.mrf.mxu0
        %v1371 = vadd.f32 %v1187, %v1370
        %1372 = vmatprep.mubr.bf16.mxu0 0
        %1373 = vmatmul.mubr.bf16.gmra.mxu0 %v860
        %v1374 = vpop.f32.mrf.mxu0
        %v1375 = vadd.f32 %v1183, %v1374
        %v1376 = vpop.f32.mrf.mxu0
        %v1377 = vadd.f32 %v1187, %v1376
        %v1378 = vpop.f32.mrf.mxu0
        %v1379 = vadd.f32 %v1183, %v1378
        %v1380 = vpop.f32.mrf.mxu0
        %v1381 = vadd.f32 %v1187, %v1380
        %1382 = vdwg.mxu0
        %v1383 = vmax.f32 %v1305, 0.0
        %v1384 = vmax.f32 %v1307, 0.0
        %v1385 = vmax.f32 %v1309, 0.0
        %v1386 = vmax.f32 %v1311, 0.0
        %v1387 = vmax.f32 %v1315, 0.0
        %v1388 = vmax.f32 %v1317, 0.0
        %v1389 = vmax.f32 %v1319, 0.0
        %v1390 = vmax.f32 %v1321, 0.0
        %v1391 = vmax.f32 %v1325, 0.0
        %v1392 = vmax.f32 %v1327, 0.0
        %v1393 = vmax.f32 %v1329, 0.0
        %v1394 = vmax.f32 %v1331, 0.0
        %v1395 = vmax.f32 %v1335, 0.0
        %v1396 = vmax.f32 %v1337, 0.0
        %v1397 = vmax.f32 %v1339, 0.0
        %v1398 = vmax.f32 %v1341, 0.0
        %v1399 = vmax.f32 %v1345, 0.0
        %v1400 = vmax.f32 %v1347, 0.0
        %v1401 = vmax.f32 %v1349, 0.0
        %v1402 = vmax.f32 %v1351, 0.0
        %v1403 = vmax.f32 %v1355, 0.0
        %v1404 = vmax.f32 %v1357, 0.0
        %v1405 = vmax.f32 %v1359, 0.0
        %v1406 = vmax.f32 %v1361, 0.0
        %v1407 = vmax.f32 %v1365, 0.0
        %v1408 = vmax.f32 %v1367, 0.0
        %v1409 = vmax.f32 %v1369, 0.0
        %v1410 = vmax.f32 %v1371, 0.0
        %v1411 = vmax.f32 %v1375, 0.0
        %v1412 = vmax.f32 %v1377, 0.0
        %v1413 = vmax.f32 %v1379, 0.0
        %v1414 = vmax.f32 %v1381, 0.0
        %v1415 = vpack.c.bf16 %v1385, %v1383
        %v1416 = vpack.c.bf16 %v1386, %v1384
        %v1417 = vpack.c.bf16 %v1389, %v1387
        %v1418 = vpack.c.bf16 %v1390, %v1388
        %v1419 = vpack.c.bf16 %v1393, %v1391
        %v1420 = vpack.c.bf16 %v1394, %v1392
        %v1421 = vpack.c.bf16 %v1397, %v1395
        %v1422 = vpack.c.bf16 %v1398, %v1396
        %v1423 = vpack.c.bf16 %v1401, %v1399
        %v1424 = vpack.c.bf16 %v1402, %v1400
        %v1425 = vpack.c.bf16 %v1405, %v1403
        %v1426 = vpack.c.bf16 %v1406, %v1404
        %v1427 = vpack.c.bf16 %v1409, %v1407
        %v1428 = vpack.c.bf16 %v1410, %v1408
        %v1429 = vpack.c.bf16 %v1413, %v1411
        %v1430 = vpack.c.bf16 %v1414, %v1412
        %v1431 = vld [vmem:[#allocation3 + $0x80] sm:$0xf]
        %v1432 = vld [vmem:[#allocation3 + $0x84] sm:$0xf]
        %v1433 = vld [vmem:[#allocation3 + $0x88] sm:$0xf]
        %v1434 = vld [vmem:[#allocation3 + $0x8c] sm:$0xf]
        %v1435 = vld [vmem:[#allocation3 + $0x90] sm:$0xf]
        %v1436 = vld [vmem:[#allocation3 + $0x94] sm:$0xf]
        %v1437 = vld [vmem:[#allocation3 + $0x98] sm:$0xf]
        %v1438 = vld [vmem:[#allocation3 + $0x9c] sm:$0xf]
        %v1439 = vld [vmem:[#allocation3 + $0xa0] sm:$0xf]
        %v1440 = vld [vmem:[#allocation3 + $0xa4] sm:$0xf]
        %v1441 = vld [vmem:[#allocation3 + $0xa8] sm:$0xf]
        %v1442 = vld [vmem:[#allocation3 + $0xac] sm:$0xf]
        %v1443 = vld [vmem:[#allocation3 + $0xb0] sm:$0xf]
        %v1444 = vld [vmem:[#allocation3 + $0xb4] sm:$0xf]
        %v1445 = vld [vmem:[#allocation3 + $0xb8] sm:$0xf]
        %v1446 = vld [vmem:[#allocation3 + $0xbc] sm:$0xf]
        %v1447 = vld [vmem:[#allocation3 + $0xc0] sm:$0xf]
        %v1448 = vld [vmem:[#allocation3 + $0xc4] sm:$0xf]
        %v1449 = vld [vmem:[#allocation3 + $0xc8] sm:$0xf]
        %v1450 = vld [vmem:[#allocation3 + $0xcc] sm:$0xf]
        %v1451 = vld [vmem:[#allocation3 + $0xd0] sm:$0xf]
        %v1452 = vld [vmem:[#allocation3 + $0xd4] sm:$0xf]
        %v1453 = vld [vmem:[#allocation3 + $0xd8] sm:$0xf]
        %v1454 = vld [vmem:[#allocation3 + $0xdc] sm:$0xf]
        %v1455 = vld [vmem:[#allocation3 + $0xe0] sm:$0xf]
        %v1456 = vld [vmem:[#allocation3 + $0xe4] sm:$0xf]
        %v1457 = vld [vmem:[#allocation3 + $0xe8] sm:$0xf]
        %v1458 = vld [vmem:[#allocation3 + $0xec] sm:$0xf]
        %v1459 = vld [vmem:[#allocation3 + $0xf0] sm:$0xf]
        %v1460 = vld [vmem:[#allocation3 + $0xf4] sm:$0xf]
        %v1461 = vld [vmem:[#allocation3 + $0xf8] sm:$0xf]
        %v1462 = vld [vmem:[#allocation3 + $0xfc] sm:$0xf]
        %v1495 = vunpack.c.l.b16 %v1431
        %v1496 = vunpack.c.l.b16 %v1432
        %v1497 = vunpack.c.l.b16 %v1433
        %v1498 = vunpack.c.l.b16 %v1434
        %v1499 = vunpack.c.l.b16 %v1435
        %v1500 = vunpack.c.l.b16 %v1436
        %v1501 = vunpack.c.l.b16 %v1437
        %v1502 = vunpack.c.l.b16 %v1438
        %v1503 = vunpack.c.l.b16 %v1439
        %v1504 = vunpack.c.l.b16 %v1440
        %v1505 = vunpack.c.l.b16 %v1441
        %v1506 = vunpack.c.l.b16 %v1442
        %v1507 = vunpack.c.l.b16 %v1443
        %v1508 = vunpack.c.l.b16 %v1444
        %v1509 = vunpack.c.l.b16 %v1445
        %v1510 = vunpack.c.l.b16 %v1446
        %v1511 = vunpack.c.l.b16 %v1447
        %v1512 = vunpack.c.l.b16 %v1448
        %v1513 = vunpack.c.l.b16 %v1449
        %v1514 = vunpack.c.l.b16 %v1450
        %v1515 = vunpack.c.l.b16 %v1451
        %v1516 = vunpack.c.l.b16 %v1452
        %v1517 = vunpack.c.l.b16 %v1453
        %v1518 = vunpack.c.l.b16 %v1454
        %v1519 = vunpack.c.l.b16 %v1455
        %v1520 = vunpack.c.l.b16 %v1456
        %v1521 = vunpack.c.l.b16 %v1457
        %v1522 = vunpack.c.l.b16 %v1458
        %v1523 = vunpack.c.l.b16 %v1459
        %v1524 = vunpack.c.l.b16 %v1460
        %v1525 = vunpack.c.l.b16 %v1461
        %v1526 = vunpack.c.l.b16 %v1462
        %v1527 = vpack.c.b16 %v1496, %v1495
        %v1528 = vpack.c.b16 %v1498, %v1497
        %v1529 = vpack.c.b16 %v1500, %v1499
        %v1530 = vpack.c.b16 %v1502, %v1501
        %v1531 = vpack.c.b16 %v1504, %v1503
        %v1532 = vpack.c.b16 %v1506, %v1505
        %v1533 = vpack.c.b16 %v1508, %v1507
        %v1534 = vpack.c.b16 %v1510, %v1509
        %v1535 = vpack.c.b16 %v1512, %v1511
        %v1536 = vpack.c.b16 %v1514, %v1513
        %v1537 = vpack.c.b16 %v1516, %v1515
        %v1538 = vpack.c.b16 %v1518, %v1517
        %v1539 = vpack.c.b16 %v1520, %v1519
        %v1540 = vpack.c.b16 %v1522, %v1521
        %v1541 = vpack.c.b16 %v1524, %v1523
        %v1542 = vpack.c.b16 %v1526, %v1525
        %1559 = vmatprep.subr.bf16.mxu0 0
        %1560 = vmatpush1.bf16.msra.mxu0 %v1534
        %1561 = vmatprep.subr.bf16.mxu0 0
        %1562 = vmatpush1.bf16.msra.mxu0 %v1533
        %1563 = vmatprep.subr.bf16.mxu0 0
        %1564 = vmatpush1.bf16.msra.mxu0 %v1532
        %1565 = vmatprep.subr.bf16.mxu0 0
        %1566 = vmatpush1.bf16.msra.mxu0 %v1531
        %1567 = vmatprep.subr.bf16.mxu0 0
        %1568 = vmatpush1.bf16.msra.mxu0 %v1530
        %1569 = vmatprep.subr.bf16.mxu0 0
        %1570 = vmatpush1.bf16.msra.mxu0 %v1529
        %1571 = vmatprep.subr.bf16.mxu0 0
        %1572 = vmatpush1.bf16.msra.mxu0 %v1528
        %1573 = vmatprep.subr.bf16.mxu0 0
        %1574 = vmatpush1.bf16.msra.mxu0 %v1527
        %1575 = vmatprep.subr.bf16.mxu0 0
        %1576 = vmatpush2.bf16.msra.mxu0 %v1542
        %1577 = vmatprep.subr.bf16.mxu0 0
        %1578 = vmatpush2.bf16.msra.mxu0 %v1541
        %1579 = vmatprep.subr.bf16.mxu0 0
        %1580 = vmatpush2.bf16.msra.mxu0 %v1540
        %1581 = vmatprep.subr.bf16.mxu0 0
        %1582 = vmatpush2.bf16.msra.mxu0 %v1539
        %1583 = vmatprep.subr.bf16.mxu0 0
        %1584 = vmatpush2.bf16.msra.mxu0 %v1538
        %1585 = vmatprep.subr.bf16.mxu0 0
        %1586 = vmatpush2.bf16.msra.mxu0 %v1537
        %1587 = vmatprep.subr.bf16.mxu0 0
        %1588 = vmatpush2.bf16.msra.mxu0 %v1536
        %1589 = vmatprep.subr.bf16.mxu0 0
        %1590 = vmatpush2.bf16.msra.mxu0 %v1535
        %1591 = vmatprep.mubr.bf16.mxu0 %v1416
        %1592 = vmatmul.mubr.bf16.gmra.mxu0 %v1415
        %v1593 = vpop.f32.mrf.mxu0
        %v1594 = vadd.f32 0.0, %v1593
        %v1595 = vpop.f32.mrf.mxu0
        %v1596 = vpop.f32.mrf.mxu0
        %v1597 = vadd.f32 0.0, %v1596
        %v1598 = vpop.f32.mrf.mxu0
        %1599 = vmatprep.mubr.bf16.mxu0 %v1418
        %1600 = vmatmul.mubr.bf16.gmra.mxu0 %v1417
        %v1601 = vpop.f32.mrf.mxu0
        %v1602 = vadd.f32 0.0, %v1601
        %v1603 = vpop.f32.mrf.mxu0
        %v1604 = vpop.f32.mrf.mxu0
        %v1605 = vadd.f32 0.0, %v1604
        %v1606 = vpop.f32.mrf.mxu0
        %1607 = vmatprep.mubr.bf16.mxu0 %v1420
        %1608 = vmatmul.mubr.bf16.gmra.mxu0 %v1419
        %v1609 = vpop.f32.mrf.mxu0
        %v1610 = vadd.f32 0.0, %v1609
        %v1611 = vpop.f32.mrf.mxu0
        %v1612 = vpop.f32.mrf.mxu0
        %v1613 = vadd.f32 0.0, %v1612
        %v1614 = vpop.f32.mrf.mxu0
        %1615 = vmatprep.mubr.bf16.mxu0 %v1422
        %1616 = vmatmul.mubr.bf16.gmra.mxu0 %v1421
        %v1617 = vpop.f32.mrf.mxu0
        %v1618 = vadd.f32 0.0, %v1617
        %v1619 = vpop.f32.mrf.mxu0
        %v1620 = vpop.f32.mrf.mxu0
        %v1621 = vadd.f32 0.0, %v1620
        %v1622 = vpop.f32.mrf.mxu0
        %1623 = vmatprep.mubr.bf16.mxu0 %v1424
        %1624 = vmatmul.mubr.bf16.gmra.mxu0 %v1423
        %v1625 = vpop.f32.mrf.mxu0
        %v1626 = vadd.f32 0.0, %v1625
        %v1627 = vpop.f32.mrf.mxu0
        %v1628 = vpop.f32.mrf.mxu0
        %v1629 = vadd.f32 0.0, %v1628
        %v1630 = vpop.f32.mrf.mxu0
        %1631 = vmatprep.mubr.bf16.mxu0 %v1426
        %1632 = vmatmul.mubr.bf16.gmra.mxu0 %v1425
        %v1633 = vpop.f32.mrf.mxu0
        %v1634 = vadd.f32 0.0, %v1633
        %v1635 = vpop.f32.mrf.mxu0
        %v1636 = vpop.f32.mrf.mxu0
        %v1637 = vadd.f32 0.0, %v1636
        %v1638 = vpop.f32.mrf.mxu0
        %1639 = vmatprep.mubr.bf16.mxu0 %v1428
        %1640 = vmatmul.mubr.bf16.gmra.mxu0 %v1427
        %v1641 = vpop.f32.mrf.mxu0
        %v1642 = vadd.f32 0.0, %v1641
        %v1643 = vpop.f32.mrf.mxu0
        %v1644 = vpop.f32.mrf.mxu0
        %v1645 = vadd.f32 0.0, %v1644
        %v1646 = vpop.f32.mrf.mxu0
        %1647 = vmatprep.mubr.bf16.mxu0 %v1430
        %1648 = vmatmul.mubr.bf16.gmra.mxu0 %v1429
        %v1649 = vpop.f32.mrf.mxu0
        %v1650 = vadd.f32 0.0, %v1649
        %v1651 = vpop.f32.mrf.mxu0
        %v1652 = vpop.f32.mrf.mxu0
        %v1653 = vadd.f32 0.0, %v1652
        %v1654 = vpop.f32.mrf.mxu0
        %1655 = vdwg.mxu0
        %v1688 = vunpack.c.l.b16 %v1130
        %v1689 = vunpack.c.l.b16 %v1131
        %v1690 = vunpack.c.l.b16 %v1132
        %v1691 = vunpack.c.l.b16 %v1133
        %v1692 = vunpack.c.l.b16 %v1134
        %v1693 = vunpack.c.l.b16 %v1135
        %v1694 = vunpack.c.l.b16 %v1136
        %v1695 = vunpack.c.l.b16 %v1137
        %v1696 = vunpack.c.l.b16 %v1138
        %v1697 = vunpack.c.l.b16 %v1139
        %v1698 = vunpack.c.l.b16 %v1140
        %v1699 = vunpack.c.l.b16 %v1141
        %v1700 = vunpack.c.l.b16 %v1142
        %v1701 = vunpack.c.l.b16 %v1143
        %v1702 = vunpack.c.l.b16 %v1144
        %v1703 = vunpack.c.l.b16 %v1145
        %v1704 = vunpack.c.l.b16 %v1146
        %v1705 = vunpack.c.l.b16 %v1147
        %v1706 = vunpack.c.l.b16 %v1148
        %v1707 = vunpack.c.l.b16 %v1149
        %v1708 = vunpack.c.l.b16 %v1150
        %v1709 = vunpack.c.l.b16 %v1151
        %v1710 = vunpack.c.l.b16 %v1152
        %v1711 = vunpack.c.l.b16 %v1153
        %v1712 = vunpack.c.l.b16 %v1154
        %v1713 = vunpack.c.l.b16 %v1155
        %v1714 = vunpack.c.l.b16 %v1156
        %v1715 = vunpack.c.l.b16 %v1157
        %v1716 = vunpack.c.l.b16 %v1158
        %v1717 = vunpack.c.l.b16 %v1159
        %v1718 = vunpack.c.l.b16 %v1160
        %v1719 = vunpack.c.l.b16 %v1161
        %v1720 = vpack.c.b16 %v1689, %v1688
        %v1721 = vpack.c.b16 %v1691, %v1690
        %v1722 = vpack.c.b16 %v1693, %v1692
        %v1723 = vpack.c.b16 %v1695, %v1694
        %v1724 = vpack.c.b16 %v1697, %v1696
        %v1725 = vpack.c.b16 %v1699, %v1698
        %v1726 = vpack.c.b16 %v1701, %v1700
        %v1727 = vpack.c.b16 %v1703, %v1702
        %v1728 = vpack.c.b16 %v1705, %v1704
        %v1729 = vpack.c.b16 %v1707, %v1706
        %v1730 = vpack.c.b16 %v1709, %v1708
        %v1731 = vpack.c.b16 %v1711, %v1710
        %v1732 = vpack.c.b16 %v1713, %v1712
        %v1733 = vpack.c.b16 %v1715, %v1714
        %v1734 = vpack.c.b16 %v1717, %v1716
        %v1735 = vpack.c.b16 %v1719, %v1718
        %1752 = vmatprep.subr.bf16.mxu0 0
        %1753 = vmatpush1.bf16.msra.mxu0 %v1727
        %1754 = vmatprep.subr.bf16.mxu0 0
        %1755 = vmatpush1.bf16.msra.mxu0 %v1726
        %1756 = vmatprep.subr.bf16.mxu0 0
        %1757 = vmatpush1.bf16.msra.mxu0 %v1725
        %1758 = vmatprep.subr.bf16.mxu0 0
        %1759 = vmatpush1.bf16.msra.mxu0 %v1724
        %1760 = vmatprep.subr.bf16.mxu0 0
        %1761 = vmatpush1.bf16.msra.mxu0 %v1723
        %1762 = vmatprep.subr.bf16.mxu0 0
        %1763 = vmatpush1.bf16.msra.mxu0 %v1722
        %1764 = vmatprep.subr.bf16.mxu0 0
        %1765 = vmatpush1.bf16.msra.mxu0 %v1721
        %1766 = vmatprep.subr.bf16.mxu0 0
        %1767 = vmatpush1.bf16.msra.mxu0 %v1720
        %1768 = vmatprep.subr.bf16.mxu0 0
        %1769 = vmatpush2.bf16.msra.mxu0 %v1735
        %1770 = vmatprep.subr.bf16.mxu0 0
        %1771 = vmatpush2.bf16.msra.mxu0 %v1734
        %1772 = vmatprep.subr.bf16.mxu0 0
        %1773 = vmatpush2.bf16.msra.mxu0 %v1733
        %1774 = vmatprep.subr.bf16.mxu0 0
        %1775 = vmatpush2.bf16.msra.mxu0 %v1732
        %1776 = vmatprep.subr.bf16.mxu0 0
        %1777 = vmatpush2.bf16.msra.mxu0 %v1731
        %1778 = vmatprep.subr.bf16.mxu0 0
        %1779 = vmatpush2.bf16.msra.mxu0 %v1730
        %1780 = vmatprep.subr.bf16.mxu0 0
        %1781 = vmatpush2.bf16.msra.mxu0 %v1729
        %1782 = vmatprep.subr.bf16.mxu0 0
        %1783 = vmatpush2.bf16.msra.mxu0 %v1728
        %1784 = vmatprep.mubr.bf16.mxu0 %v1115
        %1785 = vmatmul.mubr.bf16.gmra.mxu0 %v1114
        %v1786 = vpop.f32.mrf.mxu0
        %v1787 = vadd.f32 %v1594, %v1786
        %v1788 = vpop.f32.mrf.mxu0
        %v1789 = vpop.f32.mrf.mxu0
        %v1790 = vadd.f32 %v1597, %v1789
        %v1791 = vpop.f32.mrf.mxu0
        %1792 = vmatprep.mubr.bf16.mxu0 %v1117
        %1793 = vmatmul.mubr.bf16.gmra.mxu0 %v1116
        %v1794 = vpop.f32.mrf.mxu0
        %v1795 = vadd.f32 %v1602, %v1794
        %v1796 = vpop.f32.mrf.mxu0
        %v1797 = vpop.f32.mrf.mxu0
        %v1798 = vadd.f32 %v1605, %v1797
        %v1799 = vpop.f32.mrf.mxu0
        %1800 = vmatprep.mubr.bf16.mxu0 %v1119
        %1801 = vmatmul.mubr.bf16.gmra.mxu0 %v1118
        %v1802 = vpop.f32.mrf.mxu0
        %v1803 = vadd.f32 %v1610, %v1802
        %v1804 = vpop.f32.mrf.mxu0
        %v1805 = vpop.f32.mrf.mxu0
        %v1806 = vadd.f32 %v1613, %v1805
        %v1807 = vpop.f32.mrf.mxu0
        %1808 = vmatprep.mubr.bf16.mxu0 %v1121
        %1809 = vmatmul.mubr.bf16.gmra.mxu0 %v1120
        %v1810 = vpop.f32.mrf.mxu0
        %v1811 = vadd.f32 %v1618, %v1810
        %v1812 = vpop.f32.mrf.mxu0
        %v1813 = vpop.f32.mrf.mxu0
        %v1814 = vadd.f32 %v1621, %v1813
        %v1815 = vpop.f32.mrf.mxu0
        %1816 = vmatprep.mubr.bf16.mxu0 %v1123
        %1817 = vmatmul.mubr.bf16.gmra.mxu0 %v1122
        %v1818 = vpop.f32.mrf.mxu0
        %v1819 = vadd.f32 %v1626, %v1818
        %v1820 = vpop.f32.mrf.mxu0
        %v1821 = vpop.f32.mrf.mxu0
        %v1822 = vadd.f32 %v1629, %v1821
        %v1823 = vpop.f32.mrf.mxu0
        %1824 = vmatprep.mubr.bf16.mxu0 %v1125
        %1825 = vmatmul.mubr.bf16.gmra.mxu0 %v1124
        %v1826 = vpop.f32.mrf.mxu0
        %v1827 = vadd.f32 %v1634, %v1826
        %v1828 = vpop.f32.mrf.mxu0
        %v1829 = vpop.f32.mrf.mxu0
        %v1830 = vadd.f32 %v1637, %v1829
        %v1831 = vpop.f32.mrf.mxu0
        %1832 = vmatprep.mubr.bf16.mxu0 %v1127
        %1833 = vmatmul.mubr.bf16.gmra.mxu0 %v1126
        %v1834 = vpop.f32.mrf.mxu0
        %v1835 = vadd.f32 %v1642, %v1834
        %v1836 = vpop.f32.mrf.mxu0
        %v1837 = vpop.f32.mrf.mxu0
        %v1838 = vadd.f32 %v1645, %v1837
        %v1839 = vpop.f32.mrf.mxu0
        %1840 = vmatprep.mubr.bf16.mxu0 %v1129
        %1841 = vmatmul.mubr.bf16.gmra.mxu0 %v1128
        %v1842 = vpop.f32.mrf.mxu0
        %v1843 = vadd.f32 %v1650, %v1842
        %v1844 = vpop.f32.mrf.mxu0
        %v1845 = vpop.f32.mrf.mxu0
        %v1846 = vadd.f32 %v1653, %v1845
        %v1847 = vpop.f32.mrf.mxu0
        %1848 = vdwg.mxu0
        %v1849 = vld [vmem:[%s8] sm:$0x1]
        %v1851 = vlaneseq
        %v1852 = vshrl.u32 %v1851, 7
        %v1853 = vsub.s32 0, %v1852
        %v1854 = vrot.slane %v1849, %v1853
        %v1856 = vadd.f32 %v1787, %v1854
        %v1857 = vadd.f32 %v1790, %v1854
        %v1858 = vadd.f32 %v1795, %v1854
        %v1859 = vadd.f32 %v1798, %v1854
        %v1860 = vadd.f32 %v1803, %v1854
        %v1861 = vadd.f32 %v1806, %v1854
        %v1862 = vadd.f32 %v1811, %v1854
        %v1863 = vadd.f32 %v1814, %v1854
        %v1864 = vadd.f32 %v1819, %v1854
        %v1865 = vadd.f32 %v1822, %v1854
        %v1866 = vadd.f32 %v1827, %v1854
        %v1867 = vadd.f32 %v1830, %v1854
        %v1868 = vadd.f32 %v1835, %v1854
        %v1869 = vadd.f32 %v1838, %v1854
        %v1870 = vadd.f32 %v1843, %v1854
        %v1871 = vadd.f32 %v1846, %v1854
        %v1872 = vadd.f32 %v1856, %v614
        %v1873 = vadd.f32 %v1857, %v615
        %v1874 = vadd.f32 %v1858, %v616
        %v1875 = vadd.f32 %v1859, %v617
        %v1876 = vadd.f32 %v1860, %v618
        %v1877 = vadd.f32 %v1861, %v619
        %v1878 = vadd.f32 %v1862, %v620
        %v1879 = vadd.f32 %v1863, %v621
        %v1880 = vadd.f32 %v1864, %v622
        %v1881 = vadd.f32 %v1865, %v623
        %v1882 = vadd.f32 %v1866, %v624
        %v1883 = vadd.f32 %v1867, %v625
        %v1884 = vadd.f32 %v1868, %v626
        %v1885 = vadd.f32 %v1869, %v627
        %v1886 = vadd.f32 %v1870, %v628
        %v1887 = vadd.f32 %v1871, %v629
        %1888 = vst [vmem:[#allocation2] sm:$0xff] %v1872
        %1889 = vst [vmem:[#allocation2 + $0x8] sm:$0xff] %v1873
        %1890 = vst [vmem:[#allocation2 + $0x10] sm:$0xff] %v1874
        %1891 = vst [vmem:[#allocation2 + $0x18] sm:$0xff] %v1875
        %1892 = vst [vmem:[#allocation2 + $0x20] sm:$0xff] %v1876
        %1893 = vst [vmem:[#allocation2 + $0x28] sm:$0xff] %v1877
        %1894 = vst [vmem:[#allocation2 + $0x30] sm:$0xff] %v1878
        %1895 = vst [vmem:[#allocation2 + $0x38] sm:$0xff] %v1879
        %1896 = vst [vmem:[#allocation2 + $0x40] sm:$0xff] %v1880
        %1897 = vst [vmem:[#allocation2 + $0x48] sm:$0xff] %v1881
        %1898 = vst [vmem:[#allocation2 + $0x50] sm:$0xff] %v1882
        %1899 = vst [vmem:[#allocation2 + $0x58] sm:$0xff] %v1883
        %1900 = vst [vmem:[#allocation2 + $0x60] sm:$0xff] %v1884
        %1901 = vst [vmem:[#allocation2 + $0x68] sm:$0xff] %v1885
        %1902 = vst [vmem:[#allocation2 + $0x70] sm:$0xff] %v1886
        %1903 = vst [vmem:[#allocation2 + $0x78] sm:$0xff] %v1887
        %v1904 = vld [vmem:[#allocation2] sm:$0xff]
        %v1905 = vld [vmem:[#allocation2 + $0x8] sm:$0xff]
        %v1906 = vld [vmem:[#allocation2 + $0x10] sm:$0xff]
        %v1907 = vld [vmem:[#allocation2 + $0x18] sm:$0xff]
        %v1908 = vld [vmem:[#allocation2 + $0x20] sm:$0xff]
        %v1909 = vld [vmem:[#allocation2 + $0x28] sm:$0xff]
        %v1910 = vld [vmem:[#allocation2 + $0x30] sm:$0xff]
        %v1911 = vld [vmem:[#allocation2 + $0x38] sm:$0xff]
        %v1912 = vld [vmem:[#allocation2 + $0x40] sm:$0xff]
        %v1913 = vld [vmem:[#allocation2 + $0x48] sm:$0xff]
        %v1914 = vld [vmem:[#allocation2 + $0x50] sm:$0xff]
        %v1915 = vld [vmem:[#allocation2 + $0x58] sm:$0xff]
        %v1916 = vld [vmem:[#allocation2 + $0x60] sm:$0xff]
        %v1917 = vld [vmem:[#allocation2 + $0x68] sm:$0xff]
        %v1918 = vld [vmem:[#allocation2 + $0x70] sm:$0xff]
        %v1919 = vld [vmem:[#allocation2 + $0x78] sm:$0xff]
        %1920 = vadd.xlane.f32.xlu0 %v1904
        %v1921 = vpop.xlane.xlu0 %1920
        %1922 = vadd.xlane.f32.xlu0 %v1905
        %v1923 = vpop.xlane.xlu0 %1922
        %1924 = vadd.xlane.f32.xlu0 %v1906
        %v1925 = vpop.xlane.xlu0 %1924
        %1926 = vadd.xlane.f32.xlu0 %v1907
        %v1927 = vpop.xlane.xlu0 %1926
        %1928 = vadd.xlane.f32.xlu0 %v1908
        %v1929 = vpop.xlane.xlu0 %1928
        %1930 = vadd.xlane.f32.xlu0 %v1909
        %v1931 = vpop.xlane.xlu0 %1930
        %1932 = vadd.xlane.f32.xlu0 %v1910
        %v1933 = vpop.xlane.xlu0 %1932
        %1934 = vadd.xlane.f32.xlu0 %v1911
        %v1935 = vpop.xlane.xlu0 %1934
        %1936 = vadd.xlane.f32.xlu0 %v1912
        %v1937 = vpop.xlane.xlu0 %1936
        %1938 = vadd.xlane.f32.xlu0 %v1913
        %v1939 = vpop.xlane.xlu0 %1938
        %1940 = vadd.xlane.f32.xlu0 %v1914
        %v1941 = vpop.xlane.xlu0 %1940
        %1942 = vadd.xlane.f32.xlu0 %v1915
        %v1943 = vpop.xlane.xlu0 %1942
        %1944 = vadd.xlane.f32.xlu0 %v1916
        %v1945 = vpop.xlane.xlu0 %1944
        %1946 = vadd.xlane.f32.xlu0 %v1917
        %v1947 = vpop.xlane.xlu0 %1946
        %1948 = vadd.xlane.f32.xlu0 %v1918
        %v1949 = vpop.xlane.xlu0 %1948
        %1950 = vadd.xlane.f32.xlu0 %v1919
        %v1951 = vpop.xlane.xlu0 %1950
        %v1952 = vmul.f32 %v1921, %v662
        %v1953 = vmul.f32 %v1923, %v662
        %v1954 = vmul.f32 %v1925, %v662
        %v1955 = vmul.f32 %v1927, %v662
        %v1956 = vmul.f32 %v1929, %v662
        %v1957 = vmul.f32 %v1931, %v662
        %v1958 = vmul.f32 %v1933, %v662
        %v1959 = vmul.f32 %v1935, %v662
        %v1960 = vmul.f32 %v1937, %v662
        %v1961 = vmul.f32 %v1939, %v662
        %v1962 = vmul.f32 %v1941, %v662
        %v1963 = vmul.f32 %v1943, %v662
        %v1964 = vmul.f32 %v1945, %v662
        %v1965 = vmul.f32 %v1947, %v662
        %v1966 = vmul.f32 %v1949, %v662
        %v1967 = vmul.f32 %v1951, %v662
        %v1968 = vsub.f32 %v1904, %v1952
        %v1969 = vsub.f32 %v1905, %v1953
        %v1970 = vsub.f32 %v1906, %v1954
        %v1971 = vsub.f32 %v1907, %v1955
        %v1972 = vsub.f32 %v1908, %v1956
        %v1973 = vsub.f32 %v1909, %v1957
        %v1974 = vsub.f32 %v1910, %v1958
        %v1975 = vsub.f32 %v1911, %v1959
        %v1976 = vsub.f32 %v1912, %v1960
        %v1977 = vsub.f32 %v1913, %v1961
        %v1978 = vsub.f32 %v1914, %v1962
        %v1979 = vsub.f32 %v1915, %v1963
        %v1980 = vsub.f32 %v1916, %v1964
        %v1981 = vsub.f32 %v1917, %v1965
        %v1982 = vsub.f32 %v1918, %v1966
        %v1983 = vsub.f32 %v1919, %v1967
        %v1984 = vmul.f32 %v1968, %v1968
        %v1985 = vmul.f32 %v1969, %v1969
        %v1986 = vmul.f32 %v1970, %v1970
        %v1987 = vmul.f32 %v1971, %v1971
        %v1988 = vmul.f32 %v1972, %v1972
        %v1989 = vmul.f32 %v1973, %v1973
        %v1990 = vmul.f32 %v1974, %v1974
        %v1991 = vmul.f32 %v1975, %v1975
        %v1992 = vmul.f32 %v1976, %v1976
        %v1993 = vmul.f32 %v1977, %v1977
        %v1994 = vmul.f32 %v1978, %v1978
        %v1995 = vmul.f32 %v1979, %v1979
        %v1996 = vmul.f32 %v1980, %v1980
        %v1997 = vmul.f32 %v1981, %v1981
        %v1998 = vmul.f32 %v1982, %v1982
        %v1999 = vmul.f32 %v1983, %v1983
        %2000 = vadd.xlane.f32.xlu0 %v1984
        %v2001 = vpop.xlane.xlu0 %2000
        %2002 = vadd.xlane.f32.xlu0 %v1985
        %v2003 = vpop.xlane.xlu0 %2002
        %2004 = vadd.xlane.f32.xlu0 %v1986
        %v2005 = vpop.xlane.xlu0 %2004
        %2006 = vadd.xlane.f32.xlu0 %v1987
        %v2007 = vpop.xlane.xlu0 %2006
        %2008 = vadd.xlane.f32.xlu0 %v1988
        %v2009 = vpop.xlane.xlu0 %2008
        %2010 = vadd.xlane.f32.xlu0 %v1989
        %v2011 = vpop.xlane.xlu0 %2010
        %2012 = vadd.xlane.f32.xlu0 %v1990
        %v2013 = vpop.xlane.xlu0 %2012
        %2014 = vadd.xlane.f32.xlu0 %v1991
        %v2015 = vpop.xlane.xlu0 %2014
        %2016 = vadd.xlane.f32.xlu0 %v1992
        %v2017 = vpop.xlane.xlu0 %2016
        %2018 = vadd.xlane.f32.xlu0 %v1993
        %v2019 = vpop.xlane.xlu0 %2018
        %2020 = vadd.xlane.f32.xlu0 %v1994
        %v2021 = vpop.xlane.xlu0 %2020
        %2022 = vadd.xlane.f32.xlu0 %v1995
        %v2023 = vpop.xlane.xlu0 %2022
        %2024 = vadd.xlane.f32.xlu0 %v1996
        %v2025 = vpop.xlane.xlu0 %2024
        %2026 = vadd.xlane.f32.xlu0 %v1997
        %v2027 = vpop.xlane.xlu0 %2026
        %2028 = vadd.xlane.f32.xlu0 %v1998
        %v2029 = vpop.xlane.xlu0 %2028
        %2030 = vadd.xlane.f32.xlu0 %v1999
        %v2031 = vpop.xlane.xlu0 %2030
        %v2032 = vmul.f32 %v2001, %v662
        %v2033 = vmul.f32 %v2003, %v662
        %v2034 = vmul.f32 %v2005, %v662
        %v2035 = vmul.f32 %v2007, %v662
        %v2036 = vmul.f32 %v2009, %v662
        %v2037 = vmul.f32 %v2011, %v662
        %v2038 = vmul.f32 %v2013, %v662
        %v2039 = vmul.f32 %v2015, %v662
        %v2040 = vmul.f32 %v2017, %v662
        %v2041 = vmul.f32 %v2019, %v662
        %v2042 = vmul.f32 %v2021, %v662
        %v2043 = vmul.f32 %v2023, %v662
        %v2044 = vmul.f32 %v2025, %v662
        %v2045 = vmul.f32 %v2027, %v662
        %v2046 = vmul.f32 %v2029, %v662
        %v2047 = vmul.f32 %v2031, %v662
        %v2048 = vadd.f32 %v2032, 1e-05
        %v2049 = vadd.f32 %v2033, 1e-05
        %v2050 = vadd.f32 %v2034, 1e-05
        %v2051 = vadd.f32 %v2035, 1e-05
        %v2052 = vadd.f32 %v2036, 1e-05
        %v2053 = vadd.f32 %v2037, 1e-05
        %v2054 = vadd.f32 %v2038, 1e-05
        %v2055 = vadd.f32 %v2039, 1e-05
        %v2056 = vadd.f32 %v2040, 1e-05
        %v2057 = vadd.f32 %v2041, 1e-05
        %v2058 = vadd.f32 %v2042, 1e-05
        %v2059 = vadd.f32 %v2043, 1e-05
        %v2060 = vadd.f32 %v2044, 1e-05
        %v2061 = vadd.f32 %v2045, 1e-05
        %v2062 = vadd.f32 %v2046, 1e-05
        %v2063 = vadd.f32 %v2047, 1e-05
        %v2064 = vrsqrt.pop %v2048
        %v2065 = vrsqrt.pop %v2049
        %v2066 = vrsqrt.pop %v2050
        %v2067 = vrsqrt.pop %v2051
        %v2068 = vrsqrt.pop %v2052
        %v2069 = vrsqrt.pop %v2053
        %v2070 = vrsqrt.pop %v2054
        %v2071 = vrsqrt.pop %v2055
        %v2072 = vrsqrt.pop %v2056
        %v2073 = vrsqrt.pop %v2057
        %v2074 = vrsqrt.pop %v2058
        %v2075 = vrsqrt.pop %v2059
        %v2076 = vrsqrt.pop %v2060
        %v2077 = vrsqrt.pop %v2061
        %v2078 = vrsqrt.pop %v2062
        %v2079 = vrsqrt.pop %v2063
        %v2080 = vmul.f32 %v1968, %v2064
        %v2081 = vmul.f32 %v1969, %v2065
        %v2082 = vmul.f32 %v1970, %v2066
        %v2083 = vmul.f32 %v1971, %v2067
        %v2084 = vmul.f32 %v1972, %v2068
        %v2085 = vmul.f32 %v1973, %v2069
        %v2086 = vmul.f32 %v1974, %v2070
        %v2087 = vmul.f32 %v1975, %v2071
        %v2088 = vmul.f32 %v1976, %v2072
        %v2089 = vmul.f32 %v1977, %v2073
        %v2090 = vmul.f32 %v1978, %v2074
        %v2091 = vmul.f32 %v1979, %v2075
        %v2092 = vmul.f32 %v1980, %v2076
        %v2093 = vmul.f32 %v1981, %v2077
        %v2094 = vmul.f32 %v1982, %v2078
        %v2095 = vmul.f32 %v1983, %v2079
        %s2096 = scalar_lea.vmem %s3, 1
        %v2097 = vld [vmem:[%s2096] sm:$0x1]
        %v2099 = vlaneseq
        %v2100 = vshrl.u32 %v2099, 7
        %v2101 = vsub.s32 0, %v2100
        %v2102 = vrot.slane %v2097, %v2101
        %v2104 = vmul.f32 %v2080, %v2102
        %v2105 = vmul.f32 %v2081, %v2102
        %v2106 = vmul.f32 %v2082, %v2102
        %v2107 = vmul.f32 %v2083, %v2102
        %v2108 = vmul.f32 %v2084, %v2102
        %v2109 = vmul.f32 %v2085, %v2102
        %v2110 = vmul.f32 %v2086, %v2102
        %v2111 = vmul.f32 %v2087, %v2102
        %v2112 = vmul.f32 %v2088, %v2102
        %v2113 = vmul.f32 %v2089, %v2102
        %v2114 = vmul.f32 %v2090, %v2102
        %v2115 = vmul.f32 %v2091, %v2102
        %v2116 = vmul.f32 %v2092, %v2102
        %v2117 = vmul.f32 %v2093, %v2102
        %v2118 = vmul.f32 %v2094, %v2102
        %v2119 = vmul.f32 %v2095, %v2102
        %s2120 = scalar_lea.vmem %s4, 1
        %v2121 = vld [vmem:[%s2120] sm:$0x1]
        %v2123 = vlaneseq
        %v2124 = vshrl.u32 %v2123, 7
        %v2125 = vsub.s32 0, %v2124
        %v2126 = vrot.slane %v2121, %v2125
        %v2128 = vadd.f32 %v2104, %v2126
        %v2129 = vadd.f32 %v2105, %v2126
        %v2130 = vadd.f32 %v2106, %v2126
        %v2131 = vadd.f32 %v2107, %v2126
        %v2132 = vadd.f32 %v2108, %v2126
        %v2133 = vadd.f32 %v2109, %v2126
        %v2134 = vadd.f32 %v2110, %v2126
        %v2135 = vadd.f32 %v2111, %v2126
        %v2136 = vadd.f32 %v2112, %v2126
        %v2137 = vadd.f32 %v2113, %v2126
        %v2138 = vadd.f32 %v2114, %v2126
        %v2139 = vadd.f32 %v2115, %v2126
        %v2140 = vadd.f32 %v2116, %v2126
        %v2141 = vadd.f32 %v2117, %v2126
        %v2142 = vadd.f32 %v2118, %v2126
        %v2143 = vadd.f32 %v2119, %v2126
        %v2144 = vpack.c.bf16 %v2129, %v2128
        %v2145 = vpack.c.bf16 %v2131, %v2130
        %v2146 = vpack.c.bf16 %v2133, %v2132
        %v2147 = vpack.c.bf16 %v2135, %v2134
        %v2148 = vpack.c.bf16 %v2137, %v2136
        %v2149 = vpack.c.bf16 %v2139, %v2138
        %v2150 = vpack.c.bf16 %v2141, %v2140
        %v2151 = vpack.c.bf16 %v2143, %v2142
        %s2152 = scalar_lea.vmem %s5, 256
        %v2153 = vld [vmem:[%s2152] sm:$0xff]
        %v2154 = vld [vmem:[%s2152 + $0x10] sm:$0xff]
        %v2155 = vld [vmem:[%s2152 + $0x20] sm:$0xff]
        %v2156 = vld [vmem:[%s2152 + $0x30] sm:$0xff]
        %v2157 = vld [vmem:[%s2152 + $0x40] sm:$0xff]
        %v2158 = vld [vmem:[%s2152 + $0x50] sm:$0xff]
        %v2159 = vld [vmem:[%s2152 + $0x60] sm:$0xff]
        %v2160 = vld [vmem:[%s2152 + $0x70] sm:$0xff]
        %v2161 = vld [vmem:[%s2152 + $0x80] sm:$0xff]
        %v2162 = vld [vmem:[%s2152 + $0x90] sm:$0xff]
        %v2163 = vld [vmem:[%s2152 + $0xa0] sm:$0xff]
        %v2164 = vld [vmem:[%s2152 + $0xb0] sm:$0xff]
        %v2165 = vld [vmem:[%s2152 + $0xc0] sm:$0xff]
        %v2166 = vld [vmem:[%s2152 + $0xd0] sm:$0xff]
        %v2167 = vld [vmem:[%s2152 + $0xe0] sm:$0xff]
        %v2168 = vld [vmem:[%s2152 + $0xf0] sm:$0xff]
        %s2169 = scalar_lea.vmem %s6, 4
        %v2170 = vld [vmem:[%s2169] sm:$0x3]
        %v2172 = vlaneseq
        %v2173 = vshrl.u32 %v2172, 7
        %v2174 = vsub.s32 0, %v2173
        %v2175 = vrot.slane %v2170, %v2174
        %v2176 = vlaneseq
        %v2177 = vshrl.u32 %v2176, 7
        %v2178 = vsub.s32 1, %v2177
        %v2179 = vrot.slane %v2170, %v2178
        %v2198 = vunpack.c.l.b16 %v2153
        %v2199 = vunpack.c.h.b16 %v2153
        %v2200 = vunpack.c.l.b16 %v2154
        %v2201 = vunpack.c.h.b16 %v2154
        %v2202 = vunpack.c.l.b16 %v2155
        %v2203 = vunpack.c.h.b16 %v2155
        %v2204 = vunpack.c.l.b16 %v2156
        %v2205 = vunpack.c.h.b16 %v2156
        %v2206 = vunpack.c.l.b16 %v2157
        %v2207 = vunpack.c.h.b16 %v2157
        %v2208 = vunpack.c.l.b16 %v2158
        %v2209 = vunpack.c.h.b16 %v2158
        %v2210 = vunpack.c.l.b16 %v2159
        %v2211 = vunpack.c.h.b16 %v2159
        %v2212 = vunpack.c.l.b16 %v2160
        %v2213 = vunpack.c.h.b16 %v2160
        %v2214 = vunpack.c.l.b16 %v2161
        %v2215 = vunpack.c.h.b16 %v2161
        %v2216 = vunpack.c.l.b16 %v2162
        %v2217 = vunpack.c.h.b16 %v2162
        %v2218 = vunpack.c.l.b16 %v2163
        %v2219 = vunpack.c.h.b16 %v2163
        %v2220 = vunpack.c.l.b16 %v2164
        %v2221 = vunpack.c.h.b16 %v2164
        %v2222 = vunpack.c.l.b16 %v2165
        %v2223 = vunpack.c.h.b16 %v2165
        %v2224 = vunpack.c.l.b16 %v2166
        %v2225 = vunpack.c.h.b16 %v2166
        %v2226 = vunpack.c.l.b16 %v2167
        %v2227 = vunpack.c.h.b16 %v2167
        %v2228 = vunpack.c.l.b16 %v2168
        %v2229 = vunpack.c.h.b16 %v2168
        %v2230 = vpack.c.b16 %v2200, %v2198
        %v2231 = vpack.c.b16 %v2201, %v2199
        %v2232 = vpack.c.b16 %v2204, %v2202
        %v2233 = vpack.c.b16 %v2205, %v2203
        %v2234 = vpack.c.b16 %v2208, %v2206
        %v2235 = vpack.c.b16 %v2209, %v2207
        %v2236 = vpack.c.b16 %v2212, %v2210
        %v2237 = vpack.c.b16 %v2213, %v2211
        %v2238 = vpack.c.b16 %v2216, %v2214
        %v2239 = vpack.c.b16 %v2217, %v2215
        %v2240 = vpack.c.b16 %v2220, %v2218
        %v2241 = vpack.c.b16 %v2221, %v2219
        %v2242 = vpack.c.b16 %v2224, %v2222
        %v2243 = vpack.c.b16 %v2225, %v2223
        %v2244 = vpack.c.b16 %v2228, %v2226
        %v2245 = vpack.c.b16 %v2229, %v2227
        %2262 = vmatprep.subr.bf16.mxu0 %v2245
        %2263 = vmatpush1.bf16.msra.mxu0 %v2244
        %2264 = vmatprep.subr.bf16.mxu0 %v2243
        %2265 = vmatpush1.bf16.msra.mxu0 %v2242
        %2266 = vmatprep.subr.bf16.mxu0 %v2241
        %2267 = vmatpush1.bf16.msra.mxu0 %v2240
        %2268 = vmatprep.subr.bf16.mxu0 %v2239
        %2269 = vmatpush1.bf16.msra.mxu0 %v2238
        %2270 = vmatprep.subr.bf16.mxu0 %v2237
        %2271 = vmatpush1.bf16.msra.mxu0 %v2236
        %2272 = vmatprep.subr.bf16.mxu0 %v2235
        %2273 = vmatpush1.bf16.msra.mxu0 %v2234
        %2274 = vmatprep.subr.bf16.mxu0 %v2233
        %2275 = vmatpush1.bf16.msra.mxu0 %v2232
        %2276 = vmatprep.subr.bf16.mxu0 %v2231
        %2277 = vmatpush1.bf16.msra.mxu0 %v2230
        %2278 = vmatprep.subr.bf16.mxu0 0
        %2279 = vmatpush2.bf16.msra.mxu0 0
        %2280 = vmatprep.subr.bf16.mxu0 0
        %2281 = vmatpush2.bf16.msra.mxu0 0
        %2282 = vmatprep.subr.bf16.mxu0 0
        %2283 = vmatpush2.bf16.msra.mxu0 0
        %2284 = vmatprep.subr.bf16.mxu0 0
        %2285 = vmatpush2.bf16.msra.mxu0 0
        %2286 = vmatprep.subr.bf16.mxu0 0
        %2287 = vmatpush2.bf16.msra.mxu0 0
        %2288 = vmatprep.subr.bf16.mxu0 0
        %2289 = vmatpush2.bf16.msra.mxu0 0
        %2290 = vmatprep.subr.bf16.mxu0 0
        %2291 = vmatpush2.bf16.msra.mxu0 0
        %2292 = vmatprep.subr.bf16.mxu0 0
        %2293 = vmatpush2.bf16.msra.mxu0 0
        %2294 = vmatprep.mubr.bf16.mxu0 0
        %2295 = vmatmul.mubr.bf16.gmra.mxu0 %v2144
        %v2296 = vpop.f32.mrf.mxu0
        %v2297 = vadd.f32 %v2175, %v2296
        %v2298 = vpop.f32.mrf.mxu0
        %v2299 = vadd.f32 %v2179, %v2298
        %v2300 = vpop.f32.mrf.mxu0
        %v2301 = vadd.f32 %v2175, %v2300
        %v2302 = vpop.f32.mrf.mxu0
        %v2303 = vadd.f32 %v2179, %v2302
        %2304 = vmatprep.mubr.bf16.mxu0 0
        %2305 = vmatmul.mubr.bf16.gmra.mxu0 %v2145
        %v2306 = vpop.f32.mrf.mxu0
        %v2307 = vadd.f32 %v2175, %v2306
        %v2308 = vpop.f32.mrf.mxu0
        %v2309 = vadd.f32 %v2179, %v2308
        %v2310 = vpop.f32.mrf.mxu0
        %v2311 = vadd.f32 %v2175, %v2310
        %v2312 = vpop.f32.mrf.mxu0
        %v2313 = vadd.f32 %v2179, %v2312
        %2314 = vmatprep.mubr.bf16.mxu0 0
        %2315 = vmatmul.mubr.bf16.gmra.mxu0 %v2146
        %v2316 = vpop.f32.mrf.mxu0
        %v2317 = vadd.f32 %v2175, %v2316
        %v2318 = vpop.f32.mrf.mxu0
        %v2319 = vadd.f32 %v2179, %v2318
        %v2320 = vpop.f32.mrf.mxu0
        %v2321 = vadd.f32 %v2175, %v2320
        %v2322 = vpop.f32.mrf.mxu0
        %v2323 = vadd.f32 %v2179, %v2322
        %2324 = vmatprep.mubr.bf16.mxu0 0
        %2325 = vmatmul.mubr.bf16.gmra.mxu0 %v2147
        %v2326 = vpop.f32.mrf.mxu0
        %v2327 = vadd.f32 %v2175, %v2326
        %v2328 = vpop.f32.mrf.mxu0
        %v2329 = vadd.f32 %v2179, %v2328
        %v2330 = vpop.f32.mrf.mxu0
        %v2331 = vadd.f32 %v2175, %v2330
        %v2332 = vpop.f32.mrf.mxu0
        %v2333 = vadd.f32 %v2179, %v2332
        %2334 = vmatprep.mubr.bf16.mxu0 0
        %2335 = vmatmul.mubr.bf16.gmra.mxu0 %v2148
        %v2336 = vpop.f32.mrf.mxu0
        %v2337 = vadd.f32 %v2175, %v2336
        %v2338 = vpop.f32.mrf.mxu0
        %v2339 = vadd.f32 %v2179, %v2338
        %v2340 = vpop.f32.mrf.mxu0
        %v2341 = vadd.f32 %v2175, %v2340
        %v2342 = vpop.f32.mrf.mxu0
        %v2343 = vadd.f32 %v2179, %v2342
        %2344 = vmatprep.mubr.bf16.mxu0 0
        %2345 = vmatmul.mubr.bf16.gmra.mxu0 %v2149
        %v2346 = vpop.f32.mrf.mxu0
        %v2347 = vadd.f32 %v2175, %v2346
        %v2348 = vpop.f32.mrf.mxu0
        %v2349 = vadd.f32 %v2179, %v2348
        %v2350 = vpop.f32.mrf.mxu0
        %v2351 = vadd.f32 %v2175, %v2350
        %v2352 = vpop.f32.mrf.mxu0
        %v2353 = vadd.f32 %v2179, %v2352
        %2354 = vmatprep.mubr.bf16.mxu0 0
        %2355 = vmatmul.mubr.bf16.gmra.mxu0 %v2150
        %v2356 = vpop.f32.mrf.mxu0
        %v2357 = vadd.f32 %v2175, %v2356
        %v2358 = vpop.f32.mrf.mxu0
        %v2359 = vadd.f32 %v2179, %v2358
        %v2360 = vpop.f32.mrf.mxu0
        %v2361 = vadd.f32 %v2175, %v2360
        %v2362 = vpop.f32.mrf.mxu0
        %v2363 = vadd.f32 %v2179, %v2362
        %2364 = vmatprep.mubr.bf16.mxu0 0
        %2365 = vmatmul.mubr.bf16.gmra.mxu0 %v2151
        %v2366 = vpop.f32.mrf.mxu0
        %v2367 = vadd.f32 %v2175, %v2366
        %v2368 = vpop.f32.mrf.mxu0
        %v2369 = vadd.f32 %v2179, %v2368
        %v2370 = vpop.f32.mrf.mxu0
        %v2371 = vadd.f32 %v2175, %v2370
        %v2372 = vpop.f32.mrf.mxu0
        %v2373 = vadd.f32 %v2179, %v2372
        %2374 = vdwg.mxu0
        %v2375 = vmax.f32 %v2297, 0.0
        %v2376 = vmax.f32 %v2299, 0.0
        %v2377 = vmax.f32 %v2301, 0.0
        %v2378 = vmax.f32 %v2303, 0.0
        %v2379 = vmax.f32 %v2307, 0.0
        %v2380 = vmax.f32 %v2309, 0.0
        %v2381 = vmax.f32 %v2311, 0.0
        %v2382 = vmax.f32 %v2313, 0.0
        %v2383 = vmax.f32 %v2317, 0.0
        %v2384 = vmax.f32 %v2319, 0.0
        %v2385 = vmax.f32 %v2321, 0.0
        %v2386 = vmax.f32 %v2323, 0.0
        %v2387 = vmax.f32 %v2327, 0.0
        %v2388 = vmax.f32 %v2329, 0.0
        %v2389 = vmax.f32 %v2331, 0.0
        %v2390 = vmax.f32 %v2333, 0.0
        %v2391 = vmax.f32 %v2337, 0.0
        %v2392 = vmax.f32 %v2339, 0.0
        %v2393 = vmax.f32 %v2341, 0.0
        %v2394 = vmax.f32 %v2343, 0.0
        %v2395 = vmax.f32 %v2347, 0.0
        %v2396 = vmax.f32 %v2349, 0.0
        %v2397 = vmax.f32 %v2351, 0.0
        %v2398 = vmax.f32 %v2353, 0.0
        %v2399 = vmax.f32 %v2357, 0.0
        %v2400 = vmax.f32 %v2359, 0.0
        %v2401 = vmax.f32 %v2361, 0.0
        %v2402 = vmax.f32 %v2363, 0.0
        %v2403 = vmax.f32 %v2367, 0.0
        %v2404 = vmax.f32 %v2369, 0.0
        %v2405 = vmax.f32 %v2371, 0.0
        %v2406 = vmax.f32 %v2373, 0.0
        %v2407 = vpack.c.bf16 %v2377, %v2375
        %v2408 = vpack.c.bf16 %v2378, %v2376
        %v2409 = vpack.c.bf16 %v2381, %v2379
        %v2410 = vpack.c.bf16 %v2382, %v2380
        %v2411 = vpack.c.bf16 %v2385, %v2383
        %v2412 = vpack.c.bf16 %v2386, %v2384
        %v2413 = vpack.c.bf16 %v2389, %v2387
        %v2414 = vpack.c.bf16 %v2390, %v2388
        %v2415 = vpack.c.bf16 %v2393, %v2391
        %v2416 = vpack.c.bf16 %v2394, %v2392
        %v2417 = vpack.c.bf16 %v2397, %v2395
        %v2418 = vpack.c.bf16 %v2398, %v2396
        %v2419 = vpack.c.bf16 %v2401, %v2399
        %v2420 = vpack.c.bf16 %v2402, %v2400
        %v2421 = vpack.c.bf16 %v2405, %v2403
        %v2422 = vpack.c.bf16 %v2406, %v2404
        %s2423 = scalar_lea.vmem [#allocation3], 256
        %v2424 = vld [vmem:[%s2423] sm:$0xf]
        %v2425 = vld [vmem:[%s2423 + $0x4] sm:$0xf]
        %v2426 = vld [vmem:[%s2423 + $0x8] sm:$0xf]
        %v2427 = vld [vmem:[%s2423 + $0xc] sm:$0xf]
        %v2428 = vld [vmem:[%s2423 + $0x10] sm:$0xf]
        %v2429 = vld [vmem:[%s2423 + $0x14] sm:$0xf]
        %v2430 = vld [vmem:[%s2423 + $0x18] sm:$0xf]
        %v2431 = vld [vmem:[%s2423 + $0x1c] sm:$0xf]
        %v2432 = vld [vmem:[%s2423 + $0x20] sm:$0xf]
        %v2433 = vld [vmem:[%s2423 + $0x24] sm:$0xf]
        %v2434 = vld [vmem:[%s2423 + $0x28] sm:$0xf]
        %v2435 = vld [vmem:[%s2423 + $0x2c] sm:$0xf]
        %v2436 = vld [vmem:[%s2423 + $0x30] sm:$0xf]
        %v2437 = vld [vmem:[%s2423 + $0x34] sm:$0xf]
        %v2438 = vld [vmem:[%s2423 + $0x38] sm:$0xf]
        %v2439 = vld [vmem:[%s2423 + $0x3c] sm:$0xf]
        %v2440 = vld [vmem:[%s2423 + $0x40] sm:$0xf]
        %v2441 = vld [vmem:[%s2423 + $0x44] sm:$0xf]
        %v2442 = vld [vmem:[%s2423 + $0x48] sm:$0xf]
        %v2443 = vld [vmem:[%s2423 + $0x4c] sm:$0xf]
        %v2444 = vld [vmem:[%s2423 + $0x50] sm:$0xf]
        %v2445 = vld [vmem:[%s2423 + $0x54] sm:$0xf]
        %v2446 = vld [vmem:[%s2423 + $0x58] sm:$0xf]
        %v2447 = vld [vmem:[%s2423 + $0x5c] sm:$0xf]
        %v2448 = vld [vmem:[%s2423 + $0x60] sm:$0xf]
        %v2449 = vld [vmem:[%s2423 + $0x64] sm:$0xf]
        %v2450 = vld [vmem:[%s2423 + $0x68] sm:$0xf]
        %v2451 = vld [vmem:[%s2423 + $0x6c] sm:$0xf]
        %v2452 = vld [vmem:[%s2423 + $0x70] sm:$0xf]
        %v2453 = vld [vmem:[%s2423 + $0x74] sm:$0xf]
        %v2454 = vld [vmem:[%s2423 + $0x78] sm:$0xf]
        %v2455 = vld [vmem:[%s2423 + $0x7c] sm:$0xf]
        %v2456 = vld [vmem:[%s2152 + $0x8] sm:$0xff]
        %v2457 = vld [vmem:[%s2152 + $0x18] sm:$0xff]
        %v2458 = vld [vmem:[%s2152 + $0x28] sm:$0xff]
        %v2459 = vld [vmem:[%s2152 + $0x38] sm:$0xff]
        %v2460 = vld [vmem:[%s2152 + $0x48] sm:$0xff]
        %v2461 = vld [vmem:[%s2152 + $0x58] sm:$0xff]
        %v2462 = vld [vmem:[%s2152 + $0x68] sm:$0xff]
        %v2463 = vld [vmem:[%s2152 + $0x78] sm:$0xff]
        %v2464 = vld [vmem:[%s2152 + $0x88] sm:$0xff]
        %v2465 = vld [vmem:[%s2152 + $0x98] sm:$0xff]
        %v2466 = vld [vmem:[%s2152 + $0xa8] sm:$0xff]
        %v2467 = vld [vmem:[%s2152 + $0xb8] sm:$0xff]
        %v2468 = vld [vmem:[%s2152 + $0xc8] sm:$0xff]
        %v2469 = vld [vmem:[%s2152 + $0xd8] sm:$0xff]
        %v2470 = vld [vmem:[%s2152 + $0xe8] sm:$0xff]
        %v2471 = vld [vmem:[%s2152 + $0xf8] sm:$0xff]
        %v2472 = vld [vmem:[%s2169 + $0x2] sm:$0x3]
        %v2474 = vlaneseq
        %v2475 = vshrl.u32 %v2474, 7
        %v2476 = vsub.s32 0, %v2475
        %v2477 = vrot.slane %v2472, %v2476
        %v2478 = vlaneseq
        %v2479 = vshrl.u32 %v2478, 7
        %v2480 = vsub.s32 1, %v2479
        %v2481 = vrot.slane %v2472, %v2480
        %v2500 = vunpack.c.l.b16 %v2456
        %v2501 = vunpack.c.h.b16 %v2456
        %v2502 = vunpack.c.l.b16 %v2457
        %v2503 = vunpack.c.h.b16 %v2457
        %v2504 = vunpack.c.l.b16 %v2458
        %v2505 = vunpack.c.h.b16 %v2458
        %v2506 = vunpack.c.l.b16 %v2459
        %v2507 = vunpack.c.h.b16 %v2459
        %v2508 = vunpack.c.l.b16 %v2460
        %v2509 = vunpack.c.h.b16 %v2460
        %v2510 = vunpack.c.l.b16 %v2461
        %v2511 = vunpack.c.h.b16 %v2461
        %v2512 = vunpack.c.l.b16 %v2462
        %v2513 = vunpack.c.h.b16 %v2462
        %v2514 = vunpack.c.l.b16 %v2463
        %v2515 = vunpack.c.h.b16 %v2463
        %v2516 = vunpack.c.l.b16 %v2464
        %v2517 = vunpack.c.h.b16 %v2464
        %v2518 = vunpack.c.l.b16 %v2465
        %v2519 = vunpack.c.h.b16 %v2465
        %v2520 = vunpack.c.l.b16 %v2466
        %v2521 = vunpack.c.h.b16 %v2466
        %v2522 = vunpack.c.l.b16 %v2467
        %v2523 = vunpack.c.h.b16 %v2467
        %v2524 = vunpack.c.l.b16 %v2468
        %v2525 = vunpack.c.h.b16 %v2468
        %v2526 = vunpack.c.l.b16 %v2469
        %v2527 = vunpack.c.h.b16 %v2469
        %v2528 = vunpack.c.l.b16 %v2470
        %v2529 = vunpack.c.h.b16 %v2470
        %v2530 = vunpack.c.l.b16 %v2471
        %v2531 = vunpack.c.h.b16 %v2471
        %v2532 = vpack.c.b16 %v2502, %v2500
        %v2533 = vpack.c.b16 %v2503, %v2501
        %v2534 = vpack.c.b16 %v2506, %v2504
        %v2535 = vpack.c.b16 %v2507, %v2505
        %v2536 = vpack.c.b16 %v2510, %v2508
        %v2537 = vpack.c.b16 %v2511, %v2509
        %v2538 = vpack.c.b16 %v2514, %v2512
        %v2539 = vpack.c.b16 %v2515, %v2513
        %v2540 = vpack.c.b16 %v2518, %v2516
        %v2541 = vpack.c.b16 %v2519, %v2517
        %v2542 = vpack.c.b16 %v2522, %v2520
        %v2543 = vpack.c.b16 %v2523, %v2521
        %v2544 = vpack.c.b16 %v2526, %v2524
        %v2545 = vpack.c.b16 %v2527, %v2525
        %v2546 = vpack.c.b16 %v2530, %v2528
        %v2547 = vpack.c.b16 %v2531, %v2529
        %2564 = vmatprep.subr.bf16.mxu0 %v2547
        %2565 = vmatpush1.bf16.msra.mxu0 %v2546
        %2566 = vmatprep.subr.bf16.mxu0 %v2545
        %2567 = vmatpush1.bf16.msra.mxu0 %v2544
        %2568 = vmatprep.subr.bf16.mxu0 %v2543
        %2569 = vmatpush1.bf16.msra.mxu0 %v2542
        %2570 = vmatprep.subr.bf16.mxu0 %v2541
        %2571 = vmatpush1.bf16.msra.mxu0 %v2540
        %2572 = vmatprep.subr.bf16.mxu0 %v2539
        %2573 = vmatpush1.bf16.msra.mxu0 %v2538
        %2574 = vmatprep.subr.bf16.mxu0 %v2537
        %2575 = vmatpush1.bf16.msra.mxu0 %v2536
        %2576 = vmatprep.subr.bf16.mxu0 %v2535
        %2577 = vmatpush1.bf16.msra.mxu0 %v2534
        %2578 = vmatprep.subr.bf16.mxu0 %v2533
        %2579 = vmatpush1.bf16.msra.mxu0 %v2532
        %2580 = vmatprep.subr.bf16.mxu0 0
        %2581 = vmatpush2.bf16.msra.mxu0 0
        %2582 = vmatprep.subr.bf16.mxu0 0
        %2583 = vmatpush2.bf16.msra.mxu0 0
        %2584 = vmatprep.subr.bf16.mxu0 0
        %2585 = vmatpush2.bf16.msra.mxu0 0
        %2586 = vmatprep.subr.bf16.mxu0 0
        %2587 = vmatpush2.bf16.msra.mxu0 0
        %2588 = vmatprep.subr.bf16.mxu0 0
        %2589 = vmatpush2.bf16.msra.mxu0 0
        %2590 = vmatprep.subr.bf16.mxu0 0
        %2591 = vmatpush2.bf16.msra.mxu0 0
        %2592 = vmatprep.subr.bf16.mxu0 0
        %2593 = vmatpush2.bf16.msra.mxu0 0
        %2594 = vmatprep.subr.bf16.mxu0 0
        %2595 = vmatpush2.bf16.msra.mxu0 0
        %2596 = vmatprep.mubr.bf16.mxu0 0
        %2597 = vmatmul.mubr.bf16.gmra.mxu0 %v2144
        %v2598 = vpop.f32.mrf.mxu0
        %v2599 = vadd.f32 %v2477, %v2598
        %v2600 = vpop.f32.mrf.mxu0
        %v2601 = vadd.f32 %v2481, %v2600
        %v2602 = vpop.f32.mrf.mxu0
        %v2603 = vadd.f32 %v2477, %v2602
        %v2604 = vpop.f32.mrf.mxu0
        %v2605 = vadd.f32 %v2481, %v2604
        %2606 = vmatprep.mubr.bf16.mxu0 0
        %2607 = vmatmul.mubr.bf16.gmra.mxu0 %v2145
        %v2608 = vpop.f32.mrf.mxu0
        %v2609 = vadd.f32 %v2477, %v2608
        %v2610 = vpop.f32.mrf.mxu0
        %v2611 = vadd.f32 %v2481, %v2610
        %v2612 = vpop.f32.mrf.mxu0
        %v2613 = vadd.f32 %v2477, %v2612
        %v2614 = vpop.f32.mrf.mxu0
        %v2615 = vadd.f32 %v2481, %v2614
        %2616 = vmatprep.mubr.bf16.mxu0 0
        %2617 = vmatmul.mubr.bf16.gmra.mxu0 %v2146
        %v2618 = vpop.f32.mrf.mxu0
        %v2619 = vadd.f32 %v2477, %v2618
        %v2620 = vpop.f32.mrf.mxu0
        %v2621 = vadd.f32 %v2481, %v2620
        %v2622 = vpop.f32.mrf.mxu0
        %v2623 = vadd.f32 %v2477, %v2622
        %v2624 = vpop.f32.mrf.mxu0
        %v2625 = vadd.f32 %v2481, %v2624
        %2626 = vmatprep.mubr.bf16.mxu0 0
        %2627 = vmatmul.mubr.bf16.gmra.mxu0 %v2147
        %v2628 = vpop.f32.mrf.mxu0
        %v2629 = vadd.f32 %v2477, %v2628
        %v2630 = vpop.f32.mrf.mxu0
        %v2631 = vadd.f32 %v2481, %v2630
        %v2632 = vpop.f32.mrf.mxu0
        %v2633 = vadd.f32 %v2477, %v2632
        %v2634 = vpop.f32.mrf.mxu0
        %v2635 = vadd.f32 %v2481, %v2634
        %2636 = vmatprep.mubr.bf16.mxu0 0
        %2637 = vmatmul.mubr.bf16.gmra.mxu0 %v2148
        %v2638 = vpop.f32.mrf.mxu0
        %v2639 = vadd.f32 %v2477, %v2638
        %v2640 = vpop.f32.mrf.mxu0
        %v2641 = vadd.f32 %v2481, %v2640
        %v2642 = vpop.f32.mrf.mxu0
        %v2643 = vadd.f32 %v2477, %v2642
        %v2644 = vpop.f32.mrf.mxu0
        %v2645 = vadd.f32 %v2481, %v2644
        %2646 = vmatprep.mubr.bf16.mxu0 0
        %2647 = vmatmul.mubr.bf16.gmra.mxu0 %v2149
        %v2648 = vpop.f32.mrf.mxu0
        %v2649 = vadd.f32 %v2477, %v2648
        %v2650 = vpop.f32.mrf.mxu0
        %v2651 = vadd.f32 %v2481, %v2650
        %v2652 = vpop.f32.mrf.mxu0
        %v2653 = vadd.f32 %v2477, %v2652
        %v2654 = vpop.f32.mrf.mxu0
        %v2655 = vadd.f32 %v2481, %v2654
        %2656 = vmatprep.mubr.bf16.mxu0 0
        %2657 = vmatmul.mubr.bf16.gmra.mxu0 %v2150
        %v2658 = vpop.f32.mrf.mxu0
        %v2659 = vadd.f32 %v2477, %v2658
        %v2660 = vpop.f32.mrf.mxu0
        %v2661 = vadd.f32 %v2481, %v2660
        %v2662 = vpop.f32.mrf.mxu0
        %v2663 = vadd.f32 %v2477, %v2662
        %v2664 = vpop.f32.mrf.mxu0
        %v2665 = vadd.f32 %v2481, %v2664
        %2666 = vmatprep.mubr.bf16.mxu0 0
        %2667 = vmatmul.mubr.bf16.gmra.mxu0 %v2151
        %v2668 = vpop.f32.mrf.mxu0
        %v2669 = vadd.f32 %v2477, %v2668
        %v2670 = vpop.f32.mrf.mxu0
        %v2671 = vadd.f32 %v2481, %v2670
        %v2672 = vpop.f32.mrf.mxu0
        %v2673 = vadd.f32 %v2477, %v2672
        %v2674 = vpop.f32.mrf.mxu0
        %v2675 = vadd.f32 %v2481, %v2674
        %2676 = vdwg.mxu0
        %v2677 = vmax.f32 %v2599, 0.0
        %v2678 = vmax.f32 %v2601, 0.0
        %v2679 = vmax.f32 %v2603, 0.0
        %v2680 = vmax.f32 %v2605, 0.0
        %v2681 = vmax.f32 %v2609, 0.0
        %v2682 = vmax.f32 %v2611, 0.0
        %v2683 = vmax.f32 %v2613, 0.0
        %v2684 = vmax.f32 %v2615, 0.0
        %v2685 = vmax.f32 %v2619, 0.0
        %v2686 = vmax.f32 %v2621, 0.0
        %v2687 = vmax.f32 %v2623, 0.0
        %v2688 = vmax.f32 %v2625, 0.0
        %v2689 = vmax.f32 %v2629, 0.0
        %v2690 = vmax.f32 %v2631, 0.0
        %v2691 = vmax.f32 %v2633, 0.0
        %v2692 = vmax.f32 %v2635, 0.0
        %v2693 = vmax.f32 %v2639, 0.0
        %v2694 = vmax.f32 %v2641, 0.0
        %v2695 = vmax.f32 %v2643, 0.0
        %v2696 = vmax.f32 %v2645, 0.0
        %v2697 = vmax.f32 %v2649, 0.0
        %v2698 = vmax.f32 %v2651, 0.0
        %v2699 = vmax.f32 %v2653, 0.0
        %v2700 = vmax.f32 %v2655, 0.0
        %v2701 = vmax.f32 %v2659, 0.0
        %v2702 = vmax.f32 %v2661, 0.0
        %v2703 = vmax.f32 %v2663, 0.0
        %v2704 = vmax.f32 %v2665, 0.0
        %v2705 = vmax.f32 %v2669, 0.0
        %v2706 = vmax.f32 %v2671, 0.0
        %v2707 = vmax.f32 %v2673, 0.0
        %v2708 = vmax.f32 %v2675, 0.0
        %v2709 = vpack.c.bf16 %v2679, %v2677
        %v2710 = vpack.c.bf16 %v2680, %v2678
        %v2711 = vpack.c.bf16 %v2683, %v2681
        %v2712 = vpack.c.bf16 %v2684, %v2682
        %v2713 = vpack.c.bf16 %v2687, %v2685
        %v2714 = vpack.c.bf16 %v2688, %v2686
        %v2715 = vpack.c.bf16 %v2691, %v2689
        %v2716 = vpack.c.bf16 %v2692, %v2690
        %v2717 = vpack.c.bf16 %v2695, %v2693
        %v2718 = vpack.c.bf16 %v2696, %v2694
        %v2719 = vpack.c.bf16 %v2699, %v2697
        %v2720 = vpack.c.bf16 %v2700, %v2698
        %v2721 = vpack.c.bf16 %v2703, %v2701
        %v2722 = vpack.c.bf16 %v2704, %v2702
        %v2723 = vpack.c.bf16 %v2707, %v2705
        %v2724 = vpack.c.bf16 %v2708, %v2706
        %v2725 = vld [vmem:[%s2423 + $0x80] sm:$0xf]
        %v2726 = vld [vmem:[%s2423 + $0x84] sm:$0xf]
        %v2727 = vld [vmem:[%s2423 + $0x88] sm:$0xf]
        %v2728 = vld [vmem:[%s2423 + $0x8c] sm:$0xf]
        %v2729 = vld [vmem:[%s2423 + $0x90] sm:$0xf]
        %v2730 = vld [vmem:[%s2423 + $0x94] sm:$0xf]
        %v2731 = vld [vmem:[%s2423 + $0x98] sm:$0xf]
        %v2732 = vld [vmem:[%s2423 + $0x9c] sm:$0xf]
        %v2733 = vld [vmem:[%s2423 + $0xa0] sm:$0xf]
        %v2734 = vld [vmem:[%s2423 + $0xa4] sm:$0xf]
        %v2735 = vld [vmem:[%s2423 + $0xa8] sm:$0xf]
        %v2736 = vld [vmem:[%s2423 + $0xac] sm:$0xf]
        %v2737 = vld [vmem:[%s2423 + $0xb0] sm:$0xf]
        %v2738 = vld [vmem:[%s2423 + $0xb4] sm:$0xf]
        %v2739 = vld [vmem:[%s2423 + $0xb8] sm:$0xf]
        %v2740 = vld [vmem:[%s2423 + $0xbc] sm:$0xf]
        %v2741 = vld [vmem:[%s2423 + $0xc0] sm:$0xf]
        %v2742 = vld [vmem:[%s2423 + $0xc4] sm:$0xf]
        %v2743 = vld [vmem:[%s2423 + $0xc8] sm:$0xf]
        %v2744 = vld [vmem:[%s2423 + $0xcc] sm:$0xf]
        %v2745 = vld [vmem:[%s2423 + $0xd0] sm:$0xf]
        %v2746 = vld [vmem:[%s2423 + $0xd4] sm:$0xf]
        %v2747 = vld [vmem:[%s2423 + $0xd8] sm:$0xf]
        %v2748 = vld [vmem:[%s2423 + $0xdc] sm:$0xf]
        %v2749 = vld [vmem:[%s2423 + $0xe0] sm:$0xf]
        %v2750 = vld [vmem:[%s2423 + $0xe4] sm:$0xf]
        %v2751 = vld [vmem:[%s2423 + $0xe8] sm:$0xf]
        %v2752 = vld [vmem:[%s2423 + $0xec] sm:$0xf]
        %v2753 = vld [vmem:[%s2423 + $0xf0] sm:$0xf]
        %v2754 = vld [vmem:[%s2423 + $0xf4] sm:$0xf]
        %v2755 = vld [vmem:[%s2423 + $0xf8] sm:$0xf]
        %v2756 = vld [vmem:[%s2423 + $0xfc] sm:$0xf]
        %v2789 = vunpack.c.l.b16 %v2725
        %v2790 = vunpack.c.l.b16 %v2726
        %v2791 = vunpack.c.l.b16 %v2727
        %v2792 = vunpack.c.l.b16 %v2728
        %v2793 = vunpack.c.l.b16 %v2729
        %v2794 = vunpack.c.l.b16 %v2730
        %v2795 = vunpack.c.l.b16 %v2731
        %v2796 = vunpack.c.l.b16 %v2732
        %v2797 = vunpack.c.l.b16 %v2733
        %v2798 = vunpack.c.l.b16 %v2734
        %v2799 = vunpack.c.l.b16 %v2735
        %v2800 = vunpack.c.l.b16 %v2736
        %v2801 = vunpack.c.l.b16 %v2737
        %v2802 = vunpack.c.l.b16 %v2738
        %v2803 = vunpack.c.l.b16 %v2739
        %v2804 = vunpack.c.l.b16 %v2740
        %v2805 = vunpack.c.l.b16 %v2741
        %v2806 = vunpack.c.l.b16 %v2742
        %v2807 = vunpack.c.l.b16 %v2743
        %v2808 = vunpack.c.l.b16 %v2744
        %v2809 = vunpack.c.l.b16 %v2745
        %v2810 = vunpack.c.l.b16 %v2746
        %v2811 = vunpack.c.l.b16 %v2747
        %v2812 = vunpack.c.l.b16 %v2748
        %v2813 = vunpack.c.l.b16 %v2749
        %v2814 = vunpack.c.l.b16 %v2750
        %v2815 = vunpack.c.l.b16 %v2751
        %v2816 = vunpack.c.l.b16 %v2752
        %v2817 = vunpack.c.l.b16 %v2753
        %v2818 = vunpack.c.l.b16 %v2754
        %v2819 = vunpack.c.l.b16 %v2755
        %v2820 = vunpack.c.l.b16 %v2756
        %v2821 = vpack.c.b16 %v2790, %v2789
        %v2822 = vpack.c.b16 %v2792, %v2791
        %v2823 = vpack.c.b16 %v2794, %v2793
        %v2824 = vpack.c.b16 %v2796, %v2795
        %v2825 = vpack.c.b16 %v2798, %v2797
        %v2826 = vpack.c.b16 %v2800, %v2799
        %v2827 = vpack.c.b16 %v2802, %v2801
        %v2828 = vpack.c.b16 %v2804, %v2803
        %v2829 = vpack.c.b16 %v2806, %v2805
        %v2830 = vpack.c.b16 %v2808, %v2807
        %v2831 = vpack.c.b16 %v2810, %v2809
        %v2832 = vpack.c.b16 %v2812, %v2811
        %v2833 = vpack.c.b16 %v2814, %v2813
        %v2834 = vpack.c.b16 %v2816, %v2815
        %v2835 = vpack.c.b16 %v2818, %v2817
        %v2836 = vpack.c.b16 %v2820, %v2819
        %2853 = vmatprep.subr.bf16.mxu0 0
        %2854 = vmatpush1.bf16.msra.mxu0 %v2828
        %2855 = vmatprep.subr.bf16.mxu0 0
        %2856 = vmatpush1.bf16.msra.mxu0 %v2827
        %2857 = vmatprep.subr.bf16.mxu0 0
        %2858 = vmatpush1.bf16.msra.mxu0 %v2826
        %2859 = vmatprep.subr.bf16.mxu0 0
        %2860 = vmatpush1.bf16.msra.mxu0 %v2825
        %2861 = vmatprep.subr.bf16.mxu0 0
        %2862 = vmatpush1.bf16.msra.mxu0 %v2824
        %2863 = vmatprep.subr.bf16.mxu0 0
        %2864 = vmatpush1.bf16.msra.mxu0 %v2823
        %2865 = vmatprep.subr.bf16.mxu0 0
        %2866 = vmatpush1.bf16.msra.mxu0 %v2822
        %2867 = vmatprep.subr.bf16.mxu0 0
        %2868 = vmatpush1.bf16.msra.mxu0 %v2821
        %2869 = vmatprep.subr.bf16.mxu0 0
        %2870 = vmatpush2.bf16.msra.mxu0 %v2836
        %2871 = vmatprep.subr.bf16.mxu0 0
        %2872 = vmatpush2.bf16.msra.mxu0 %v2835
        %2873 = vmatprep.subr.bf16.mxu0 0
        %2874 = vmatpush2.bf16.msra.mxu0 %v2834
        %2875 = vmatprep.subr.bf16.mxu0 0
        %2876 = vmatpush2.bf16.msra.mxu0 %v2833
        %2877 = vmatprep.subr.bf16.mxu0 0
        %2878 = vmatpush2.bf16.msra.mxu0 %v2832
        %2879 = vmatprep.subr.bf16.mxu0 0
        %2880 = vmatpush2.bf16.msra.mxu0 %v2831
        %2881 = vmatprep.subr.bf16.mxu0 0
        %2882 = vmatpush2.bf16.msra.mxu0 %v2830
        %2883 = vmatprep.subr.bf16.mxu0 0
        %2884 = vmatpush2.bf16.msra.mxu0 %v2829
        %2885 = vmatprep.mubr.bf16.mxu0 %v2710
        %2886 = vmatmul.mubr.bf16.gmra.mxu0 %v2709
        %v2887 = vpop.f32.mrf.mxu0
        %v2888 = vadd.f32 0.0, %v2887
        %v2889 = vpop.f32.mrf.mxu0
        %v2890 = vpop.f32.mrf.mxu0
        %v2891 = vadd.f32 0.0, %v2890
        %v2892 = vpop.f32.mrf.mxu0
        %2893 = vmatprep.mubr.bf16.mxu0 %v2712
        %2894 = vmatmul.mubr.bf16.gmra.mxu0 %v2711
        %v2895 = vpop.f32.mrf.mxu0
        %v2896 = vadd.f32 0.0, %v2895
        %v2897 = vpop.f32.mrf.mxu0
        %v2898 = vpop.f32.mrf.mxu0
        %v2899 = vadd.f32 0.0, %v2898
        %v2900 = vpop.f32.mrf.mxu0
        %2901 = vmatprep.mubr.bf16.mxu0 %v2714
        %2902 = vmatmul.mubr.bf16.gmra.mxu0 %v2713
        %v2903 = vpop.f32.mrf.mxu0
        %v2904 = vadd.f32 0.0, %v2903
        %v2905 = vpop.f32.mrf.mxu0
        %v2906 = vpop.f32.mrf.mxu0
        %v2907 = vadd.f32 0.0, %v2906
        %v2908 = vpop.f32.mrf.mxu0
        %2909 = vmatprep.mubr.bf16.mxu0 %v2716
        %2910 = vmatmul.mubr.bf16.gmra.mxu0 %v2715
        %v2911 = vpop.f32.mrf.mxu0
        %v2912 = vadd.f32 0.0, %v2911
        %v2913 = vpop.f32.mrf.mxu0
        %v2914 = vpop.f32.mrf.mxu0
        %v2915 = vadd.f32 0.0, %v2914
        %v2916 = vpop.f32.mrf.mxu0
        %2917 = vmatprep.mubr.bf16.mxu0 %v2718
        %2918 = vmatmul.mubr.bf16.gmra.mxu0 %v2717
        %v2919 = vpop.f32.mrf.mxu0
        %v2920 = vadd.f32 0.0, %v2919
        %v2921 = vpop.f32.mrf.mxu0
        %v2922 = vpop.f32.mrf.mxu0
        %v2923 = vadd.f32 0.0, %v2922
        %v2924 = vpop.f32.mrf.mxu0
        %2925 = vmatprep.mubr.bf16.mxu0 %v2720
        %2926 = vmatmul.mubr.bf16.gmra.mxu0 %v2719
        %v2927 = vpop.f32.mrf.mxu0
        %v2928 = vadd.f32 0.0, %v2927
        %v2929 = vpop.f32.mrf.mxu0
        %v2930 = vpop.f32.mrf.mxu0
        %v2931 = vadd.f32 0.0, %v2930
        %v2932 = vpop.f32.mrf.mxu0
        %2933 = vmatprep.mubr.bf16.mxu0 %v2722
        %2934 = vmatmul.mubr.bf16.gmra.mxu0 %v2721
        %v2935 = vpop.f32.mrf.mxu0
        %v2936 = vadd.f32 0.0, %v2935
        %v2937 = vpop.f32.mrf.mxu0
        %v2938 = vpop.f32.mrf.mxu0
        %v2939 = vadd.f32 0.0, %v2938
        %v2940 = vpop.f32.mrf.mxu0
        %2941 = vmatprep.mubr.bf16.mxu0 %v2724
        %2942 = vmatmul.mubr.bf16.gmra.mxu0 %v2723
        %v2943 = vpop.f32.mrf.mxu0
        %v2944 = vadd.f32 0.0, %v2943
        %v2945 = vpop.f32.mrf.mxu0
        %v2946 = vpop.f32.mrf.mxu0
        %v2947 = vadd.f32 0.0, %v2946
        %v2948 = vpop.f32.mrf.mxu0
        %2949 = vdwg.mxu0
        %v2982 = vunpack.c.l.b16 %v2424
        %v2983 = vunpack.c.l.b16 %v2425
        %v2984 = vunpack.c.l.b16 %v2426
        %v2985 = vunpack.c.l.b16 %v2427
        %v2986 = vunpack.c.l.b16 %v2428
        %v2987 = vunpack.c.l.b16 %v2429
        %v2988 = vunpack.c.l.b16 %v2430
        %v2989 = vunpack.c.l.b16 %v2431
        %v2990 = vunpack.c.l.b16 %v2432
        %v2991 = vunpack.c.l.b16 %v2433
        %v2992 = vunpack.c.l.b16 %v2434
        %v2993 = vunpack.c.l.b16 %v2435
        %v2994 = vunpack.c.l.b16 %v2436
        %v2995 = vunpack.c.l.b16 %v2437
        %v2996 = vunpack.c.l.b16 %v2438
        %v2997 = vunpack.c.l.b16 %v2439
        %v2998 = vunpack.c.l.b16 %v2440
        %v2999 = vunpack.c.l.b16 %v2441
        %v3000 = vunpack.c.l.b16 %v2442
        %v3001 = vunpack.c.l.b16 %v2443
        %v3002 = vunpack.c.l.b16 %v2444
        %v3003 = vunpack.c.l.b16 %v2445
        %v3004 = vunpack.c.l.b16 %v2446
        %v3005 = vunpack.c.l.b16 %v2447
        %v3006 = vunpack.c.l.b16 %v2448
        %v3007 = vunpack.c.l.b16 %v2449
        %v3008 = vunpack.c.l.b16 %v2450
        %v3009 = vunpack.c.l.b16 %v2451
        %v3010 = vunpack.c.l.b16 %v2452
        %v3011 = vunpack.c.l.b16 %v2453
        %v3012 = vunpack.c.l.b16 %v2454
        %v3013 = vunpack.c.l.b16 %v2455
        %v3014 = vpack.c.b16 %v2983, %v2982
        %v3015 = vpack.c.b16 %v2985, %v2984
        %v3016 = vpack.c.b16 %v2987, %v2986
        %v3017 = vpack.c.b16 %v2989, %v2988
        %v3018 = vpack.c.b16 %v2991, %v2990
        %v3019 = vpack.c.b16 %v2993, %v2992
        %v3020 = vpack.c.b16 %v2995, %v2994
        %v3021 = vpack.c.b16 %v2997, %v2996
        %v3022 = vpack.c.b16 %v2999, %v2998
        %v3023 = vpack.c.b16 %v3001, %v3000
        %v3024 = vpack.c.b16 %v3003, %v3002
        %v3025 = vpack.c.b16 %v3005, %v3004
        %v3026 = vpack.c.b16 %v3007, %v3006
        %v3027 = vpack.c.b16 %v3009, %v3008
        %v3028 = vpack.c.b16 %v3011, %v3010
        %v3029 = vpack.c.b16 %v3013, %v3012
        %3046 = vmatprep.subr.bf16.mxu0 0
        %3047 = vmatpush1.bf16.msra.mxu0 %v3021
        %3048 = vmatprep.subr.bf16.mxu0 0
        %3049 = vmatpush1.bf16.msra.mxu0 %v3020
        %3050 = vmatprep.subr.bf16.mxu0 0
        %3051 = vmatpush1.bf16.msra.mxu0 %v3019
        %3052 = vmatprep.subr.bf16.mxu0 0
        %3053 = vmatpush1.bf16.msra.mxu0 %v3018
        %3054 = vmatprep.subr.bf16.mxu0 0
        %3055 = vmatpush1.bf16.msra.mxu0 %v3017
        %3056 = vmatprep.subr.bf16.mxu0 0
        %3057 = vmatpush1.bf16.msra.mxu0 %v3016
        %3058 = vmatprep.subr.bf16.mxu0 0
        %3059 = vmatpush1.bf16.msra.mxu0 %v3015
        %3060 = vmatprep.subr.bf16.mxu0 0
        %3061 = vmatpush1.bf16.msra.mxu0 %v3014
        %3062 = vmatprep.subr.bf16.mxu0 0
        %3063 = vmatpush2.bf16.msra.mxu0 %v3029
        %3064 = vmatprep.subr.bf16.mxu0 0
        %3065 = vmatpush2.bf16.msra.mxu0 %v3028
        %3066 = vmatprep.subr.bf16.mxu0 0
        %3067 = vmatpush2.bf16.msra.mxu0 %v3027
        %3068 = vmatprep.subr.bf16.mxu0 0
        %3069 = vmatpush2.bf16.msra.mxu0 %v3026
        %3070 = vmatprep.subr.bf16.mxu0 0
        %3071 = vmatpush2.bf16.msra.mxu0 %v3025
        %3072 = vmatprep.subr.bf16.mxu0 0
        %3073 = vmatpush2.bf16.msra.mxu0 %v3024
        %3074 = vmatprep.subr.bf16.mxu0 0
        %3075 = vmatpush2.bf16.msra.mxu0 %v3023
        %3076 = vmatprep.subr.bf16.mxu0 0
        %3077 = vmatpush2.bf16.msra.mxu0 %v3022
        %3078 = vmatprep.mubr.bf16.mxu0 %v2408
        %3079 = vmatmul.mubr.bf16.gmra.mxu0 %v2407
        %v3080 = vpop.f32.mrf.mxu0
        %v3081 = vadd.f32 %v2888, %v3080
        %v3082 = vpop.f32.mrf.mxu0
        %v3083 = vpop.f32.mrf.mxu0
        %v3084 = vadd.f32 %v2891, %v3083
        %v3085 = vpop.f32.mrf.mxu0
        %3086 = vmatprep.mubr.bf16.mxu0 %v2410
        %3087 = vmatmul.mubr.bf16.gmra.mxu0 %v2409
        %v3088 = vpop.f32.mrf.mxu0
        %v3089 = vadd.f32 %v2896, %v3088
        %v3090 = vpop.f32.mrf.mxu0
        %v3091 = vpop.f32.mrf.mxu0
        %v3092 = vadd.f32 %v2899, %v3091
        %v3093 = vpop.f32.mrf.mxu0
        %3094 = vmatprep.mubr.bf16.mxu0 %v2412
        %3095 = vmatmul.mubr.bf16.gmra.mxu0 %v2411
        %v3096 = vpop.f32.mrf.mxu0
        %v3097 = vadd.f32 %v2904, %v3096
        %v3098 = vpop.f32.mrf.mxu0
        %v3099 = vpop.f32.mrf.mxu0
        %v3100 = vadd.f32 %v2907, %v3099
        %v3101 = vpop.f32.mrf.mxu0
        %3102 = vmatprep.mubr.bf16.mxu0 %v2414
        %3103 = vmatmul.mubr.bf16.gmra.mxu0 %v2413
        %v3104 = vpop.f32.mrf.mxu0
        %v3105 = vadd.f32 %v2912, %v3104
        %v3106 = vpop.f32.mrf.mxu0
        %v3107 = vpop.f32.mrf.mxu0
        %v3108 = vadd.f32 %v2915, %v3107
        %v3109 = vpop.f32.mrf.mxu0
        %3110 = vmatprep.mubr.bf16.mxu0 %v2416
        %3111 = vmatmul.mubr.bf16.gmra.mxu0 %v2415
        %v3112 = vpop.f32.mrf.mxu0
        %v3113 = vadd.f32 %v2920, %v3112
        %v3114 = vpop.f32.mrf.mxu0
        %v3115 = vpop.f32.mrf.mxu0
        %v3116 = vadd.f32 %v2923, %v3115
        %v3117 = vpop.f32.mrf.mxu0
        %3118 = vmatprep.mubr.bf16.mxu0 %v2418
        %3119 = vmatmul.mubr.bf16.gmra.mxu0 %v2417
        %v3120 = vpop.f32.mrf.mxu0
        %v3121 = vadd.f32 %v2928, %v3120
        %v3122 = vpop.f32.mrf.mxu0
        %v3123 = vpop.f32.mrf.mxu0
        %v3124 = vadd.f32 %v2931, %v3123
        %v3125 = vpop.f32.mrf.mxu0
        %3126 = vmatprep.mubr.bf16.mxu0 %v2420
        %3127 = vmatmul.mubr.bf16.gmra.mxu0 %v2419
        %v3128 = vpop.f32.mrf.mxu0
        %v3129 = vadd.f32 %v2936, %v3128
        %v3130 = vpop.f32.mrf.mxu0
        %v3131 = vpop.f32.mrf.mxu0
        %v3132 = vadd.f32 %v2939, %v3131
        %v3133 = vpop.f32.mrf.mxu0
        %3134 = vmatprep.mubr.bf16.mxu0 %v2422
        %3135 = vmatmul.mubr.bf16.gmra.mxu0 %v2421
        %v3136 = vpop.f32.mrf.mxu0
        %v3137 = vadd.f32 %v2944, %v3136
        %v3138 = vpop.f32.mrf.mxu0
        %v3139 = vpop.f32.mrf.mxu0
        %v3140 = vadd.f32 %v2947, %v3139
        %v3141 = vpop.f32.mrf.mxu0
        %3142 = vdwg.mxu0
        %s3143 = scalar_lea.vmem %s8, 1
        %v3144 = vld [vmem:[%s3143] sm:$0x1]
        %v3146 = vlaneseq
        %v3147 = vshrl.u32 %v3146, 7
        %v3148 = vsub.s32 0, %v3147
        %v3149 = vrot.slane %v3144, %v3148
        %v3151 = vadd.f32 %v3081, %v3149
        %v3152 = vadd.f32 %v3084, %v3149
        %v3153 = vadd.f32 %v3089, %v3149
        %v3154 = vadd.f32 %v3092, %v3149
        %v3155 = vadd.f32 %v3097, %v3149
        %v3156 = vadd.f32 %v3100, %v3149
        %v3157 = vadd.f32 %v3105, %v3149
        %v3158 = vadd.f32 %v3108, %v3149
        %v3159 = vadd.f32 %v3113, %v3149
        %v3160 = vadd.f32 %v3116, %v3149
        %v3161 = vadd.f32 %v3121, %v3149
        %v3162 = vadd.f32 %v3124, %v3149
        %v3163 = vadd.f32 %v3129, %v3149
        %v3164 = vadd.f32 %v3132, %v3149
        %v3165 = vadd.f32 %v3137, %v3149
        %v3166 = vadd.f32 %v3140, %v3149
        %v3167 = vadd.f32 %v3151, %v1904
        %v3168 = vadd.f32 %v3152, %v1905
        %v3169 = vadd.f32 %v3153, %v1906
        %v3170 = vadd.f32 %v3154, %v1907
        %v3171 = vadd.f32 %v3155, %v1908
        %v3172 = vadd.f32 %v3156, %v1909
        %v3173 = vadd.f32 %v3157, %v1910
        %v3174 = vadd.f32 %v3158, %v1911
        %v3175 = vadd.f32 %v3159, %v1912
        %v3176 = vadd.f32 %v3160, %v1913
        %v3177 = vadd.f32 %v3161, %v1914
        %v3178 = vadd.f32 %v3162, %v1915
        %v3179 = vadd.f32 %v3163, %v1916
        %v3180 = vadd.f32 %v3164, %v1917
        %v3181 = vadd.f32 %v3165, %v1918
        %v3182 = vadd.f32 %v3166, %v1919
        %3183 = vst [vmem:[#allocation2] sm:$0xff] %v3167
        %3184 = vst [vmem:[#allocation2 + $0x8] sm:$0xff] %v3168
        %3185 = vst [vmem:[#allocation2 + $0x10] sm:$0xff] %v3169
        %3186 = vst [vmem:[#allocation2 + $0x18] sm:$0xff] %v3170
        %3187 = vst [vmem:[#allocation2 + $0x20] sm:$0xff] %v3171
        %3188 = vst [vmem:[#allocation2 + $0x28] sm:$0xff] %v3172
        %3189 = vst [vmem:[#allocation2 + $0x30] sm:$0xff] %v3173
        %3190 = vst [vmem:[#allocation2 + $0x38] sm:$0xff] %v3174
        %3191 = vst [vmem:[#allocation2 + $0x40] sm:$0xff] %v3175
        %3192 = vst [vmem:[#allocation2 + $0x48] sm:$0xff] %v3176
        %3193 = vst [vmem:[#allocation2 + $0x50] sm:$0xff] %v3177
        %3194 = vst [vmem:[#allocation2 + $0x58] sm:$0xff] %v3178
        %3195 = vst [vmem:[#allocation2 + $0x60] sm:$0xff] %v3179
        %3196 = vst [vmem:[#allocation2 + $0x68] sm:$0xff] %v3180
        %3197 = vst [vmem:[#allocation2 + $0x70] sm:$0xff] %v3181
        %3198 = vst [vmem:[#allocation2 + $0x78] sm:$0xff] %v3182
        %v3199 = vld [vmem:[#allocation2] sm:$0xff]
        %v3200 = vld [vmem:[#allocation2 + $0x8] sm:$0xff]
        %v3201 = vld [vmem:[#allocation2 + $0x10] sm:$0xff]
        %v3202 = vld [vmem:[#allocation2 + $0x18] sm:$0xff]
        %v3203 = vld [vmem:[#allocation2 + $0x20] sm:$0xff]
        %v3204 = vld [vmem:[#allocation2 + $0x28] sm:$0xff]
        %v3205 = vld [vmem:[#allocation2 + $0x30] sm:$0xff]
        %v3206 = vld [vmem:[#allocation2 + $0x38] sm:$0xff]
        %v3207 = vld [vmem:[#allocation2 + $0x40] sm:$0xff]
        %v3208 = vld [vmem:[#allocation2 + $0x48] sm:$0xff]
        %v3209 = vld [vmem:[#allocation2 + $0x50] sm:$0xff]
        %v3210 = vld [vmem:[#allocation2 + $0x58] sm:$0xff]
        %v3211 = vld [vmem:[#allocation2 + $0x60] sm:$0xff]
        %v3212 = vld [vmem:[#allocation2 + $0x68] sm:$0xff]
        %v3213 = vld [vmem:[#allocation2 + $0x70] sm:$0xff]
        %v3214 = vld [vmem:[#allocation2 + $0x78] sm:$0xff]
        %3215 = vadd.xlane.f32.xlu0 %v3199
        %v3216 = vpop.xlane.xlu0 %3215
        %3217 = vadd.xlane.f32.xlu0 %v3200
        %v3218 = vpop.xlane.xlu0 %3217
        %3219 = vadd.xlane.f32.xlu0 %v3201
        %v3220 = vpop.xlane.xlu0 %3219
        %3221 = vadd.xlane.f32.xlu0 %v3202
        %v3222 = vpop.xlane.xlu0 %3221
        %3223 = vadd.xlane.f32.xlu0 %v3203
        %v3224 = vpop.xlane.xlu0 %3223
        %3225 = vadd.xlane.f32.xlu0 %v3204
        %v3226 = vpop.xlane.xlu0 %3225
        %3227 = vadd.xlane.f32.xlu0 %v3205
        %v3228 = vpop.xlane.xlu0 %3227
        %3229 = vadd.xlane.f32.xlu0 %v3206
        %v3230 = vpop.xlane.xlu0 %3229
        %3231 = vadd.xlane.f32.xlu0 %v3207
        %v3232 = vpop.xlane.xlu0 %3231
        %3233 = vadd.xlane.f32.xlu0 %v3208
        %v3234 = vpop.xlane.xlu0 %3233
        %3235 = vadd.xlane.f32.xlu0 %v3209
        %v3236 = vpop.xlane.xlu0 %3235
        %3237 = vadd.xlane.f32.xlu0 %v3210
        %v3238 = vpop.xlane.xlu0 %3237
        %3239 = vadd.xlane.f32.xlu0 %v3211
        %v3240 = vpop.xlane.xlu0 %3239
        %3241 = vadd.xlane.f32.xlu0 %v3212
        %v3242 = vpop.xlane.xlu0 %3241
        %3243 = vadd.xlane.f32.xlu0 %v3213
        %v3244 = vpop.xlane.xlu0 %3243
        %3245 = vadd.xlane.f32.xlu0 %v3214
        %v3246 = vpop.xlane.xlu0 %3245
        %v3247 = vmul.f32 %v3216, %v662
        %v3248 = vmul.f32 %v3218, %v662
        %v3249 = vmul.f32 %v3220, %v662
        %v3250 = vmul.f32 %v3222, %v662
        %v3251 = vmul.f32 %v3224, %v662
        %v3252 = vmul.f32 %v3226, %v662
        %v3253 = vmul.f32 %v3228, %v662
        %v3254 = vmul.f32 %v3230, %v662
        %v3255 = vmul.f32 %v3232, %v662
        %v3256 = vmul.f32 %v3234, %v662
        %v3257 = vmul.f32 %v3236, %v662
        %v3258 = vmul.f32 %v3238, %v662
        %v3259 = vmul.f32 %v3240, %v662
        %v3260 = vmul.f32 %v3242, %v662
        %v3261 = vmul.f32 %v3244, %v662
        %v3262 = vmul.f32 %v3246, %v662
        %v3263 = vsub.f32 %v3199, %v3247
        %v3264 = vsub.f32 %v3200, %v3248
        %v3265 = vsub.f32 %v3201, %v3249
        %v3266 = vsub.f32 %v3202, %v3250
        %v3267 = vsub.f32 %v3203, %v3251
        %v3268 = vsub.f32 %v3204, %v3252
        %v3269 = vsub.f32 %v3205, %v3253
        %v3270 = vsub.f32 %v3206, %v3254
        %v3271 = vsub.f32 %v3207, %v3255
        %v3272 = vsub.f32 %v3208, %v3256
        %v3273 = vsub.f32 %v3209, %v3257
        %v3274 = vsub.f32 %v3210, %v3258
        %v3275 = vsub.f32 %v3211, %v3259
        %v3276 = vsub.f32 %v3212, %v3260
        %v3277 = vsub.f32 %v3213, %v3261
        %v3278 = vsub.f32 %v3214, %v3262
        %v3279 = vmul.f32 %v3263, %v3263
        %v3280 = vmul.f32 %v3264, %v3264
        %v3281 = vmul.f32 %v3265, %v3265
        %v3282 = vmul.f32 %v3266, %v3266
        %v3283 = vmul.f32 %v3267, %v3267
        %v3284 = vmul.f32 %v3268, %v3268
        %v3285 = vmul.f32 %v3269, %v3269
        %v3286 = vmul.f32 %v3270, %v3270
        %v3287 = vmul.f32 %v3271, %v3271
        %v3288 = vmul.f32 %v3272, %v3272
        %v3289 = vmul.f32 %v3273, %v3273
        %v3290 = vmul.f32 %v3274, %v3274
        %v3291 = vmul.f32 %v3275, %v3275
        %v3292 = vmul.f32 %v3276, %v3276
        %v3293 = vmul.f32 %v3277, %v3277
        %v3294 = vmul.f32 %v3278, %v3278
        %3295 = vadd.xlane.f32.xlu0 %v3279
        %v3296 = vpop.xlane.xlu0 %3295
        %3297 = vadd.xlane.f32.xlu0 %v3280
        %v3298 = vpop.xlane.xlu0 %3297
        %3299 = vadd.xlane.f32.xlu0 %v3281
        %v3300 = vpop.xlane.xlu0 %3299
        %3301 = vadd.xlane.f32.xlu0 %v3282
        %v3302 = vpop.xlane.xlu0 %3301
        %3303 = vadd.xlane.f32.xlu0 %v3283
        %v3304 = vpop.xlane.xlu0 %3303
        %3305 = vadd.xlane.f32.xlu0 %v3284
        %v3306 = vpop.xlane.xlu0 %3305
        %3307 = vadd.xlane.f32.xlu0 %v3285
        %v3308 = vpop.xlane.xlu0 %3307
        %3309 = vadd.xlane.f32.xlu0 %v3286
        %v3310 = vpop.xlane.xlu0 %3309
        %3311 = vadd.xlane.f32.xlu0 %v3287
        %v3312 = vpop.xlane.xlu0 %3311
        %3313 = vadd.xlane.f32.xlu0 %v3288
        %v3314 = vpop.xlane.xlu0 %3313
        %3315 = vadd.xlane.f32.xlu0 %v3289
        %v3316 = vpop.xlane.xlu0 %3315
        %3317 = vadd.xlane.f32.xlu0 %v3290
        %v3318 = vpop.xlane.xlu0 %3317
        %3319 = vadd.xlane.f32.xlu0 %v3291
        %v3320 = vpop.xlane.xlu0 %3319
        %3321 = vadd.xlane.f32.xlu0 %v3292
        %v3322 = vpop.xlane.xlu0 %3321
        %3323 = vadd.xlane.f32.xlu0 %v3293
        %v3324 = vpop.xlane.xlu0 %3323
        %3325 = vadd.xlane.f32.xlu0 %v3294
        %v3326 = vpop.xlane.xlu0 %3325
        %v3327 = vmul.f32 %v3296, %v662
        %v3328 = vmul.f32 %v3298, %v662
        %v3329 = vmul.f32 %v3300, %v662
        %v3330 = vmul.f32 %v3302, %v662
        %v3331 = vmul.f32 %v3304, %v662
        %v3332 = vmul.f32 %v3306, %v662
        %v3333 = vmul.f32 %v3308, %v662
        %v3334 = vmul.f32 %v3310, %v662
        %v3335 = vmul.f32 %v3312, %v662
        %v3336 = vmul.f32 %v3314, %v662
        %v3337 = vmul.f32 %v3316, %v662
        %v3338 = vmul.f32 %v3318, %v662
        %v3339 = vmul.f32 %v3320, %v662
        %v3340 = vmul.f32 %v3322, %v662
        %v3341 = vmul.f32 %v3324, %v662
        %v3342 = vmul.f32 %v3326, %v662
        %v3343 = vadd.f32 %v3327, 1e-05
        %v3344 = vadd.f32 %v3328, 1e-05
        %v3345 = vadd.f32 %v3329, 1e-05
        %v3346 = vadd.f32 %v3330, 1e-05
        %v3347 = vadd.f32 %v3331, 1e-05
        %v3348 = vadd.f32 %v3332, 1e-05
        %v3349 = vadd.f32 %v3333, 1e-05
        %v3350 = vadd.f32 %v3334, 1e-05
        %v3351 = vadd.f32 %v3335, 1e-05
        %v3352 = vadd.f32 %v3336, 1e-05
        %v3353 = vadd.f32 %v3337, 1e-05
        %v3354 = vadd.f32 %v3338, 1e-05
        %v3355 = vadd.f32 %v3339, 1e-05
        %v3356 = vadd.f32 %v3340, 1e-05
        %v3357 = vadd.f32 %v3341, 1e-05
        %v3358 = vadd.f32 %v3342, 1e-05
        %v3359 = vrsqrt.pop %v3343
        %v3360 = vrsqrt.pop %v3344
        %v3361 = vrsqrt.pop %v3345
        %v3362 = vrsqrt.pop %v3346
        %v3363 = vrsqrt.pop %v3347
        %v3364 = vrsqrt.pop %v3348
        %v3365 = vrsqrt.pop %v3349
        %v3366 = vrsqrt.pop %v3350
        %v3367 = vrsqrt.pop %v3351
        %v3368 = vrsqrt.pop %v3352
        %v3369 = vrsqrt.pop %v3353
        %v3370 = vrsqrt.pop %v3354
        %v3371 = vrsqrt.pop %v3355
        %v3372 = vrsqrt.pop %v3356
        %v3373 = vrsqrt.pop %v3357
        %v3374 = vrsqrt.pop %v3358
        %v3375 = vmul.f32 %v3263, %v3359
        %v3376 = vmul.f32 %v3264, %v3360
        %v3377 = vmul.f32 %v3265, %v3361
        %v3378 = vmul.f32 %v3266, %v3362
        %v3379 = vmul.f32 %v3267, %v3363
        %v3380 = vmul.f32 %v3268, %v3364
        %v3381 = vmul.f32 %v3269, %v3365
        %v3382 = vmul.f32 %v3270, %v3366
        %v3383 = vmul.f32 %v3271, %v3367
        %v3384 = vmul.f32 %v3272, %v3368
        %v3385 = vmul.f32 %v3273, %v3369
        %v3386 = vmul.f32 %v3274, %v3370
        %v3387 = vmul.f32 %v3275, %v3371
        %v3388 = vmul.f32 %v3276, %v3372
        %v3389 = vmul.f32 %v3277, %v3373
        %v3390 = vmul.f32 %v3278, %v3374
        %s3391 = scalar_lea.vmem %s3, 2
        %v3392 = vld [vmem:[%s3391] sm:$0x1]
        %v3394 = vlaneseq
        %v3395 = vshrl.u32 %v3394, 7
        %v3396 = vsub.s32 0, %v3395
        %v3397 = vrot.slane %v3392, %v3396
        %v3399 = vmul.f32 %v3375, %v3397
        %v3400 = vmul.f32 %v3376, %v3397
        %v3401 = vmul.f32 %v3377, %v3397
        %v3402 = vmul.f32 %v3378, %v3397
        %v3403 = vmul.f32 %v3379, %v3397
        %v3404 = vmul.f32 %v3380, %v3397
        %v3405 = vmul.f32 %v3381, %v3397
        %v3406 = vmul.f32 %v3382, %v3397
        %v3407 = vmul.f32 %v3383, %v3397
        %v3408 = vmul.f32 %v3384, %v3397
        %v3409 = vmul.f32 %v3385, %v3397
        %v3410 = vmul.f32 %v3386, %v3397
        %v3411 = vmul.f32 %v3387, %v3397
        %v3412 = vmul.f32 %v3388, %v3397
        %v3413 = vmul.f32 %v3389, %v3397
        %v3414 = vmul.f32 %v3390, %v3397
        %s3415 = scalar_lea.vmem %s4, 2
        %v3416 = vld [vmem:[%s3415] sm:$0x1]
        %v3418 = vlaneseq
        %v3419 = vshrl.u32 %v3418, 7
        %v3420 = vsub.s32 0, %v3419
        %v3421 = vrot.slane %v3416, %v3420
        %v3423 = vadd.f32 %v3399, %v3421
        %v3424 = vadd.f32 %v3400, %v3421
        %v3425 = vadd.f32 %v3401, %v3421
        %v3426 = vadd.f32 %v3402, %v3421
        %v3427 = vadd.f32 %v3403, %v3421
        %v3428 = vadd.f32 %v3404, %v3421
        %v3429 = vadd.f32 %v3405, %v3421
        %v3430 = vadd.f32 %v3406, %v3421
        %v3431 = vadd.f32 %v3407, %v3421
        %v3432 = vadd.f32 %v3408, %v3421
        %v3433 = vadd.f32 %v3409, %v3421
        %v3434 = vadd.f32 %v3410, %v3421
        %v3435 = vadd.f32 %v3411, %v3421
        %v3436 = vadd.f32 %v3412, %v3421
        %v3437 = vadd.f32 %v3413, %v3421
        %v3438 = vadd.f32 %v3414, %v3421
        %v3439 = vpack.c.bf16 %v3424, %v3423
        %v3440 = vpack.c.bf16 %v3426, %v3425
        %v3441 = vpack.c.bf16 %v3428, %v3427
        %v3442 = vpack.c.bf16 %v3430, %v3429
        %v3443 = vpack.c.bf16 %v3432, %v3431
        %v3444 = vpack.c.bf16 %v3434, %v3433
        %v3445 = vpack.c.bf16 %v3436, %v3435
        %v3446 = vpack.c.bf16 %v3438, %v3437
        %s3447 = scalar_lea.vmem %s5, 512
        %v3448 = vld [vmem:[%s3447] sm:$0xff]
        %v3449 = vld [vmem:[%s3447 + $0x10] sm:$0xff]
        %v3450 = vld [vmem:[%s3447 + $0x20] sm:$0xff]
        %v3451 = vld [vmem:[%s3447 + $0x30] sm:$0xff]
        %v3452 = vld [vmem:[%s3447 + $0x40] sm:$0xff]
        %v3453 = vld [vmem:[%s3447 + $0x50] sm:$0xff]
        %v3454 = vld [vmem:[%s3447 + $0x60] sm:$0xff]
        %v3455 = vld [vmem:[%s3447 + $0x70] sm:$0xff]
        %v3456 = vld [vmem:[%s3447 + $0x80] sm:$0xff]
        %v3457 = vld [vmem:[%s3447 + $0x90] sm:$0xff]
        %v3458 = vld [vmem:[%s3447 + $0xa0] sm:$0xff]
        %v3459 = vld [vmem:[%s3447 + $0xb0] sm:$0xff]
        %v3460 = vld [vmem:[%s3447 + $0xc0] sm:$0xff]
        %v3461 = vld [vmem:[%s3447 + $0xd0] sm:$0xff]
        %v3462 = vld [vmem:[%s3447 + $0xe0] sm:$0xff]
        %v3463 = vld [vmem:[%s3447 + $0xf0] sm:$0xff]
        %s3464 = scalar_lea.vmem %s6, 8
        %v3465 = vld [vmem:[%s3464] sm:$0x3]
        %v3467 = vlaneseq
        %v3468 = vshrl.u32 %v3467, 7
        %v3469 = vsub.s32 0, %v3468
        %v3470 = vrot.slane %v3465, %v3469
        %v3471 = vlaneseq
        %v3472 = vshrl.u32 %v3471, 7
        %v3473 = vsub.s32 1, %v3472
        %v3474 = vrot.slane %v3465, %v3473
        %v3493 = vunpack.c.l.b16 %v3448
        %v3494 = vunpack.c.h.b16 %v3448
        %v3495 = vunpack.c.l.b16 %v3449
        %v3496 = vunpack.c.h.b16 %v3449
        %v3497 = vunpack.c.l.b16 %v3450
        %v3498 = vunpack.c.h.b16 %v3450
        %v3499 = vunpack.c.l.b16 %v3451
        %v3500 = vunpack.c.h.b16 %v3451
        %v3501 = vunpack.c.l.b16 %v3452
        %v3502 = vunpack.c.h.b16 %v3452
        %v3503 = vunpack.c.l.b16 %v3453
        %v3504 = vunpack.c.h.b16 %v3453
        %v3505 = vunpack.c.l.b16 %v3454
        %v3506 = vunpack.c.h.b16 %v3454
        %v3507 = vunpack.c.l.b16 %v3455
        %v3508 = vunpack.c.h.b16 %v3455
        %v3509 = vunpack.c.l.b16 %v3456
        %v3510 = vunpack.c.h.b16 %v3456
        %v3511 = vunpack.c.l.b16 %v3457
        %v3512 = vunpack.c.h.b16 %v3457
        %v3513 = vunpack.c.l.b16 %v3458
        %v3514 = vunpack.c.h.b16 %v3458
        %v3515 = vunpack.c.l.b16 %v3459
        %v3516 = vunpack.c.h.b16 %v3459
        %v3517 = vunpack.c.l.b16 %v3460
        %v3518 = vunpack.c.h.b16 %v3460
        %v3519 = vunpack.c.l.b16 %v3461
        %v3520 = vunpack.c.h.b16 %v3461
        %v3521 = vunpack.c.l.b16 %v3462
        %v3522 = vunpack.c.h.b16 %v3462
        %v3523 = vunpack.c.l.b16 %v3463
        %v3524 = vunpack.c.h.b16 %v3463
        %v3525 = vpack.c.b16 %v3495, %v3493
        %v3526 = vpack.c.b16 %v3496, %v3494
        %v3527 = vpack.c.b16 %v3499, %v3497
        %v3528 = vpack.c.b16 %v3500, %v3498
        %v3529 = vpack.c.b16 %v3503, %v3501
        %v3530 = vpack.c.b16 %v3504, %v3502
        %v3531 = vpack.c.b16 %v3507, %v3505
        %v3532 = vpack.c.b16 %v3508, %v3506
        %v3533 = vpack.c.b16 %v3511, %v3509
        %v3534 = vpack.c.b16 %v3512, %v3510
        %v3535 = vpack.c.b16 %v3515, %v3513
        %v3536 = vpack.c.b16 %v3516, %v3514
        %v3537 = vpack.c.b16 %v3519, %v3517
        %v3538 = vpack.c.b16 %v3520, %v3518
        %v3539 = vpack.c.b16 %v3523, %v3521
        %v3540 = vpack.c.b16 %v3524, %v3522
        %3557 = vmatprep.subr.bf16.mxu0 %v3540
        %3558 = vmatpush1.bf16.msra.mxu0 %v3539
        %3559 = vmatprep.subr.bf16.mxu0 %v3538
        %3560 = vmatpush1.bf16.msra.mxu0 %v3537
        %3561 = vmatprep.subr.bf16.mxu0 %v3536
        %3562 = vmatpush1.bf16.msra.mxu0 %v3535
        %3563 = vmatprep.subr.bf16.mxu0 %v3534
        %3564 = vmatpush1.bf16.msra.mxu0 %v3533
        %3565 = vmatprep.subr.bf16.mxu0 %v3532
        %3566 = vmatpush1.bf16.msra.mxu0 %v3531
        %3567 = vmatprep.subr.bf16.mxu0 %v3530
        %3568 = vmatpush1.bf16.msra.mxu0 %v3529
        %3569 = vmatprep.subr.bf16.mxu0 %v3528
        %3570 = vmatpush1.bf16.msra.mxu0 %v3527
        %3571 = vmatprep.subr.bf16.mxu0 %v3526
        %3572 = vmatpush1.bf16.msra.mxu0 %v3525
        %3573 = vmatprep.subr.bf16.mxu0 0
        %3574 = vmatpush2.bf16.msra.mxu0 0
        %3575 = vmatprep.subr.bf16.mxu0 0
        %3576 = vmatpush2.bf16.msra.mxu0 0
        %3577 = vmatprep.subr.bf16.mxu0 0
        %3578 = vmatpush2.bf16.msra.mxu0 0
        %3579 = vmatprep.subr.bf16.mxu0 0
        %3580 = vmatpush2.bf16.msra.mxu0 0
        %3581 = vmatprep.subr.bf16.mxu0 0
        %3582 = vmatpush2.bf16.msra.mxu0 0
        %3583 = vmatprep.subr.bf16.mxu0 0
        %3584 = vmatpush2.bf16.msra.mxu0 0
        %3585 = vmatprep.subr.bf16.mxu0 0
        %3586 = vmatpush2.bf16.msra.mxu0 0
        %3587 = vmatprep.subr.bf16.mxu0 0
        %3588 = vmatpush2.bf16.msra.mxu0 0
        %3589 = vmatprep.mubr.bf16.mxu0 0
        %3590 = vmatmul.mubr.bf16.gmra.mxu0 %v3439
        %v3591 = vpop.f32.mrf.mxu0
        %v3592 = vadd.f32 %v3470, %v3591
        %v3593 = vpop.f32.mrf.mxu0
        %v3594 = vadd.f32 %v3474, %v3593
        %v3595 = vpop.f32.mrf.mxu0
        %v3596 = vadd.f32 %v3470, %v3595
        %v3597 = vpop.f32.mrf.mxu0
        %v3598 = vadd.f32 %v3474, %v3597
        %3599 = vmatprep.mubr.bf16.mxu0 0
        %3600 = vmatmul.mubr.bf16.gmra.mxu0 %v3440
        %v3601 = vpop.f32.mrf.mxu0
        %v3602 = vadd.f32 %v3470, %v3601
        %v3603 = vpop.f32.mrf.mxu0
        %v3604 = vadd.f32 %v3474, %v3603
        %v3605 = vpop.f32.mrf.mxu0
        %v3606 = vadd.f32 %v3470, %v3605
        %v3607 = vpop.f32.mrf.mxu0
        %v3608 = vadd.f32 %v3474, %v3607
        %3609 = vmatprep.mubr.bf16.mxu0 0
        %3610 = vmatmul.mubr.bf16.gmra.mxu0 %v3441
        %v3611 = vpop.f32.mrf.mxu0
        %v3612 = vadd.f32 %v3470, %v3611
        %v3613 = vpop.f32.mrf.mxu0
        %v3614 = vadd.f32 %v3474, %v3613
        %v3615 = vpop.f32.mrf.mxu0
        %v3616 = vadd.f32 %v3470, %v3615
        %v3617 = vpop.f32.mrf.mxu0
        %v3618 = vadd.f32 %v3474, %v3617
        %3619 = vmatprep.mubr.bf16.mxu0 0
        %3620 = vmatmul.mubr.bf16.gmra.mxu0 %v3442
        %v3621 = vpop.f32.mrf.mxu0
        %v3622 = vadd.f32 %v3470, %v3621
        %v3623 = vpop.f32.mrf.mxu0
        %v3624 = vadd.f32 %v3474, %v3623
        %v3625 = vpop.f32.mrf.mxu0
        %v3626 = vadd.f32 %v3470, %v3625
        %v3627 = vpop.f32.mrf.mxu0
        %v3628 = vadd.f32 %v3474, %v3627
        %3629 = vmatprep.mubr.bf16.mxu0 0
        %3630 = vmatmul.mubr.bf16.gmra.mxu0 %v3443
        %v3631 = vpop.f32.mrf.mxu0
        %v3632 = vadd.f32 %v3470, %v3631
        %v3633 = vpop.f32.mrf.mxu0
        %v3634 = vadd.f32 %v3474, %v3633
        %v3635 = vpop.f32.mrf.mxu0
        %v3636 = vadd.f32 %v3470, %v3635
        %v3637 = vpop.f32.mrf.mxu0
        %v3638 = vadd.f32 %v3474, %v3637
        %3639 = vmatprep.mubr.bf16.mxu0 0
        %3640 = vmatmul.mubr.bf16.gmra.mxu0 %v3444
        %v3641 = vpop.f32.mrf.mxu0
        %v3642 = vadd.f32 %v3470, %v3641
        %v3643 = vpop.f32.mrf.mxu0
        %v3644 = vadd.f32 %v3474, %v3643
        %v3645 = vpop.f32.mrf.mxu0
        %v3646 = vadd.f32 %v3470, %v3645
        %v3647 = vpop.f32.mrf.mxu0
        %v3648 = vadd.f32 %v3474, %v3647
        %3649 = vmatprep.mubr.bf16.mxu0 0
        %3650 = vmatmul.mubr.bf16.gmra.mxu0 %v3445
        %v3651 = vpop.f32.mrf.mxu0
        %v3652 = vadd.f32 %v3470, %v3651
        %v3653 = vpop.f32.mrf.mxu0
        %v3654 = vadd.f32 %v3474, %v3653
        %v3655 = vpop.f32.mrf.mxu0
        %v3656 = vadd.f32 %v3470, %v3655
        %v3657 = vpop.f32.mrf.mxu0
        %v3658 = vadd.f32 %v3474, %v3657
        %3659 = vmatprep.mubr.bf16.mxu0 0
        %3660 = vmatmul.mubr.bf16.gmra.mxu0 %v3446
        %v3661 = vpop.f32.mrf.mxu0
        %v3662 = vadd.f32 %v3470, %v3661
        %v3663 = vpop.f32.mrf.mxu0
        %v3664 = vadd.f32 %v3474, %v3663
        %v3665 = vpop.f32.mrf.mxu0
        %v3666 = vadd.f32 %v3470, %v3665
        %v3667 = vpop.f32.mrf.mxu0
        %v3668 = vadd.f32 %v3474, %v3667
        %3669 = vdwg.mxu0
        %v3670 = vmax.f32 %v3592, 0.0
        %v3671 = vmax.f32 %v3594, 0.0
        %v3672 = vmax.f32 %v3596, 0.0
        %v3673 = vmax.f32 %v3598, 0.0
        %v3674 = vmax.f32 %v3602, 0.0
        %v3675 = vmax.f32 %v3604, 0.0
        %v3676 = vmax.f32 %v3606, 0.0
        %v3677 = vmax.f32 %v3608, 0.0
        %v3678 = vmax.f32 %v3612, 0.0
        %v3679 = vmax.f32 %v3614, 0.0
        %v3680 = vmax.f32 %v3616, 0.0
        %v3681 = vmax.f32 %v3618, 0.0
        %v3682 = vmax.f32 %v3622, 0.0
        %v3683 = vmax.f32 %v3624, 0.0
        %v3684 = vmax.f32 %v3626, 0.0
        %v3685 = vmax.f32 %v3628, 0.0
        %v3686 = vmax.f32 %v3632, 0.0
        %v3687 = vmax.f32 %v3634, 0.0
        %v3688 = vmax.f32 %v3636, 0.0
        %v3689 = vmax.f32 %v3638, 0.0
        %v3690 = vmax.f32 %v3642, 0.0
        %v3691 = vmax.f32 %v3644, 0.0
        %v3692 = vmax.f32 %v3646, 0.0
        %v3693 = vmax.f32 %v3648, 0.0
        %v3694 = vmax.f32 %v3652, 0.0
        %v3695 = vmax.f32 %v3654, 0.0
        %v3696 = vmax.f32 %v3656, 0.0
        %v3697 = vmax.f32 %v3658, 0.0
        %v3698 = vmax.f32 %v3662, 0.0
        %v3699 = vmax.f32 %v3664, 0.0
        %v3700 = vmax.f32 %v3666, 0.0
        %v3701 = vmax.f32 %v3668, 0.0
        %v3702 = vpack.c.bf16 %v3672, %v3670
        %v3703 = vpack.c.bf16 %v3673, %v3671
        %v3704 = vpack.c.bf16 %v3676, %v3674
        %v3705 = vpack.c.bf16 %v3677, %v3675
        %v3706 = vpack.c.bf16 %v3680, %v3678
        %v3707 = vpack.c.bf16 %v3681, %v3679
        %v3708 = vpack.c.bf16 %v3684, %v3682
        %v3709 = vpack.c.bf16 %v3685, %v3683
        %v3710 = vpack.c.bf16 %v3688, %v3686
        %v3711 = vpack.c.bf16 %v3689, %v3687
        %v3712 = vpack.c.bf16 %v3692, %v3690
        %v3713 = vpack.c.bf16 %v3693, %v3691
        %v3714 = vpack.c.bf16 %v3696, %v3694
        %v3715 = vpack.c.bf16 %v3697, %v3695
        %v3716 = vpack.c.bf16 %v3700, %v3698
        %v3717 = vpack.c.bf16 %v3701, %v3699
        %s3718 = scalar_lea.vmem [#allocation3], 512
        %v3719 = vld [vmem:[%s3718] sm:$0xf]
        %v3720 = vld [vmem:[%s3718 + $0x4] sm:$0xf]
        %v3721 = vld [vmem:[%s3718 + $0x8] sm:$0xf]
        %v3722 = vld [vmem:[%s3718 + $0xc] sm:$0xf]
        %v3723 = vld [vmem:[%s3718 + $0x10] sm:$0xf]
        %v3724 = vld [vmem:[%s3718 + $0x14] sm:$0xf]
        %v3725 = vld [vmem:[%s3718 + $0x18] sm:$0xf]
        %v3726 = vld [vmem:[%s3718 + $0x1c] sm:$0xf]
        %v3727 = vld [vmem:[%s3718 + $0x20] sm:$0xf]
        %v3728 = vld [vmem:[%s3718 + $0x24] sm:$0xf]
        %v3729 = vld [vmem:[%s3718 + $0x28] sm:$0xf]
        %v3730 = vld [vmem:[%s3718 + $0x2c] sm:$0xf]
        %v3731 = vld [vmem:[%s3718 + $0x30] sm:$0xf]
        %v3732 = vld [vmem:[%s3718 + $0x34] sm:$0xf]
        %v3733 = vld [vmem:[%s3718 + $0x38] sm:$0xf]
        %v3734 = vld [vmem:[%s3718 + $0x3c] sm:$0xf]
        %v3735 = vld [vmem:[%s3718 + $0x40] sm:$0xf]
        %v3736 = vld [vmem:[%s3718 + $0x44] sm:$0xf]
        %v3737 = vld [vmem:[%s3718 + $0x48] sm:$0xf]
        %v3738 = vld [vmem:[%s3718 + $0x4c] sm:$0xf]
        %v3739 = vld [vmem:[%s3718 + $0x50] sm:$0xf]
        %v3740 = vld [vmem:[%s3718 + $0x54] sm:$0xf]
        %v3741 = vld [vmem:[%s3718 + $0x58] sm:$0xf]
        %v3742 = vld [vmem:[%s3718 + $0x5c] sm:$0xf]
        %v3743 = vld [vmem:[%s3718 + $0x60] sm:$0xf]
        %v3744 = vld [vmem:[%s3718 + $0x64] sm:$0xf]
        %v3745 = vld [vmem:[%s3718 + $0x68] sm:$0xf]
        %v3746 = vld [vmem:[%s3718 + $0x6c] sm:$0xf]
        %v3747 = vld [vmem:[%s3718 + $0x70] sm:$0xf]
        %v3748 = vld [vmem:[%s3718 + $0x74] sm:$0xf]
        %v3749 = vld [vmem:[%s3718 + $0x78] sm:$0xf]
        %v3750 = vld [vmem:[%s3718 + $0x7c] sm:$0xf]
        %v3751 = vld [vmem:[%s3447 + $0x8] sm:$0xff]
        %v3752 = vld [vmem:[%s3447 + $0x18] sm:$0xff]
        %v3753 = vld [vmem:[%s3447 + $0x28] sm:$0xff]
        %v3754 = vld [vmem:[%s3447 + $0x38] sm:$0xff]
        %v3755 = vld [vmem:[%s3447 + $0x48] sm:$0xff]
        %v3756 = vld [vmem:[%s3447 + $0x58] sm:$0xff]
        %v3757 = vld [vmem:[%s3447 + $0x68] sm:$0xff]
        %v3758 = vld [vmem:[%s3447 + $0x78] sm:$0xff]
        %v3759 = vld [vmem:[%s3447 + $0x88] sm:$0xff]
        %v3760 = vld [vmem:[%s3447 + $0x98] sm:$0xff]
        %v3761 = vld [vmem:[%s3447 + $0xa8] sm:$0xff]
        %v3762 = vld [vmem:[%s3447 + $0xb8] sm:$0xff]
        %v3763 = vld [vmem:[%s3447 + $0xc8] sm:$0xff]
        %v3764 = vld [vmem:[%s3447 + $0xd8] sm:$0xff]
        %v3765 = vld [vmem:[%s3447 + $0xe8] sm:$0xff]
        %v3766 = vld [vmem:[%s3447 + $0xf8] sm:$0xff]
        %v3767 = vld [vmem:[%s3464 + $0x2] sm:$0x3]
        %v3769 = vlaneseq
        %v3770 = vshrl.u32 %v3769, 7
        %v3771 = vsub.s32 0, %v3770
        %v3772 = vrot.slane %v3767, %v3771
        %v3773 = vlaneseq
        %v3774 = vshrl.u32 %v3773, 7
        %v3775 = vsub.s32 1, %v3774
        %v3776 = vrot.slane %v3767, %v3775
        %v3795 = vunpack.c.l.b16 %v3751
        %v3796 = vunpack.c.h.b16 %v3751
        %v3797 = vunpack.c.l.b16 %v3752
        %v3798 = vunpack.c.h.b16 %v3752
        %v3799 = vunpack.c.l.b16 %v3753
        %v3800 = vunpack.c.h.b16 %v3753
        %v3801 = vunpack.c.l.b16 %v3754
        %v3802 = vunpack.c.h.b16 %v3754
        %v3803 = vunpack.c.l.b16 %v3755
        %v3804 = vunpack.c.h.b16 %v3755
        %v3805 = vunpack.c.l.b16 %v3756
        %v3806 = vunpack.c.h.b16 %v3756
        %v3807 = vunpack.c.l.b16 %v3757
        %v3808 = vunpack.c.h.b16 %v3757
        %v3809 = vunpack.c.l.b16 %v3758
        %v3810 = vunpack.c.h.b16 %v3758
        %v3811 = vunpack.c.l.b16 %v3759
        %v3812 = vunpack.c.h.b16 %v3759
        %v3813 = vunpack.c.l.b16 %v3760
        %v3814 = vunpack.c.h.b16 %v3760
        %v3815 = vunpack.c.l.b16 %v3761
        %v3816 = vunpack.c.h.b16 %v3761
        %v3817 = vunpack.c.l.b16 %v3762
        %v3818 = vunpack.c.h.b16 %v3762
        %v3819 = vunpack.c.l.b16 %v3763
        %v3820 = vunpack.c.h.b16 %v3763
        %v3821 = vunpack.c.l.b16 %v3764
        %v3822 = vunpack.c.h.b16 %v3764
        %v3823 = vunpack.c.l.b16 %v3765
        %v3824 = vunpack.c.h.b16 %v3765
        %v3825 = vunpack.c.l.b16 %v3766
        %v3826 = vunpack.c.h.b16 %v3766
        %v3827 = vpack.c.b16 %v3797, %v3795
        %v3828 = vpack.c.b16 %v3798, %v3796
        %v3829 = vpack.c.b16 %v3801, %v3799
        %v3830 = vpack.c.b16 %v3802, %v3800
        %v3831 = vpack.c.b16 %v3805, %v3803
        %v3832 = vpack.c.b16 %v3806, %v3804
        %v3833 = vpack.c.b16 %v3809, %v3807
        %v3834 = vpack.c.b16 %v3810, %v3808
        %v3835 = vpack.c.b16 %v3813, %v3811
        %v3836 = vpack.c.b16 %v3814, %v3812
        %v3837 = vpack.c.b16 %v3817, %v3815
        %v3838 = vpack.c.b16 %v3818, %v3816
        %v3839 = vpack.c.b16 %v3821, %v3819
        %v3840 = vpack.c.b16 %v3822, %v3820
        %v3841 = vpack.c.b16 %v3825, %v3823
        %v3842 = vpack.c.b16 %v3826, %v3824
        %3859 = vmatprep.subr.bf16.mxu0 %v3842
        %3860 = vmatpush1.bf16.msra.mxu0 %v3841
        %3861 = vmatprep.subr.bf16.mxu0 %v3840
        %3862 = vmatpush1.bf16.msra.mxu0 %v3839
        %3863 = vmatprep.subr.bf16.mxu0 %v3838
        %3864 = vmatpush1.bf16.msra.mxu0 %v3837
        %3865 = vmatprep.subr.bf16.mxu0 %v3836
        %3866 = vmatpush1.bf16.msra.mxu0 %v3835
        %3867 = vmatprep.subr.bf16.mxu0 %v3834
        %3868 = vmatpush1.bf16.msra.mxu0 %v3833
        %3869 = vmatprep.subr.bf16.mxu0 %v3832
        %3870 = vmatpush1.bf16.msra.mxu0 %v3831
        %3871 = vmatprep.subr.bf16.mxu0 %v3830
        %3872 = vmatpush1.bf16.msra.mxu0 %v3829
        %3873 = vmatprep.subr.bf16.mxu0 %v3828
        %3874 = vmatpush1.bf16.msra.mxu0 %v3827
        %3875 = vmatprep.subr.bf16.mxu0 0
        %3876 = vmatpush2.bf16.msra.mxu0 0
        %3877 = vmatprep.subr.bf16.mxu0 0
        %3878 = vmatpush2.bf16.msra.mxu0 0
        %3879 = vmatprep.subr.bf16.mxu0 0
        %3880 = vmatpush2.bf16.msra.mxu0 0
        %3881 = vmatprep.subr.bf16.mxu0 0
        %3882 = vmatpush2.bf16.msra.mxu0 0
        %3883 = vmatprep.subr.bf16.mxu0 0
        %3884 = vmatpush2.bf16.msra.mxu0 0
        %3885 = vmatprep.subr.bf16.mxu0 0
        %3886 = vmatpush2.bf16.msra.mxu0 0
        %3887 = vmatprep.subr.bf16.mxu0 0
        %3888 = vmatpush2.bf16.msra.mxu0 0
        %3889 = vmatprep.subr.bf16.mxu0 0
        %3890 = vmatpush2.bf16.msra.mxu0 0
        %3891 = vmatprep.mubr.bf16.mxu0 0
        %3892 = vmatmul.mubr.bf16.gmra.mxu0 %v3439
        %v3893 = vpop.f32.mrf.mxu0
        %v3894 = vadd.f32 %v3772, %v3893
        %v3895 = vpop.f32.mrf.mxu0
        %v3896 = vadd.f32 %v3776, %v3895
        %v3897 = vpop.f32.mrf.mxu0
        %v3898 = vadd.f32 %v3772, %v3897
        %v3899 = vpop.f32.mrf.mxu0
        %v3900 = vadd.f32 %v3776, %v3899
        %3901 = vmatprep.mubr.bf16.mxu0 0
        %3902 = vmatmul.mubr.bf16.gmra.mxu0 %v3440
        %v3903 = vpop.f32.mrf.mxu0
        %v3904 = vadd.f32 %v3772, %v3903
        %v3905 = vpop.f32.mrf.mxu0
        %v3906 = vadd.f32 %v3776, %v3905
        %v3907 = vpop.f32.mrf.mxu0
        %v3908 = vadd.f32 %v3772, %v3907
        %v3909 = vpop.f32.mrf.mxu0
        %v3910 = vadd.f32 %v3776, %v3909
        %3911 = vmatprep.mubr.bf16.mxu0 0
        %3912 = vmatmul.mubr.bf16.gmra.mxu0 %v3441
        %v3913 = vpop.f32.mrf.mxu0
        %v3914 = vadd.f32 %v3772, %v3913
        %v3915 = vpop.f32.mrf.mxu0
        %v3916 = vadd.f32 %v3776, %v3915
        %v3917 = vpop.f32.mrf.mxu0
        %v3918 = vadd.f32 %v3772, %v3917
        %v3919 = vpop.f32.mrf.mxu0
        %v3920 = vadd.f32 %v3776, %v3919
        %3921 = vmatprep.mubr.bf16.mxu0 0
        %3922 = vmatmul.mubr.bf16.gmra.mxu0 %v3442
        %v3923 = vpop.f32.mrf.mxu0
        %v3924 = vadd.f32 %v3772, %v3923
        %v3925 = vpop.f32.mrf.mxu0
        %v3926 = vadd.f32 %v3776, %v3925
        %v3927 = vpop.f32.mrf.mxu0
        %v3928 = vadd.f32 %v3772, %v3927
        %v3929 = vpop.f32.mrf.mxu0
        %v3930 = vadd.f32 %v3776, %v3929
        %3931 = vmatprep.mubr.bf16.mxu0 0
        %3932 = vmatmul.mubr.bf16.gmra.mxu0 %v3443
        %v3933 = vpop.f32.mrf.mxu0
        %v3934 = vadd.f32 %v3772, %v3933
        %v3935 = vpop.f32.mrf.mxu0
        %v3936 = vadd.f32 %v3776, %v3935
        %v3937 = vpop.f32.mrf.mxu0
        %v3938 = vadd.f32 %v3772, %v3937
        %v3939 = vpop.f32.mrf.mxu0
        %v3940 = vadd.f32 %v3776, %v3939
        %3941 = vmatprep.mubr.bf16.mxu0 0
        %3942 = vmatmul.mubr.bf16.gmra.mxu0 %v3444
        %v3943 = vpop.f32.mrf.mxu0
        %v3944 = vadd.f32 %v3772, %v3943
        %v3945 = vpop.f32.mrf.mxu0
        %v3946 = vadd.f32 %v3776, %v3945
        %v3947 = vpop.f32.mrf.mxu0
        %v3948 = vadd.f32 %v3772, %v3947
        %v3949 = vpop.f32.mrf.mxu0
        %v3950 = vadd.f32 %v3776, %v3949
        %3951 = vmatprep.mubr.bf16.mxu0 0
        %3952 = vmatmul.mubr.bf16.gmra.mxu0 %v3445
        %v3953 = vpop.f32.mrf.mxu0
        %v3954 = vadd.f32 %v3772, %v3953
        %v3955 = vpop.f32.mrf.mxu0
        %v3956 = vadd.f32 %v3776, %v3955
        %v3957 = vpop.f32.mrf.mxu0
        %v3958 = vadd.f32 %v3772, %v3957
        %v3959 = vpop.f32.mrf.mxu0
        %v3960 = vadd.f32 %v3776, %v3959
        %3961 = vmatprep.mubr.bf16.mxu0 0
        %3962 = vmatmul.mubr.bf16.gmra.mxu0 %v3446
        %v3963 = vpop.f32.mrf.mxu0
        %v3964 = vadd.f32 %v3772, %v3963
        %v3965 = vpop.f32.mrf.mxu0
        %v3966 = vadd.f32 %v3776, %v3965
        %v3967 = vpop.f32.mrf.mxu0
        %v3968 = vadd.f32 %v3772, %v3967
        %v3969 = vpop.f32.mrf.mxu0
        %v3970 = vadd.f32 %v3776, %v3969
        %3971 = vdwg.mxu0
        %v3972 = vmax.f32 %v3894, 0.0
        %v3973 = vmax.f32 %v3896, 0.0
        %v3974 = vmax.f32 %v3898, 0.0
        %v3975 = vmax.f32 %v3900, 0.0
        %v3976 = vmax.f32 %v3904, 0.0
        %v3977 = vmax.f32 %v3906, 0.0
        %v3978 = vmax.f32 %v3908, 0.0
        %v3979 = vmax.f32 %v3910, 0.0
        %v3980 = vmax.f32 %v3914, 0.0
        %v3981 = vmax.f32 %v3916, 0.0
        %v3982 = vmax.f32 %v3918, 0.0
        %v3983 = vmax.f32 %v3920, 0.0
        %v3984 = vmax.f32 %v3924, 0.0
        %v3985 = vmax.f32 %v3926, 0.0
        %v3986 = vmax.f32 %v3928, 0.0
        %v3987 = vmax.f32 %v3930, 0.0
        %v3988 = vmax.f32 %v3934, 0.0
        %v3989 = vmax.f32 %v3936, 0.0
        %v3990 = vmax.f32 %v3938, 0.0
        %v3991 = vmax.f32 %v3940, 0.0
        %v3992 = vmax.f32 %v3944, 0.0
        %v3993 = vmax.f32 %v3946, 0.0
        %v3994 = vmax.f32 %v3948, 0.0
        %v3995 = vmax.f32 %v3950, 0.0
        %v3996 = vmax.f32 %v3954, 0.0
        %v3997 = vmax.f32 %v3956, 0.0
        %v3998 = vmax.f32 %v3958, 0.0
        %v3999 = vmax.f32 %v3960, 0.0
        %v4000 = vmax.f32 %v3964, 0.0
        %v4001 = vmax.f32 %v3966, 0.0
        %v4002 = vmax.f32 %v3968, 0.0
        %v4003 = vmax.f32 %v3970, 0.0
        %v4004 = vpack.c.bf16 %v3974, %v3972
        %v4005 = vpack.c.bf16 %v3975, %v3973
        %v4006 = vpack.c.bf16 %v3978, %v3976
        %v4007 = vpack.c.bf16 %v3979, %v3977
        %v4008 = vpack.c.bf16 %v3982, %v3980
        %v4009 = vpack.c.bf16 %v3983, %v3981
        %v4010 = vpack.c.bf16 %v3986, %v3984
        %v4011 = vpack.c.bf16 %v3987, %v3985
        %v4012 = vpack.c.bf16 %v3990, %v3988
        %v4013 = vpack.c.bf16 %v3991, %v3989
        %v4014 = vpack.c.bf16 %v3994, %v3992
        %v4015 = vpack.c.bf16 %v3995, %v3993
        %v4016 = vpack.c.bf16 %v3998, %v3996
        %v4017 = vpack.c.bf16 %v3999, %v3997
        %v4018 = vpack.c.bf16 %v4002, %v4000
        %v4019 = vpack.c.bf16 %v4003, %v4001
        %v4020 = vld [vmem:[%s3718 + $0x80] sm:$0xf]
        %v4021 = vld [vmem:[%s3718 + $0x84] sm:$0xf]
        %v4022 = vld [vmem:[%s3718 + $0x88] sm:$0xf]
        %v4023 = vld [vmem:[%s3718 + $0x8c] sm:$0xf]
        %v4024 = vld [vmem:[%s3718 + $0x90] sm:$0xf]
        %v4025 = vld [vmem:[%s3718 + $0x94] sm:$0xf]
        %v4026 = vld [vmem:[%s3718 + $0x98] sm:$0xf]
        %v4027 = vld [vmem:[%s3718 + $0x9c] sm:$0xf]
        %v4028 = vld [vmem:[%s3718 + $0xa0] sm:$0xf]
        %v4029 = vld [vmem:[%s3718 + $0xa4] sm:$0xf]
        %v4030 = vld [vmem:[%s3718 + $0xa8] sm:$0xf]
        %v4031 = vld [vmem:[%s3718 + $0xac] sm:$0xf]
        %v4032 = vld [vmem:[%s3718 + $0xb0] sm:$0xf]
        %v4033 = vld [vmem:[%s3718 + $0xb4] sm:$0xf]
        %v4034 = vld [vmem:[%s3718 + $0xb8] sm:$0xf]
        %v4035 = vld [vmem:[%s3718 + $0xbc] sm:$0xf]
        %v4036 = vld [vmem:[%s3718 + $0xc0] sm:$0xf]
        %v4037 = vld [vmem:[%s3718 + $0xc4] sm:$0xf]
        %v4038 = vld [vmem:[%s3718 + $0xc8] sm:$0xf]
        %v4039 = vld [vmem:[%s3718 + $0xcc] sm:$0xf]
        %v4040 = vld [vmem:[%s3718 + $0xd0] sm:$0xf]
        %v4041 = vld [vmem:[%s3718 + $0xd4] sm:$0xf]
        %v4042 = vld [vmem:[%s3718 + $0xd8] sm:$0xf]
        %v4043 = vld [vmem:[%s3718 + $0xdc] sm:$0xf]
        %v4044 = vld [vmem:[%s3718 + $0xe0] sm:$0xf]
        %v4045 = vld [vmem:[%s3718 + $0xe4] sm:$0xf]
        %v4046 = vld [vmem:[%s3718 + $0xe8] sm:$0xf]
        %v4047 = vld [vmem:[%s3718 + $0xec] sm:$0xf]
        %v4048 = vld [vmem:[%s3718 + $0xf0] sm:$0xf]
        %v4049 = vld [vmem:[%s3718 + $0xf4] sm:$0xf]
        %v4050 = vld [vmem:[%s3718 + $0xf8] sm:$0xf]
        %v4051 = vld [vmem:[%s3718 + $0xfc] sm:$0xf]
        %v4084 = vunpack.c.l.b16 %v4020
        %v4085 = vunpack.c.l.b16 %v4021
        %v4086 = vunpack.c.l.b16 %v4022
        %v4087 = vunpack.c.l.b16 %v4023
        %v4088 = vunpack.c.l.b16 %v4024
        %v4089 = vunpack.c.l.b16 %v4025
        %v4090 = vunpack.c.l.b16 %v4026
        %v4091 = vunpack.c.l.b16 %v4027
        %v4092 = vunpack.c.l.b16 %v4028
        %v4093 = vunpack.c.l.b16 %v4029
        %v4094 = vunpack.c.l.b16 %v4030
        %v4095 = vunpack.c.l.b16 %v4031
        %v4096 = vunpack.c.l.b16 %v4032
        %v4097 = vunpack.c.l.b16 %v4033
        %v4098 = vunpack.c.l.b16 %v4034
        %v4099 = vunpack.c.l.b16 %v4035
        %v4100 = vunpack.c.l.b16 %v4036
        %v4101 = vunpack.c.l.b16 %v4037
        %v4102 = vunpack.c.l.b16 %v4038
        %v4103 = vunpack.c.l.b16 %v4039
        %v4104 = vunpack.c.l.b16 %v4040
        %v4105 = vunpack.c.l.b16 %v4041
        %v4106 = vunpack.c.l.b16 %v4042
        %v4107 = vunpack.c.l.b16 %v4043
        %v4108 = vunpack.c.l.b16 %v4044
        %v4109 = vunpack.c.l.b16 %v4045
        %v4110 = vunpack.c.l.b16 %v4046
        %v4111 = vunpack.c.l.b16 %v4047
        %v4112 = vunpack.c.l.b16 %v4048
        %v4113 = vunpack.c.l.b16 %v4049
        %v4114 = vunpack.c.l.b16 %v4050
        %v4115 = vunpack.c.l.b16 %v4051
        %v4116 = vpack.c.b16 %v4085, %v4084
        %v4117 = vpack.c.b16 %v4087, %v4086
        %v4118 = vpack.c.b16 %v4089, %v4088
        %v4119 = vpack.c.b16 %v4091, %v4090
        %v4120 = vpack.c.b16 %v4093, %v4092
        %v4121 = vpack.c.b16 %v4095, %v4094
        %v4122 = vpack.c.b16 %v4097, %v4096
        %v4123 = vpack.c.b16 %v4099, %v4098
        %v4124 = vpack.c.b16 %v4101, %v4100
        %v4125 = vpack.c.b16 %v4103, %v4102
        %v4126 = vpack.c.b16 %v4105, %v4104
        %v4127 = vpack.c.b16 %v4107, %v4106
        %v4128 = vpack.c.b16 %v4109, %v4108
        %v4129 = vpack.c.b16 %v4111, %v4110
        %v4130 = vpack.c.b16 %v4113, %v4112
        %v4131 = vpack.c.b16 %v4115, %v4114
        %4148 = vmatprep.subr.bf16.mxu0 0
        %4149 = vmatpush1.bf16.msra.mxu0 %v4123
        %4150 = vmatprep.subr.bf16.mxu0 0
        %4151 = vmatpush1.bf16.msra.mxu0 %v4122
        %4152 = vmatprep.subr.bf16.mxu0 0
        %4153 = vmatpush1.bf16.msra.mxu0 %v4121
        %4154 = vmatprep.subr.bf16.mxu0 0
        %4155 = vmatpush1.bf16.msra.mxu0 %v4120
        %4156 = vmatprep.subr.bf16.mxu0 0
        %4157 = vmatpush1.bf16.msra.mxu0 %v4119
        %4158 = vmatprep.subr.bf16.mxu0 0
        %4159 = vmatpush1.bf16.msra.mxu0 %v4118
        %4160 = vmatprep.subr.bf16.mxu0 0
        %4161 = vmatpush1.bf16.msra.mxu0 %v4117
        %4162 = vmatprep.subr.bf16.mxu0 0
        %4163 = vmatpush1.bf16.msra.mxu0 %v4116
        %4164 = vmatprep.subr.bf16.mxu0 0
        %4165 = vmatpush2.bf16.msra.mxu0 %v4131
        %4166 = vmatprep.subr.bf16.mxu0 0
        %4167 = vmatpush2.bf16.msra.mxu0 %v4130
        %4168 = vmatprep.subr.bf16.mxu0 0
        %4169 = vmatpush2.bf16.msra.mxu0 %v4129
        %4170 = vmatprep.subr.bf16.mxu0 0
        %4171 = vmatpush2.bf16.msra.mxu0 %v4128
        %4172 = vmatprep.subr.bf16.mxu0 0
        %4173 = vmatpush2.bf16.msra.mxu0 %v4127
        %4174 = vmatprep.subr.bf16.mxu0 0
        %4175 = vmatpush2.bf16.msra.mxu0 %v4126
        %4176 = vmatprep.subr.bf16.mxu0 0
        %4177 = vmatpush2.bf16.msra.mxu0 %v4125
        %4178 = vmatprep.subr.bf16.mxu0 0
        %4179 = vmatpush2.bf16.msra.mxu0 %v4124
        %4180 = vmatprep.mubr.bf16.mxu0 %v4005
        %4181 = vmatmul.mubr.bf16.gmra.mxu0 %v4004
        %v4182 = vpop.f32.mrf.mxu0
        %v4183 = vadd.f32 0.0, %v4182
        %v4184 = vpop.f32.mrf.mxu0
        %v4185 = vpop.f32.mrf.mxu0
        %v4186 = vadd.f32 0.0, %v4185
        %v4187 = vpop.f32.mrf.mxu0
        %4188 = vmatprep.mubr.bf16.mxu0 %v4007
        %4189 = vmatmul.mubr.bf16.gmra.mxu0 %v4006
        %v4190 = vpop.f32.mrf.mxu0
        %v4191 = vadd.f32 0.0, %v4190
        %v4192 = vpop.f32.mrf.mxu0
        %v4193 = vpop.f32.mrf.mxu0
        %v4194 = vadd.f32 0.0, %v4193
        %v4195 = vpop.f32.mrf.mxu0
        %4196 = vmatprep.mubr.bf16.mxu0 %v4009
        %4197 = vmatmul.mubr.bf16.gmra.mxu0 %v4008
        %v4198 = vpop.f32.mrf.mxu0
        %v4199 = vadd.f32 0.0, %v4198
        %v4200 = vpop.f32.mrf.mxu0
        %v4201 = vpop.f32.mrf.mxu0
        %v4202 = vadd.f32 0.0, %v4201
        %v4203 = vpop.f32.mrf.mxu0
        %4204 = vmatprep.mubr.bf16.mxu0 %v4011
        %4205 = vmatmul.mubr.bf16.gmra.mxu0 %v4010
        %v4206 = vpop.f32.mrf.mxu0
        %v4207 = vadd.f32 0.0, %v4206
        %v4208 = vpop.f32.mrf.mxu0
        %v4209 = vpop.f32.mrf.mxu0
        %v4210 = vadd.f32 0.0, %v4209
        %v4211 = vpop.f32.mrf.mxu0
        %4212 = vmatprep.mubr.bf16.mxu0 %v4013
        %4213 = vmatmul.mubr.bf16.gmra.mxu0 %v4012
        %v4214 = vpop.f32.mrf.mxu0
        %v4215 = vadd.f32 0.0, %v4214
        %v4216 = vpop.f32.mrf.mxu0
        %v4217 = vpop.f32.mrf.mxu0
        %v4218 = vadd.f32 0.0, %v4217
        %v4219 = vpop.f32.mrf.mxu0
        %4220 = vmatprep.mubr.bf16.mxu0 %v4015
        %4221 = vmatmul.mubr.bf16.gmra.mxu0 %v4014
        %v4222 = vpop.f32.mrf.mxu0
        %v4223 = vadd.f32 0.0, %v4222
        %v4224 = vpop.f32.mrf.mxu0
        %v4225 = vpop.f32.mrf.mxu0
        %v4226 = vadd.f32 0.0, %v4225
        %v4227 = vpop.f32.mrf.mxu0
        %4228 = vmatprep.mubr.bf16.mxu0 %v4017
        %4229 = vmatmul.mubr.bf16.gmra.mxu0 %v4016
        %v4230 = vpop.f32.mrf.mxu0
        %v4231 = vadd.f32 0.0, %v4230
        %v4232 = vpop.f32.mrf.mxu0
        %v4233 = vpop.f32.mrf.mxu0
        %v4234 = vadd.f32 0.0, %v4233
        %v4235 = vpop.f32.mrf.mxu0
        %4236 = vmatprep.mubr.bf16.mxu0 %v4019
        %4237 = vmatmul.mubr.bf16.gmra.mxu0 %v4018
        %v4238 = vpop.f32.mrf.mxu0
        %v4239 = vadd.f32 0.0, %v4238
        %v4240 = vpop.f32.mrf.mxu0
        %v4241 = vpop.f32.mrf.mxu0
        %v4242 = vadd.f32 0.0, %v4241
        %v4243 = vpop.f32.mrf.mxu0
        %4244 = vdwg.mxu0
        %v4277 = vunpack.c.l.b16 %v3719
        %v4278 = vunpack.c.l.b16 %v3720
        %v4279 = vunpack.c.l.b16 %v3721
        %v4280 = vunpack.c.l.b16 %v3722
        %v4281 = vunpack.c.l.b16 %v3723
        %v4282 = vunpack.c.l.b16 %v3724
        %v4283 = vunpack.c.l.b16 %v3725
        %v4284 = vunpack.c.l.b16 %v3726
        %v4285 = vunpack.c.l.b16 %v3727
        %v4286 = vunpack.c.l.b16 %v3728
        %v4287 = vunpack.c.l.b16 %v3729
        %v4288 = vunpack.c.l.b16 %v3730
        %v4289 = vunpack.c.l.b16 %v3731
        %v4290 = vunpack.c.l.b16 %v3732
        %v4291 = vunpack.c.l.b16 %v3733
        %v4292 = vunpack.c.l.b16 %v3734
        %v4293 = vunpack.c.l.b16 %v3735
        %v4294 = vunpack.c.l.b16 %v3736
        %v4295 = vunpack.c.l.b16 %v3737
        %v4296 = vunpack.c.l.b16 %v3738
        %v4297 = vunpack.c.l.b16 %v3739
        %v4298 = vunpack.c.l.b16 %v3740
        %v4299 = vunpack.c.l.b16 %v3741
        %v4300 = vunpack.c.l.b16 %v3742
        %v4301 = vunpack.c.l.b16 %v3743
        %v4302 = vunpack.c.l.b16 %v3744
        %v4303 = vunpack.c.l.b16 %v3745
        %v4304 = vunpack.c.l.b16 %v3746
        %v4305 = vunpack.c.l.b16 %v3747
        %v4306 = vunpack.c.l.b16 %v3748
        %v4307 = vunpack.c.l.b16 %v3749
        %v4308 = vunpack.c.l.b16 %v3750
        %v4309 = vpack.c.b16 %v4278, %v4277
        %v4310 = vpack.c.b16 %v4280, %v4279
        %v4311 = vpack.c.b16 %v4282, %v4281
        %v4312 = vpack.c.b16 %v4284, %v4283
        %v4313 = vpack.c.b16 %v4286, %v4285
        %v4314 = vpack.c.b16 %v4288, %v4287
        %v4315 = vpack.c.b16 %v4290, %v4289
        %v4316 = vpack.c.b16 %v4292, %v4291
        %v4317 = vpack.c.b16 %v4294, %v4293
        %v4318 = vpack.c.b16 %v4296, %v4295
        %v4319 = vpack.c.b16 %v4298, %v4297
        %v4320 = vpack.c.b16 %v4300, %v4299
        %v4321 = vpack.c.b16 %v4302, %v4301
        %v4322 = vpack.c.b16 %v4304, %v4303
        %v4323 = vpack.c.b16 %v4306, %v4305
        %v4324 = vpack.c.b16 %v4308, %v4307
        %4341 = vmatprep.subr.bf16.mxu0 0
        %4342 = vmatpush1.bf16.msra.mxu0 %v4316
        %4343 = vmatprep.subr.bf16.mxu0 0
        %4344 = vmatpush1.bf16.msra.mxu0 %v4315
        %4345 = vmatprep.subr.bf16.mxu0 0
        %4346 = vmatpush1.bf16.msra.mxu0 %v4314
        %4347 = vmatprep.subr.bf16.mxu0 0
        %4348 = vmatpush1.bf16.msra.mxu0 %v4313
        %4349 = vmatprep.subr.bf16.mxu0 0
        %4350 = vmatpush1.bf16.msra.mxu0 %v4312
        %4351 = vmatprep.subr.bf16.mxu0 0
        %4352 = vmatpush1.bf16.msra.mxu0 %v4311
        %4353 = vmatprep.subr.bf16.mxu0 0
        %4354 = vmatpush1.bf16.msra.mxu0 %v4310
        %4355 = vmatprep.subr.bf16.mxu0 0
        %4356 = vmatpush1.bf16.msra.mxu0 %v4309
        %4357 = vmatprep.subr.bf16.mxu0 0
        %4358 = vmatpush2.bf16.msra.mxu0 %v4324
        %4359 = vmatprep.subr.bf16.mxu0 0
        %4360 = vmatpush2.bf16.msra.mxu0 %v4323
        %4361 = vmatprep.subr.bf16.mxu0 0
        %4362 = vmatpush2.bf16.msra.mxu0 %v4322
        %4363 = vmatprep.subr.bf16.mxu0 0
        %4364 = vmatpush2.bf16.msra.mxu0 %v4321
        %4365 = vmatprep.subr.bf16.mxu0 0
        %4366 = vmatpush2.bf16.msra.mxu0 %v4320
        %4367 = vmatprep.subr.bf16.mxu0 0
        %4368 = vmatpush2.bf16.msra.mxu0 %v4319
        %4369 = vmatprep.subr.bf16.mxu0 0
        %4370 = vmatpush2.bf16.msra.mxu0 %v4318
        %4371 = vmatprep.subr.bf16.mxu0 0
        %4372 = vmatpush2.bf16.msra.mxu0 %v4317
        %4373 = vmatprep.mubr.bf16.mxu0 %v3703
        %4374 = vmatmul.mubr.bf16.gmra.mxu0 %v3702
        %v4375 = vpop.f32.mrf.mxu0
        %v4376 = vadd.f32 %v4183, %v4375
        %v4377 = vpop.f32.mrf.mxu0
        %v4378 = vpop.f32.mrf.mxu0
        %v4379 = vadd.f32 %v4186, %v4378
        %v4380 = vpop.f32.mrf.mxu0
        %4381 = vmatprep.mubr.bf16.mxu0 %v3705
        %4382 = vmatmul.mubr.bf16.gmra.mxu0 %v3704
        %v4383 = vpop.f32.mrf.mxu0
        %v4384 = vadd.f32 %v4191, %v4383
        %v4385 = vpop.f32.mrf.mxu0
        %v4386 = vpop.f32.mrf.mxu0
        %v4387 = vadd.f32 %v4194, %v4386
        %v4388 = vpop.f32.mrf.mxu0
        %4389 = vmatprep.mubr.bf16.mxu0 %v3707
        %4390 = vmatmul.mubr.bf16.gmra.mxu0 %v3706
        %v4391 = vpop.f32.mrf.mxu0
        %v4392 = vadd.f32 %v4199, %v4391
        %v4393 = vpop.f32.mrf.mxu0
        %v4394 = vpop.f32.mrf.mxu0
        %v4395 = vadd.f32 %v4202, %v4394
        %v4396 = vpop.f32.mrf.mxu0
        %4397 = vmatprep.mubr.bf16.mxu0 %v3709
        %4398 = vmatmul.mubr.bf16.gmra.mxu0 %v3708
        %v4399 = vpop.f32.mrf.mxu0
        %v4400 = vadd.f32 %v4207, %v4399
        %v4401 = vpop.f32.mrf.mxu0
        %v4402 = vpop.f32.mrf.mxu0
        %v4403 = vadd.f32 %v4210, %v4402
        %v4404 = vpop.f32.mrf.mxu0
        %4405 = vmatprep.mubr.bf16.mxu0 %v3711
        %4406 = vmatmul.mubr.bf16.gmra.mxu0 %v3710
        %v4407 = vpop.f32.mrf.mxu0
        %v4408 = vadd.f32 %v4215, %v4407
        %v4409 = vpop.f32.mrf.mxu0
        %v4410 = vpop.f32.mrf.mxu0
        %v4411 = vadd.f32 %v4218, %v4410
        %v4412 = vpop.f32.mrf.mxu0
        %4413 = vmatprep.mubr.bf16.mxu0 %v3713
        %4414 = vmatmul.mubr.bf16.gmra.mxu0 %v3712
        %v4415 = vpop.f32.mrf.mxu0
        %v4416 = vadd.f32 %v4223, %v4415
        %v4417 = vpop.f32.mrf.mxu0
        %v4418 = vpop.f32.mrf.mxu0
        %v4419 = vadd.f32 %v4226, %v4418
        %v4420 = vpop.f32.mrf.mxu0
        %4421 = vmatprep.mubr.bf16.mxu0 %v3715
        %4422 = vmatmul.mubr.bf16.gmra.mxu0 %v3714
        %v4423 = vpop.f32.mrf.mxu0
        %v4424 = vadd.f32 %v4231, %v4423
        %v4425 = vpop.f32.mrf.mxu0
        %v4426 = vpop.f32.mrf.mxu0
        %v4427 = vadd.f32 %v4234, %v4426
        %v4428 = vpop.f32.mrf.mxu0
        %4429 = vmatprep.mubr.bf16.mxu0 %v3717
        %4430 = vmatmul.mubr.bf16.gmra.mxu0 %v3716
        %v4431 = vpop.f32.mrf.mxu0
        %v4432 = vadd.f32 %v4239, %v4431
        %v4433 = vpop.f32.mrf.mxu0
        %v4434 = vpop.f32.mrf.mxu0
        %v4435 = vadd.f32 %v4242, %v4434
        %v4436 = vpop.f32.mrf.mxu0
        %4437 = vdwg.mxu0
        %s4438 = scalar_lea.vmem %s8, 2
        %v4439 = vld [vmem:[%s4438] sm:$0x1]
        %v4441 = vlaneseq
        %v4442 = vshrl.u32 %v4441, 7
        %v4443 = vsub.s32 0, %v4442
        %v4444 = vrot.slane %v4439, %v4443
        %v4446 = vadd.f32 %v4376, %v4444
        %v4447 = vadd.f32 %v4379, %v4444
        %v4448 = vadd.f32 %v4384, %v4444
        %v4449 = vadd.f32 %v4387, %v4444
        %v4450 = vadd.f32 %v4392, %v4444
        %v4451 = vadd.f32 %v4395, %v4444
        %v4452 = vadd.f32 %v4400, %v4444
        %v4453 = vadd.f32 %v4403, %v4444
        %v4454 = vadd.f32 %v4408, %v4444
        %v4455 = vadd.f32 %v4411, %v4444
        %v4456 = vadd.f32 %v4416, %v4444
        %v4457 = vadd.f32 %v4419, %v4444
        %v4458 = vadd.f32 %v4424, %v4444
        %v4459 = vadd.f32 %v4427, %v4444
        %v4460 = vadd.f32 %v4432, %v4444
        %v4461 = vadd.f32 %v4435, %v4444
        %v4462 = vadd.f32 %v4446, %v3199
        %v4463 = vadd.f32 %v4447, %v3200
        %v4464 = vadd.f32 %v4448, %v3201
        %v4465 = vadd.f32 %v4449, %v3202
        %v4466 = vadd.f32 %v4450, %v3203
        %v4467 = vadd.f32 %v4451, %v3204
        %v4468 = vadd.f32 %v4452, %v3205
        %v4469 = vadd.f32 %v4453, %v3206
        %v4470 = vadd.f32 %v4454, %v3207
        %v4471 = vadd.f32 %v4455, %v3208
        %v4472 = vadd.f32 %v4456, %v3209
        %v4473 = vadd.f32 %v4457, %v3210
        %v4474 = vadd.f32 %v4458, %v3211
        %v4475 = vadd.f32 %v4459, %v3212
        %v4476 = vadd.f32 %v4460, %v3213
        %v4477 = vadd.f32 %v4461, %v3214
        %4478 = vst [vmem:[#allocation2] sm:$0xff] %v4462
        %4479 = vst [vmem:[#allocation2 + $0x8] sm:$0xff] %v4463
        %4480 = vst [vmem:[#allocation2 + $0x10] sm:$0xff] %v4464
        %4481 = vst [vmem:[#allocation2 + $0x18] sm:$0xff] %v4465
        %4482 = vst [vmem:[#allocation2 + $0x20] sm:$0xff] %v4466
        %4483 = vst [vmem:[#allocation2 + $0x28] sm:$0xff] %v4467
        %4484 = vst [vmem:[#allocation2 + $0x30] sm:$0xff] %v4468
        %4485 = vst [vmem:[#allocation2 + $0x38] sm:$0xff] %v4469
        %4486 = vst [vmem:[#allocation2 + $0x40] sm:$0xff] %v4470
        %4487 = vst [vmem:[#allocation2 + $0x48] sm:$0xff] %v4471
        %4488 = vst [vmem:[#allocation2 + $0x50] sm:$0xff] %v4472
        %4489 = vst [vmem:[#allocation2 + $0x58] sm:$0xff] %v4473
        %4490 = vst [vmem:[#allocation2 + $0x60] sm:$0xff] %v4474
        %4491 = vst [vmem:[#allocation2 + $0x68] sm:$0xff] %v4475
        %4492 = vst [vmem:[#allocation2 + $0x70] sm:$0xff] %v4476
        %4493 = vst [vmem:[#allocation2 + $0x78] sm:$0xff] %v4477
        %v4494 = vld [vmem:[#allocation2] sm:$0xff]
        %v4495 = vld [vmem:[#allocation2 + $0x8] sm:$0xff]
        %v4496 = vld [vmem:[#allocation2 + $0x10] sm:$0xff]
        %v4497 = vld [vmem:[#allocation2 + $0x18] sm:$0xff]
        %v4498 = vld [vmem:[#allocation2 + $0x20] sm:$0xff]
        %v4499 = vld [vmem:[#allocation2 + $0x28] sm:$0xff]
        %v4500 = vld [vmem:[#allocation2 + $0x30] sm:$0xff]
        %v4501 = vld [vmem:[#allocation2 + $0x38] sm:$0xff]
        %v4502 = vld [vmem:[#allocation2 + $0x40] sm:$0xff]
        %v4503 = vld [vmem:[#allocation2 + $0x48] sm:$0xff]
        %v4504 = vld [vmem:[#allocation2 + $0x50] sm:$0xff]
        %v4505 = vld [vmem:[#allocation2 + $0x58] sm:$0xff]
        %v4506 = vld [vmem:[#allocation2 + $0x60] sm:$0xff]
        %v4507 = vld [vmem:[#allocation2 + $0x68] sm:$0xff]
        %v4508 = vld [vmem:[#allocation2 + $0x70] sm:$0xff]
        %v4509 = vld [vmem:[#allocation2 + $0x78] sm:$0xff]
        %4510 = vadd.xlane.f32.xlu0 %v4494
        %v4511 = vpop.xlane.xlu0 %4510
        %4512 = vadd.xlane.f32.xlu0 %v4495
        %v4513 = vpop.xlane.xlu0 %4512
        %4514 = vadd.xlane.f32.xlu0 %v4496
        %v4515 = vpop.xlane.xlu0 %4514
        %4516 = vadd.xlane.f32.xlu0 %v4497
        %v4517 = vpop.xlane.xlu0 %4516
        %4518 = vadd.xlane.f32.xlu0 %v4498
        %v4519 = vpop.xlane.xlu0 %4518
        %4520 = vadd.xlane.f32.xlu0 %v4499
        %v4521 = vpop.xlane.xlu0 %4520
        %4522 = vadd.xlane.f32.xlu0 %v4500
        %v4523 = vpop.xlane.xlu0 %4522
        %4524 = vadd.xlane.f32.xlu0 %v4501
        %v4525 = vpop.xlane.xlu0 %4524
        %4526 = vadd.xlane.f32.xlu0 %v4502
        %v4527 = vpop.xlane.xlu0 %4526
        %4528 = vadd.xlane.f32.xlu0 %v4503
        %v4529 = vpop.xlane.xlu0 %4528
        %4530 = vadd.xlane.f32.xlu0 %v4504
        %v4531 = vpop.xlane.xlu0 %4530
        %4532 = vadd.xlane.f32.xlu0 %v4505
        %v4533 = vpop.xlane.xlu0 %4532
        %4534 = vadd.xlane.f32.xlu0 %v4506
        %v4535 = vpop.xlane.xlu0 %4534
        %4536 = vadd.xlane.f32.xlu0 %v4507
        %v4537 = vpop.xlane.xlu0 %4536
        %4538 = vadd.xlane.f32.xlu0 %v4508
        %v4539 = vpop.xlane.xlu0 %4538
        %4540 = vadd.xlane.f32.xlu0 %v4509
        %v4541 = vpop.xlane.xlu0 %4540
        %v4542 = vmul.f32 %v4511, %v662
        %v4543 = vmul.f32 %v4513, %v662
        %v4544 = vmul.f32 %v4515, %v662
        %v4545 = vmul.f32 %v4517, %v662
        %v4546 = vmul.f32 %v4519, %v662
        %v4547 = vmul.f32 %v4521, %v662
        %v4548 = vmul.f32 %v4523, %v662
        %v4549 = vmul.f32 %v4525, %v662
        %v4550 = vmul.f32 %v4527, %v662
        %v4551 = vmul.f32 %v4529, %v662
        %v4552 = vmul.f32 %v4531, %v662
        %v4553 = vmul.f32 %v4533, %v662
        %v4554 = vmul.f32 %v4535, %v662
        %v4555 = vmul.f32 %v4537, %v662
        %v4556 = vmul.f32 %v4539, %v662
        %v4557 = vmul.f32 %v4541, %v662
        %v4558 = vsub.f32 %v4494, %v4542
        %v4559 = vsub.f32 %v4495, %v4543
        %v4560 = vsub.f32 %v4496, %v4544
        %v4561 = vsub.f32 %v4497, %v4545
        %v4562 = vsub.f32 %v4498, %v4546
        %v4563 = vsub.f32 %v4499, %v4547
        %v4564 = vsub.f32 %v4500, %v4548
        %v4565 = vsub.f32 %v4501, %v4549
        %v4566 = vsub.f32 %v4502, %v4550
        %v4567 = vsub.f32 %v4503, %v4551
        %v4568 = vsub.f32 %v4504, %v4552
        %v4569 = vsub.f32 %v4505, %v4553
        %v4570 = vsub.f32 %v4506, %v4554
        %v4571 = vsub.f32 %v4507, %v4555
        %v4572 = vsub.f32 %v4508, %v4556
        %v4573 = vsub.f32 %v4509, %v4557
        %v4574 = vmul.f32 %v4558, %v4558
        %v4575 = vmul.f32 %v4559, %v4559
        %v4576 = vmul.f32 %v4560, %v4560
        %v4577 = vmul.f32 %v4561, %v4561
        %v4578 = vmul.f32 %v4562, %v4562
        %v4579 = vmul.f32 %v4563, %v4563
        %v4580 = vmul.f32 %v4564, %v4564
        %v4581 = vmul.f32 %v4565, %v4565
        %v4582 = vmul.f32 %v4566, %v4566
        %v4583 = vmul.f32 %v4567, %v4567
        %v4584 = vmul.f32 %v4568, %v4568
        %v4585 = vmul.f32 %v4569, %v4569
        %v4586 = vmul.f32 %v4570, %v4570
        %v4587 = vmul.f32 %v4571, %v4571
        %v4588 = vmul.f32 %v4572, %v4572
        %v4589 = vmul.f32 %v4573, %v4573
        %4590 = vadd.xlane.f32.xlu0 %v4574
        %v4591 = vpop.xlane.xlu0 %4590
        %4592 = vadd.xlane.f32.xlu0 %v4575
        %v4593 = vpop.xlane.xlu0 %4592
        %4594 = vadd.xlane.f32.xlu0 %v4576
        %v4595 = vpop.xlane.xlu0 %4594
        %4596 = vadd.xlane.f32.xlu0 %v4577
        %v4597 = vpop.xlane.xlu0 %4596
        %4598 = vadd.xlane.f32.xlu0 %v4578
        %v4599 = vpop.xlane.xlu0 %4598
        %4600 = vadd.xlane.f32.xlu0 %v4579
        %v4601 = vpop.xlane.xlu0 %4600
        %4602 = vadd.xlane.f32.xlu0 %v4580
        %v4603 = vpop.xlane.xlu0 %4602
        %4604 = vadd.xlane.f32.xlu0 %v4581
        %v4605 = vpop.xlane.xlu0 %4604
        %4606 = vadd.xlane.f32.xlu0 %v4582
        %v4607 = vpop.xlane.xlu0 %4606
        %4608 = vadd.xlane.f32.xlu0 %v4583
        %v4609 = vpop.xlane.xlu0 %4608
        %4610 = vadd.xlane.f32.xlu0 %v4584
        %v4611 = vpop.xlane.xlu0 %4610
        %4612 = vadd.xlane.f32.xlu0 %v4585
        %v4613 = vpop.xlane.xlu0 %4612
        %4614 = vadd.xlane.f32.xlu0 %v4586
        %v4615 = vpop.xlane.xlu0 %4614
        %4616 = vadd.xlane.f32.xlu0 %v4587
        %v4617 = vpop.xlane.xlu0 %4616
        %4618 = vadd.xlane.f32.xlu0 %v4588
        %v4619 = vpop.xlane.xlu0 %4618
        %4620 = vadd.xlane.f32.xlu0 %v4589
        %v4621 = vpop.xlane.xlu0 %4620
        %v4622 = vmul.f32 %v4591, %v662
        %v4623 = vmul.f32 %v4593, %v662
        %v4624 = vmul.f32 %v4595, %v662
        %v4625 = vmul.f32 %v4597, %v662
        %v4626 = vmul.f32 %v4599, %v662
        %v4627 = vmul.f32 %v4601, %v662
        %v4628 = vmul.f32 %v4603, %v662
        %v4629 = vmul.f32 %v4605, %v662
        %v4630 = vmul.f32 %v4607, %v662
        %v4631 = vmul.f32 %v4609, %v662
        %v4632 = vmul.f32 %v4611, %v662
        %v4633 = vmul.f32 %v4613, %v662
        %v4634 = vmul.f32 %v4615, %v662
        %v4635 = vmul.f32 %v4617, %v662
        %v4636 = vmul.f32 %v4619, %v662
        %v4637 = vmul.f32 %v4621, %v662
        %v4638 = vadd.f32 %v4622, 1e-05
        %v4639 = vadd.f32 %v4623, 1e-05
        %v4640 = vadd.f32 %v4624, 1e-05
        %v4641 = vadd.f32 %v4625, 1e-05
        %v4642 = vadd.f32 %v4626, 1e-05
        %v4643 = vadd.f32 %v4627, 1e-05
        %v4644 = vadd.f32 %v4628, 1e-05
        %v4645 = vadd.f32 %v4629, 1e-05
        %v4646 = vadd.f32 %v4630, 1e-05
        %v4647 = vadd.f32 %v4631, 1e-05
        %v4648 = vadd.f32 %v4632, 1e-05
        %v4649 = vadd.f32 %v4633, 1e-05
        %v4650 = vadd.f32 %v4634, 1e-05
        %v4651 = vadd.f32 %v4635, 1e-05
        %v4652 = vadd.f32 %v4636, 1e-05
        %v4653 = vadd.f32 %v4637, 1e-05
        %v4654 = vrsqrt.pop %v4638
        %v4655 = vrsqrt.pop %v4639
        %v4656 = vrsqrt.pop %v4640
        %v4657 = vrsqrt.pop %v4641
        %v4658 = vrsqrt.pop %v4642
        %v4659 = vrsqrt.pop %v4643
        %v4660 = vrsqrt.pop %v4644
        %v4661 = vrsqrt.pop %v4645
        %v4662 = vrsqrt.pop %v4646
        %v4663 = vrsqrt.pop %v4647
        %v4664 = vrsqrt.pop %v4648
        %v4665 = vrsqrt.pop %v4649
        %v4666 = vrsqrt.pop %v4650
        %v4667 = vrsqrt.pop %v4651
        %v4668 = vrsqrt.pop %v4652
        %v4669 = vrsqrt.pop %v4653
        %v4670 = vmul.f32 %v4558, %v4654
        %v4671 = vmul.f32 %v4559, %v4655
        %v4672 = vmul.f32 %v4560, %v4656
        %v4673 = vmul.f32 %v4561, %v4657
        %v4674 = vmul.f32 %v4562, %v4658
        %v4675 = vmul.f32 %v4563, %v4659
        %v4676 = vmul.f32 %v4564, %v4660
        %v4677 = vmul.f32 %v4565, %v4661
        %v4678 = vmul.f32 %v4566, %v4662
        %v4679 = vmul.f32 %v4567, %v4663
        %v4680 = vmul.f32 %v4568, %v4664
        %v4681 = vmul.f32 %v4569, %v4665
        %v4682 = vmul.f32 %v4570, %v4666
        %v4683 = vmul.f32 %v4571, %v4667
        %v4684 = vmul.f32 %v4572, %v4668
        %v4685 = vmul.f32 %v4573, %v4669
        %s4686 = scalar_lea.vmem %s3, 3
        %v4687 = vld [vmem:[%s4686] sm:$0x1]
        %v4689 = vlaneseq
        %v4690 = vshrl.u32 %v4689, 7
        %v4691 = vsub.s32 0, %v4690
        %v4692 = vrot.slane %v4687, %v4691
        %v4694 = vmul.f32 %v4670, %v4692
        %v4695 = vmul.f32 %v4671, %v4692
        %v4696 = vmul.f32 %v4672, %v4692
        %v4697 = vmul.f32 %v4673, %v4692
        %v4698 = vmul.f32 %v4674, %v4692
        %v4699 = vmul.f32 %v4675, %v4692
        %v4700 = vmul.f32 %v4676, %v4692
        %v4701 = vmul.f32 %v4677, %v4692
        %v4702 = vmul.f32 %v4678, %v4692
        %v4703 = vmul.f32 %v4679, %v4692
        %v4704 = vmul.f32 %v4680, %v4692
        %v4705 = vmul.f32 %v4681, %v4692
        %v4706 = vmul.f32 %v4682, %v4692
        %v4707 = vmul.f32 %v4683, %v4692
        %v4708 = vmul.f32 %v4684, %v4692
        %v4709 = vmul.f32 %v4685, %v4692
        %s4710 = scalar_lea.vmem %s4, 3
        %v4711 = vld [vmem:[%s4710] sm:$0x1]
        %v4713 = vlaneseq
        %v4714 = vshrl.u32 %v4713, 7
        %v4715 = vsub.s32 0, %v4714
        %v4716 = vrot.slane %v4711, %v4715
        %v4718 = vadd.f32 %v4694, %v4716
        %v4719 = vadd.f32 %v4695, %v4716
        %v4720 = vadd.f32 %v4696, %v4716
        %v4721 = vadd.f32 %v4697, %v4716
        %v4722 = vadd.f32 %v4698, %v4716
        %v4723 = vadd.f32 %v4699, %v4716
        %v4724 = vadd.f32 %v4700, %v4716
        %v4725 = vadd.f32 %v4701, %v4716
        %v4726 = vadd.f32 %v4702, %v4716
        %v4727 = vadd.f32 %v4703, %v4716
        %v4728 = vadd.f32 %v4704, %v4716
        %v4729 = vadd.f32 %v4705, %v4716
        %v4730 = vadd.f32 %v4706, %v4716
        %v4731 = vadd.f32 %v4707, %v4716
        %v4732 = vadd.f32 %v4708, %v4716
        %v4733 = vadd.f32 %v4709, %v4716
        %v4734 = vpack.c.bf16 %v4719, %v4718
        %v4735 = vpack.c.bf16 %v4721, %v4720
        %v4736 = vpack.c.bf16 %v4723, %v4722
        %v4737 = vpack.c.bf16 %v4725, %v4724
        %v4738 = vpack.c.bf16 %v4727, %v4726
        %v4739 = vpack.c.bf16 %v4729, %v4728
        %v4740 = vpack.c.bf16 %v4731, %v4730
        %v4741 = vpack.c.bf16 %v4733, %v4732
        %s4742 = scalar_lea.vmem %s5, 768
        %v4743 = vld [vmem:[%s4742] sm:$0xff]
        %v4744 = vld [vmem:[%s4742 + $0x10] sm:$0xff]
        %v4745 = vld [vmem:[%s4742 + $0x20] sm:$0xff]
        %v4746 = vld [vmem:[%s4742 + $0x30] sm:$0xff]
        %v4747 = vld [vmem:[%s4742 + $0x40] sm:$0xff]
        %v4748 = vld [vmem:[%s4742 + $0x50] sm:$0xff]
        %v4749 = vld [vmem:[%s4742 + $0x60] sm:$0xff]
        %v4750 = vld [vmem:[%s4742 + $0x70] sm:$0xff]
        %v4751 = vld [vmem:[%s4742 + $0x80] sm:$0xff]
        %v4752 = vld [vmem:[%s4742 + $0x90] sm:$0xff]
        %v4753 = vld [vmem:[%s4742 + $0xa0] sm:$0xff]
        %v4754 = vld [vmem:[%s4742 + $0xb0] sm:$0xff]
        %v4755 = vld [vmem:[%s4742 + $0xc0] sm:$0xff]
        %v4756 = vld [vmem:[%s4742 + $0xd0] sm:$0xff]
        %v4757 = vld [vmem:[%s4742 + $0xe0] sm:$0xff]
        %v4758 = vld [vmem:[%s4742 + $0xf0] sm:$0xff]
        %s4759 = scalar_lea.vmem %s6, 12
        %v4760 = vld [vmem:[%s4759] sm:$0x3]
        %v4762 = vlaneseq
        %v4763 = vshrl.u32 %v4762, 7
        %v4764 = vsub.s32 0, %v4763
        %v4765 = vrot.slane %v4760, %v4764
        %v4766 = vlaneseq
        %v4767 = vshrl.u32 %v4766, 7
        %v4768 = vsub.s32 1, %v4767
        %v4769 = vrot.slane %v4760, %v4768
        %v4788 = vunpack.c.l.b16 %v4743
        %v4789 = vunpack.c.h.b16 %v4743
        %v4790 = vunpack.c.l.b16 %v4744
        %v4791 = vunpack.c.h.b16 %v4744
        %v4792 = vunpack.c.l.b16 %v4745
        %v4793 = vunpack.c.h.b16 %v4745
        %v4794 = vunpack.c.l.b16 %v4746
        %v4795 = vunpack.c.h.b16 %v4746
        %v4796 = vunpack.c.l.b16 %v4747
        %v4797 = vunpack.c.h.b16 %v4747
        %v4798 = vunpack.c.l.b16 %v4748
        %v4799 = vunpack.c.h.b16 %v4748
        %v4800 = vunpack.c.l.b16 %v4749
        %v4801 = vunpack.c.h.b16 %v4749
        %v4802 = vunpack.c.l.b16 %v4750
        %v4803 = vunpack.c.h.b16 %v4750
        %v4804 = vunpack.c.l.b16 %v4751
        %v4805 = vunpack.c.h.b16 %v4751
        %v4806 = vunpack.c.l.b16 %v4752
        %v4807 = vunpack.c.h.b16 %v4752
        %v4808 = vunpack.c.l.b16 %v4753
        %v4809 = vunpack.c.h.b16 %v4753
        %v4810 = vunpack.c.l.b16 %v4754
        %v4811 = vunpack.c.h.b16 %v4754
        %v4812 = vunpack.c.l.b16 %v4755
        %v4813 = vunpack.c.h.b16 %v4755
        %v4814 = vunpack.c.l.b16 %v4756
        %v4815 = vunpack.c.h.b16 %v4756
        %v4816 = vunpack.c.l.b16 %v4757
        %v4817 = vunpack.c.h.b16 %v4757
        %v4818 = vunpack.c.l.b16 %v4758
        %v4819 = vunpack.c.h.b16 %v4758
        %v4820 = vpack.c.b16 %v4790, %v4788
        %v4821 = vpack.c.b16 %v4791, %v4789
        %v4822 = vpack.c.b16 %v4794, %v4792
        %v4823 = vpack.c.b16 %v4795, %v4793
        %v4824 = vpack.c.b16 %v4798, %v4796
        %v4825 = vpack.c.b16 %v4799, %v4797
        %v4826 = vpack.c.b16 %v4802, %v4800
        %v4827 = vpack.c.b16 %v4803, %v4801
        %v4828 = vpack.c.b16 %v4806, %v4804
        %v4829 = vpack.c.b16 %v4807, %v4805
        %v4830 = vpack.c.b16 %v4810, %v4808
        %v4831 = vpack.c.b16 %v4811, %v4809
        %v4832 = vpack.c.b16 %v4814, %v4812
        %v4833 = vpack.c.b16 %v4815, %v4813
        %v4834 = vpack.c.b16 %v4818, %v4816
        %v4835 = vpack.c.b16 %v4819, %v4817
        %4852 = vmatprep.subr.bf16.mxu0 %v4835
        %4853 = vmatpush1.bf16.msra.mxu0 %v4834
        %4854 = vmatprep.subr.bf16.mxu0 %v4833
        %4855 = vmatpush1.bf16.msra.mxu0 %v4832
        %4856 = vmatprep.subr.bf16.mxu0 %v4831
        %4857 = vmatpush1.bf16.msra.mxu0 %v4830
        %4858 = vmatprep.subr.bf16.mxu0 %v4829
        %4859 = vmatpush1.bf16.msra.mxu0 %v4828
        %4860 = vmatprep.subr.bf16.mxu0 %v4827
        %4861 = vmatpush1.bf16.msra.mxu0 %v4826
        %4862 = vmatprep.subr.bf16.mxu0 %v4825
        %4863 = vmatpush1.bf16.msra.mxu0 %v4824
        %4864 = vmatprep.subr.bf16.mxu0 %v4823
        %4865 = vmatpush1.bf16.msra.mxu0 %v4822
        %4866 = vmatprep.subr.bf16.mxu0 %v4821
        %4867 = vmatpush1.bf16.msra.mxu0 %v4820
        %4868 = vmatprep.subr.bf16.mxu0 0
        %4869 = vmatpush2.bf16.msra.mxu0 0
        %4870 = vmatprep.subr.bf16.mxu0 0
        %4871 = vmatpush2.bf16.msra.mxu0 0
        %4872 = vmatprep.subr.bf16.mxu0 0
        %4873 = vmatpush2.bf16.msra.mxu0 0
        %4874 = vmatprep.subr.bf16.mxu0 0
        %4875 = vmatpush2.bf16.msra.mxu0 0
        %4876 = vmatprep.subr.bf16.mxu0 0
        %4877 = vmatpush2.bf16.msra.mxu0 0
        %4878 = vmatprep.subr.bf16.mxu0 0
        %4879 = vmatpush2.bf16.msra.mxu0 0
        %4880 = vmatprep.subr.bf16.mxu0 0
        %4881 = vmatpush2.bf16.msra.mxu0 0
        %4882 = vmatprep.subr.bf16.mxu0 0
        %4883 = vmatpush2.bf16.msra.mxu0 0
        %4884 = vmatprep.mubr.bf16.mxu0 0
        %4885 = vmatmul.mubr.bf16.gmra.mxu0 %v4734
        %v4886 = vpop.f32.mrf.mxu0
        %v4887 = vadd.f32 %v4765, %v4886
        %v4888 = vpop.f32.mrf.mxu0
        %v4889 = vadd.f32 %v4769, %v4888
        %v4890 = vpop.f32.mrf.mxu0
        %v4891 = vadd.f32 %v4765, %v4890
        %v4892 = vpop.f32.mrf.mxu0
        %v4893 = vadd.f32 %v4769, %v4892
        %4894 = vmatprep.mubr.bf16.mxu0 0
        %4895 = vmatmul.mubr.bf16.gmra.mxu0 %v4735
        %v4896 = vpop.f32.mrf.mxu0
        %v4897 = vadd.f32 %v4765, %v4896
        %v4898 = vpop.f32.mrf.mxu0
        %v4899 = vadd.f32 %v4769, %v4898
        %v4900 = vpop.f32.mrf.mxu0
        %v4901 = vadd.f32 %v4765, %v4900
        %v4902 = vpop.f32.mrf.mxu0
        %v4903 = vadd.f32 %v4769, %v4902
        %4904 = vmatprep.mubr.bf16.mxu0 0
        %4905 = vmatmul.mubr.bf16.gmra.mxu0 %v4736
        %v4906 = vpop.f32.mrf.mxu0
        %v4907 = vadd.f32 %v4765, %v4906
        %v4908 = vpop.f32.mrf.mxu0
        %v4909 = vadd.f32 %v4769, %v4908
        %v4910 = vpop.f32.mrf.mxu0
        %v4911 = vadd.f32 %v4765, %v4910
        %v4912 = vpop.f32.mrf.mxu0
        %v4913 = vadd.f32 %v4769, %v4912
        %4914 = vmatprep.mubr.bf16.mxu0 0
        %4915 = vmatmul.mubr.bf16.gmra.mxu0 %v4737
        %v4916 = vpop.f32.mrf.mxu0
        %v4917 = vadd.f32 %v4765, %v4916
        %v4918 = vpop.f32.mrf.mxu0
        %v4919 = vadd.f32 %v4769, %v4918
        %v4920 = vpop.f32.mrf.mxu0
        %v4921 = vadd.f32 %v4765, %v4920
        %v4922 = vpop.f32.mrf.mxu0
        %v4923 = vadd.f32 %v4769, %v4922
        %4924 = vmatprep.mubr.bf16.mxu0 0
        %4925 = vmatmul.mubr.bf16.gmra.mxu0 %v4738
        %v4926 = vpop.f32.mrf.mxu0
        %v4927 = vadd.f32 %v4765, %v4926
        %v4928 = vpop.f32.mrf.mxu0
        %v4929 = vadd.f32 %v4769, %v4928
        %v4930 = vpop.f32.mrf.mxu0
        %v4931 = vadd.f32 %v4765, %v4930
        %v4932 = vpop.f32.mrf.mxu0
        %v4933 = vadd.f32 %v4769, %v4932
        %4934 = vmatprep.mubr.bf16.mxu0 0
        %4935 = vmatmul.mubr.bf16.gmra.mxu0 %v4739
        %v4936 = vpop.f32.mrf.mxu0
        %v4937 = vadd.f32 %v4765, %v4936
        %v4938 = vpop.f32.mrf.mxu0
        %v4939 = vadd.f32 %v4769, %v4938
        %v4940 = vpop.f32.mrf.mxu0
        %v4941 = vadd.f32 %v4765, %v4940
        %v4942 = vpop.f32.mrf.mxu0
        %v4943 = vadd.f32 %v4769, %v4942
        %4944 = vmatprep.mubr.bf16.mxu0 0
        %4945 = vmatmul.mubr.bf16.gmra.mxu0 %v4740
        %v4946 = vpop.f32.mrf.mxu0
        %v4947 = vadd.f32 %v4765, %v4946
        %v4948 = vpop.f32.mrf.mxu0
        %v4949 = vadd.f32 %v4769, %v4948
        %v4950 = vpop.f32.mrf.mxu0
        %v4951 = vadd.f32 %v4765, %v4950
        %v4952 = vpop.f32.mrf.mxu0
        %v4953 = vadd.f32 %v4769, %v4952
        %4954 = vmatprep.mubr.bf16.mxu0 0
        %4955 = vmatmul.mubr.bf16.gmra.mxu0 %v4741
        %v4956 = vpop.f32.mrf.mxu0
        %v4957 = vadd.f32 %v4765, %v4956
        %v4958 = vpop.f32.mrf.mxu0
        %v4959 = vadd.f32 %v4769, %v4958
        %v4960 = vpop.f32.mrf.mxu0
        %v4961 = vadd.f32 %v4765, %v4960
        %v4962 = vpop.f32.mrf.mxu0
        %v4963 = vadd.f32 %v4769, %v4962
        %4964 = vdwg.mxu0
        %v4965 = vmax.f32 %v4887, 0.0
        %v4966 = vmax.f32 %v4889, 0.0
        %v4967 = vmax.f32 %v4891, 0.0
        %v4968 = vmax.f32 %v4893, 0.0
        %v4969 = vmax.f32 %v4897, 0.0
        %v4970 = vmax.f32 %v4899, 0.0
        %v4971 = vmax.f32 %v4901, 0.0
        %v4972 = vmax.f32 %v4903, 0.0
        %v4973 = vmax.f32 %v4907, 0.0
        %v4974 = vmax.f32 %v4909, 0.0
        %v4975 = vmax.f32 %v4911, 0.0
        %v4976 = vmax.f32 %v4913, 0.0
        %v4977 = vmax.f32 %v4917, 0.0
        %v4978 = vmax.f32 %v4919, 0.0
        %v4979 = vmax.f32 %v4921, 0.0
        %v4980 = vmax.f32 %v4923, 0.0
        %v4981 = vmax.f32 %v4927, 0.0
        %v4982 = vmax.f32 %v4929, 0.0
        %v4983 = vmax.f32 %v4931, 0.0
        %v4984 = vmax.f32 %v4933, 0.0
        %v4985 = vmax.f32 %v4937, 0.0
        %v4986 = vmax.f32 %v4939, 0.0
        %v4987 = vmax.f32 %v4941, 0.0
        %v4988 = vmax.f32 %v4943, 0.0
        %v4989 = vmax.f32 %v4947, 0.0
        %v4990 = vmax.f32 %v4949, 0.0
        %v4991 = vmax.f32 %v4951, 0.0
        %v4992 = vmax.f32 %v4953, 0.0
        %v4993 = vmax.f32 %v4957, 0.0
        %v4994 = vmax.f32 %v4959, 0.0
        %v4995 = vmax.f32 %v4961, 0.0
        %v4996 = vmax.f32 %v4963, 0.0
        %v4997 = vpack.c.bf16 %v4967, %v4965
        %v4998 = vpack.c.bf16 %v4968, %v4966
        %v4999 = vpack.c.bf16 %v4971, %v4969
        %v5000 = vpack.c.bf16 %v4972, %v4970
        %v5001 = vpack.c.bf16 %v4975, %v4973
        %v5002 = vpack.c.bf16 %v4976, %v4974
        %v5003 = vpack.c.bf16 %v4979, %v4977
        %v5004 = vpack.c.bf16 %v4980, %v4978
        %v5005 = vpack.c.bf16 %v4983, %v4981
        %v5006 = vpack.c.bf16 %v4984, %v4982
        %v5007 = vpack.c.bf16 %v4987, %v4985
        %v5008 = vpack.c.bf16 %v4988, %v4986
        %v5009 = vpack.c.bf16 %v4991, %v4989
        %v5010 = vpack.c.bf16 %v4992, %v4990
        %v5011 = vpack.c.bf16 %v4995, %v4993
        %v5012 = vpack.c.bf16 %v4996, %v4994
        %s5013 = scalar_lea.vmem [#allocation3], 768
        %v5014 = vld [vmem:[%s5013] sm:$0xf]
        %v5015 = vld [vmem:[%s5013 + $0x4] sm:$0xf]
        %v5016 = vld [vmem:[%s5013 + $0x8] sm:$0xf]
        %v5017 = vld [vmem:[%s5013 + $0xc] sm:$0xf]
        %v5018 = vld [vmem:[%s5013 + $0x10] sm:$0xf]
        %v5019 = vld [vmem:[%s5013 + $0x14] sm:$0xf]
        %v5020 = vld [vmem:[%s5013 + $0x18] sm:$0xf]
        %v5021 = vld [vmem:[%s5013 + $0x1c] sm:$0xf]
        %v5022 = vld [vmem:[%s5013 + $0x20] sm:$0xf]
        %v5023 = vld [vmem:[%s5013 + $0x24] sm:$0xf]
        %v5024 = vld [vmem:[%s5013 + $0x28] sm:$0xf]
        %v5025 = vld [vmem:[%s5013 + $0x2c] sm:$0xf]
        %v5026 = vld [vmem:[%s5013 + $0x30] sm:$0xf]
        %v5027 = vld [vmem:[%s5013 + $0x34] sm:$0xf]
        %v5028 = vld [vmem:[%s5013 + $0x38] sm:$0xf]
        %v5029 = vld [vmem:[%s5013 + $0x3c] sm:$0xf]
        %v5030 = vld [vmem:[%s5013 + $0x40] sm:$0xf]
        %v5031 = vld [vmem:[%s5013 + $0x44] sm:$0xf]
        %v5032 = vld [vmem:[%s5013 + $0x48] sm:$0xf]
        %v5033 = vld [vmem:[%s5013 + $0x4c] sm:$0xf]
        %v5034 = vld [vmem:[%s5013 + $0x50] sm:$0xf]
        %v5035 = vld [vmem:[%s5013 + $0x54] sm:$0xf]
        %v5036 = vld [vmem:[%s5013 + $0x58] sm:$0xf]
        %v5037 = vld [vmem:[%s5013 + $0x5c] sm:$0xf]
        %v5038 = vld [vmem:[%s5013 + $0x60] sm:$0xf]
        %v5039 = vld [vmem:[%s5013 + $0x64] sm:$0xf]
        %v5040 = vld [vmem:[%s5013 + $0x68] sm:$0xf]
        %v5041 = vld [vmem:[%s5013 + $0x6c] sm:$0xf]
        %v5042 = vld [vmem:[%s5013 + $0x70] sm:$0xf]
        %v5043 = vld [vmem:[%s5013 + $0x74] sm:$0xf]
        %v5044 = vld [vmem:[%s5013 + $0x78] sm:$0xf]
        %v5045 = vld [vmem:[%s5013 + $0x7c] sm:$0xf]
        %v5046 = vld [vmem:[%s4742 + $0x8] sm:$0xff]
        %v5047 = vld [vmem:[%s4742 + $0x18] sm:$0xff]
        %v5048 = vld [vmem:[%s4742 + $0x28] sm:$0xff]
        %v5049 = vld [vmem:[%s4742 + $0x38] sm:$0xff]
        %v5050 = vld [vmem:[%s4742 + $0x48] sm:$0xff]
        %v5051 = vld [vmem:[%s4742 + $0x58] sm:$0xff]
        %v5052 = vld [vmem:[%s4742 + $0x68] sm:$0xff]
        %v5053 = vld [vmem:[%s4742 + $0x78] sm:$0xff]
        %v5054 = vld [vmem:[%s4742 + $0x88] sm:$0xff]
        %v5055 = vld [vmem:[%s4742 + $0x98] sm:$0xff]
        %v5056 = vld [vmem:[%s4742 + $0xa8] sm:$0xff]
        %v5057 = vld [vmem:[%s4742 + $0xb8] sm:$0xff]
        %v5058 = vld [vmem:[%s4742 + $0xc8] sm:$0xff]
        %v5059 = vld [vmem:[%s4742 + $0xd8] sm:$0xff]
        %v5060 = vld [vmem:[%s4742 + $0xe8] sm:$0xff]
        %v5061 = vld [vmem:[%s4742 + $0xf8] sm:$0xff]
        %v5062 = vld [vmem:[%s4759 + $0x2] sm:$0x3]
        %v5064 = vlaneseq
        %v5065 = vshrl.u32 %v5064, 7
        %v5066 = vsub.s32 0, %v5065
        %v5067 = vrot.slane %v5062, %v5066
        %v5068 = vlaneseq
        %v5069 = vshrl.u32 %v5068, 7
        %v5070 = vsub.s32 1, %v5069
        %v5071 = vrot.slane %v5062, %v5070
        %v5090 = vunpack.c.l.b16 %v5046
        %v5091 = vunpack.c.h.b16 %v5046
        %v5092 = vunpack.c.l.b16 %v5047
        %v5093 = vunpack.c.h.b16 %v5047
        %v5094 = vunpack.c.l.b16 %v5048
        %v5095 = vunpack.c.h.b16 %v5048
        %v5096 = vunpack.c.l.b16 %v5049
        %v5097 = vunpack.c.h.b16 %v5049
        %v5098 = vunpack.c.l.b16 %v5050
        %v5099 = vunpack.c.h.b16 %v5050
        %v5100 = vunpack.c.l.b16 %v5051
        %v5101 = vunpack.c.h.b16 %v5051
        %v5102 = vunpack.c.l.b16 %v5052
        %v5103 = vunpack.c.h.b16 %v5052
        %v5104 = vunpack.c.l.b16 %v5053
        %v5105 = vunpack.c.h.b16 %v5053
        %v5106 = vunpack.c.l.b16 %v5054
        %v5107 = vunpack.c.h.b16 %v5054
        %v5108 = vunpack.c.l.b16 %v5055
        %v5109 = vunpack.c.h.b16 %v5055
        %v5110 = vunpack.c.l.b16 %v5056
        %v5111 = vunpack.c.h.b16 %v5056
        %v5112 = vunpack.c.l.b16 %v5057
        %v5113 = vunpack.c.h.b16 %v5057
        %v5114 = vunpack.c.l.b16 %v5058
        %v5115 = vunpack.c.h.b16 %v5058
        %v5116 = vunpack.c.l.b16 %v5059
        %v5117 = vunpack.c.h.b16 %v5059
        %v5118 = vunpack.c.l.b16 %v5060
        %v5119 = vunpack.c.h.b16 %v5060
        %v5120 = vunpack.c.l.b16 %v5061
        %v5121 = vunpack.c.h.b16 %v5061
        %v5122 = vpack.c.b16 %v5092, %v5090
        %v5123 = vpack.c.b16 %v5093, %v5091
        %v5124 = vpack.c.b16 %v5096, %v5094
        %v5125 = vpack.c.b16 %v5097, %v5095
        %v5126 = vpack.c.b16 %v5100, %v5098
        %v5127 = vpack.c.b16 %v5101, %v5099
        %v5128 = vpack.c.b16 %v5104, %v5102
        %v5129 = vpack.c.b16 %v5105, %v5103
        %v5130 = vpack.c.b16 %v5108, %v5106
        %v5131 = vpack.c.b16 %v5109, %v5107
        %v5132 = vpack.c.b16 %v5112, %v5110
        %v5133 = vpack.c.b16 %v5113, %v5111
        %v5134 = vpack.c.b16 %v5116, %v5114
        %v5135 = vpack.c.b16 %v5117, %v5115
        %v5136 = vpack.c.b16 %v5120, %v5118
        %v5137 = vpack.c.b16 %v5121, %v5119
        %5154 = vmatprep.subr.bf16.mxu0 %v5137
        %5155 = vmatpush1.bf16.msra.mxu0 %v5136
        %5156 = vmatprep.subr.bf16.mxu0 %v5135
        %5157 = vmatpush1.bf16.msra.mxu0 %v5134
        %5158 = vmatprep.subr.bf16.mxu0 %v5133
        %5159 = vmatpush1.bf16.msra.mxu0 %v5132
        %5160 = vmatprep.subr.bf16.mxu0 %v5131
        %5161 = vmatpush1.bf16.msra.mxu0 %v5130
        %5162 = vmatprep.subr.bf16.mxu0 %v5129
        %5163 = vmatpush1.bf16.msra.mxu0 %v5128
        %5164 = vmatprep.subr.bf16.mxu0 %v5127
        %5165 = vmatpush1.bf16.msra.mxu0 %v5126
        %5166 = vmatprep.subr.bf16.mxu0 %v5125
        %5167 = vmatpush1.bf16.msra.mxu0 %v5124
        %5168 = vmatprep.subr.bf16.mxu0 %v5123
        %5169 = vmatpush1.bf16.msra.mxu0 %v5122
        %5170 = vmatprep.subr.bf16.mxu0 0
        %5171 = vmatpush2.bf16.msra.mxu0 0
        %5172 = vmatprep.subr.bf16.mxu0 0
        %5173 = vmatpush2.bf16.msra.mxu0 0
        %5174 = vmatprep.subr.bf16.mxu0 0
        %5175 = vmatpush2.bf16.msra.mxu0 0
        %5176 = vmatprep.subr.bf16.mxu0 0
        %5177 = vmatpush2.bf16.msra.mxu0 0
        %5178 = vmatprep.subr.bf16.mxu0 0
        %5179 = vmatpush2.bf16.msra.mxu0 0
        %5180 = vmatprep.subr.bf16.mxu0 0
        %5181 = vmatpush2.bf16.msra.mxu0 0
        %5182 = vmatprep.subr.bf16.mxu0 0
        %5183 = vmatpush2.bf16.msra.mxu0 0
        %5184 = vmatprep.subr.bf16.mxu0 0
        %5185 = vmatpush2.bf16.msra.mxu0 0
        %5186 = vmatprep.mubr.bf16.mxu0 0
        %5187 = vmatmul.mubr.bf16.gmra.mxu0 %v4734
        %v5188 = vpop.f32.mrf.mxu0
        %v5189 = vadd.f32 %v5067, %v5188
        %v5190 = vpop.f32.mrf.mxu0
        %v5191 = vadd.f32 %v5071, %v5190
        %v5192 = vpop.f32.mrf.mxu0
        %v5193 = vadd.f32 %v5067, %v5192
        %v5194 = vpop.f32.mrf.mxu0
        %v5195 = vadd.f32 %v5071, %v5194
        %5196 = vmatprep.mubr.bf16.mxu0 0
        %5197 = vmatmul.mubr.bf16.gmra.mxu0 %v4735
        %v5198 = vpop.f32.mrf.mxu0
        %v5199 = vadd.f32 %v5067, %v5198
        %v5200 = vpop.f32.mrf.mxu0
        %v5201 = vadd.f32 %v5071, %v5200
        %v5202 = vpop.f32.mrf.mxu0
        %v5203 = vadd.f32 %v5067, %v5202
        %v5204 = vpop.f32.mrf.mxu0
        %v5205 = vadd.f32 %v5071, %v5204
        %5206 = vmatprep.mubr.bf16.mxu0 0
        %5207 = vmatmul.mubr.bf16.gmra.mxu0 %v4736
        %v5208 = vpop.f32.mrf.mxu0
        %v5209 = vadd.f32 %v5067, %v5208
        %v5210 = vpop.f32.mrf.mxu0
        %v5211 = vadd.f32 %v5071, %v5210
        %v5212 = vpop.f32.mrf.mxu0
        %v5213 = vadd.f32 %v5067, %v5212
        %v5214 = vpop.f32.mrf.mxu0
        %v5215 = vadd.f32 %v5071, %v5214
        %5216 = vmatprep.mubr.bf16.mxu0 0
        %5217 = vmatmul.mubr.bf16.gmra.mxu0 %v4737
        %v5218 = vpop.f32.mrf.mxu0
        %v5219 = vadd.f32 %v5067, %v5218
        %v5220 = vpop.f32.mrf.mxu0
        %v5221 = vadd.f32 %v5071, %v5220
        %v5222 = vpop.f32.mrf.mxu0
        %v5223 = vadd.f32 %v5067, %v5222
        %v5224 = vpop.f32.mrf.mxu0
        %v5225 = vadd.f32 %v5071, %v5224
        %5226 = vmatprep.mubr.bf16.mxu0 0
        %5227 = vmatmul.mubr.bf16.gmra.mxu0 %v4738
        %v5228 = vpop.f32.mrf.mxu0
        %v5229 = vadd.f32 %v5067, %v5228
        %v5230 = vpop.f32.mrf.mxu0
        %v5231 = vadd.f32 %v5071, %v5230
        %v5232 = vpop.f32.mrf.mxu0
        %v5233 = vadd.f32 %v5067, %v5232
        %v5234 = vpop.f32.mrf.mxu0
        %v5235 = vadd.f32 %v5071, %v5234
        %5236 = vmatprep.mubr.bf16.mxu0 0
        %5237 = vmatmul.mubr.bf16.gmra.mxu0 %v4739
        %v5238 = vpop.f32.mrf.mxu0
        %v5239 = vadd.f32 %v5067, %v5238
        %v5240 = vpop.f32.mrf.mxu0
        %v5241 = vadd.f32 %v5071, %v5240
        %v5242 = vpop.f32.mrf.mxu0
        %v5243 = vadd.f32 %v5067, %v5242
        %v5244 = vpop.f32.mrf.mxu0
        %v5245 = vadd.f32 %v5071, %v5244
        %5246 = vmatprep.mubr.bf16.mxu0 0
        %5247 = vmatmul.mubr.bf16.gmra.mxu0 %v4740
        %v5248 = vpop.f32.mrf.mxu0
        %v5249 = vadd.f32 %v5067, %v5248
        %v5250 = vpop.f32.mrf.mxu0
        %v5251 = vadd.f32 %v5071, %v5250
        %v5252 = vpop.f32.mrf.mxu0
        %v5253 = vadd.f32 %v5067, %v5252
        %v5254 = vpop.f32.mrf.mxu0
        %v5255 = vadd.f32 %v5071, %v5254
        %5256 = vmatprep.mubr.bf16.mxu0 0
        %5257 = vmatmul.mubr.bf16.gmra.mxu0 %v4741
        %v5258 = vpop.f32.mrf.mxu0
        %v5259 = vadd.f32 %v5067, %v5258
        %v5260 = vpop.f32.mrf.mxu0
        %v5261 = vadd.f32 %v5071, %v5260
        %v5262 = vpop.f32.mrf.mxu0
        %v5263 = vadd.f32 %v5067, %v5262
        %v5264 = vpop.f32.mrf.mxu0
        %v5265 = vadd.f32 %v5071, %v5264
        %5266 = vdwg.mxu0
        %v5267 = vmax.f32 %v5189, 0.0
        %v5268 = vmax.f32 %v5191, 0.0
        %v5269 = vmax.f32 %v5193, 0.0
        %v5270 = vmax.f32 %v5195, 0.0
        %v5271 = vmax.f32 %v5199, 0.0
        %v5272 = vmax.f32 %v5201, 0.0
        %v5273 = vmax.f32 %v5203, 0.0
        %v5274 = vmax.f32 %v5205, 0.0
        %v5275 = vmax.f32 %v5209, 0.0
        %v5276 = vmax.f32 %v5211, 0.0
        %v5277 = vmax.f32 %v5213, 0.0
        %v5278 = vmax.f32 %v5215, 0.0
        %v5279 = vmax.f32 %v5219, 0.0
        %v5280 = vmax.f32 %v5221, 0.0
        %v5281 = vmax.f32 %v5223, 0.0
        %v5282 = vmax.f32 %v5225, 0.0
        %v5283 = vmax.f32 %v5229, 0.0
        %v5284 = vmax.f32 %v5231, 0.0
        %v5285 = vmax.f32 %v5233, 0.0
        %v5286 = vmax.f32 %v5235, 0.0
        %v5287 = vmax.f32 %v5239, 0.0
        %v5288 = vmax.f32 %v5241, 0.0
        %v5289 = vmax.f32 %v5243, 0.0
        %v5290 = vmax.f32 %v5245, 0.0
        %v5291 = vmax.f32 %v5249, 0.0
        %v5292 = vmax.f32 %v5251, 0.0
        %v5293 = vmax.f32 %v5253, 0.0
        %v5294 = vmax.f32 %v5255, 0.0
        %v5295 = vmax.f32 %v5259, 0.0
        %v5296 = vmax.f32 %v5261, 0.0
        %v5297 = vmax.f32 %v5263, 0.0
        %v5298 = vmax.f32 %v5265, 0.0
        %v5299 = vpack.c.bf16 %v5269, %v5267
        %v5300 = vpack.c.bf16 %v5270, %v5268
        %v5301 = vpack.c.bf16 %v5273, %v5271
        %v5302 = vpack.c.bf16 %v5274, %v5272
        %v5303 = vpack.c.bf16 %v5277, %v5275
        %v5304 = vpack.c.bf16 %v5278, %v5276
        %v5305 = vpack.c.bf16 %v5281, %v5279
        %v5306 = vpack.c.bf16 %v5282, %v5280
        %v5307 = vpack.c.bf16 %v5285, %v5283
        %v5308 = vpack.c.bf16 %v5286, %v5284
        %v5309 = vpack.c.bf16 %v5289, %v5287
        %v5310 = vpack.c.bf16 %v5290, %v5288
        %v5311 = vpack.c.bf16 %v5293, %v5291
        %v5312 = vpack.c.bf16 %v5294, %v5292
        %v5313 = vpack.c.bf16 %v5297, %v5295
        %v5314 = vpack.c.bf16 %v5298, %v5296
        %v5315 = vld [vmem:[%s5013 + $0x80] sm:$0xf]
        %v5316 = vld [vmem:[%s5013 + $0x84] sm:$0xf]
        %v5317 = vld [vmem:[%s5013 + $0x88] sm:$0xf]
        %v5318 = vld [vmem:[%s5013 + $0x8c] sm:$0xf]
        %v5319 = vld [vmem:[%s5013 + $0x90] sm:$0xf]
        %v5320 = vld [vmem:[%s5013 + $0x94] sm:$0xf]
        %v5321 = vld [vmem:[%s5013 + $0x98] sm:$0xf]
        %v5322 = vld [vmem:[%s5013 + $0x9c] sm:$0xf]
        %v5323 = vld [vmem:[%s5013 + $0xa0] sm:$0xf]
        %v5324 = vld [vmem:[%s5013 + $0xa4] sm:$0xf]
        %v5325 = vld [vmem:[%s5013 + $0xa8] sm:$0xf]
        %v5326 = vld [vmem:[%s5013 + $0xac] sm:$0xf]
        %v5327 = vld [vmem:[%s5013 + $0xb0] sm:$0xf]
        %v5328 = vld [vmem:[%s5013 + $0xb4] sm:$0xf]
        %v5329 = vld [vmem:[%s5013 + $0xb8] sm:$0xf]
        %v5330 = vld [vmem:[%s5013 + $0xbc] sm:$0xf]
        %v5331 = vld [vmem:[%s5013 + $0xc0] sm:$0xf]
        %v5332 = vld [vmem:[%s5013 + $0xc4] sm:$0xf]
        %v5333 = vld [vmem:[%s5013 + $0xc8] sm:$0xf]
        %v5334 = vld [vmem:[%s5013 + $0xcc] sm:$0xf]
        %v5335 = vld [vmem:[%s5013 + $0xd0] sm:$0xf]
        %v5336 = vld [vmem:[%s5013 + $0xd4] sm:$0xf]
        %v5337 = vld [vmem:[%s5013 + $0xd8] sm:$0xf]
        %v5338 = vld [vmem:[%s5013 + $0xdc] sm:$0xf]
        %v5339 = vld [vmem:[%s5013 + $0xe0] sm:$0xf]
        %v5340 = vld [vmem:[%s5013 + $0xe4] sm:$0xf]
        %v5341 = vld [vmem:[%s5013 + $0xe8] sm:$0xf]
        %v5342 = vld [vmem:[%s5013 + $0xec] sm:$0xf]
        %v5343 = vld [vmem:[%s5013 + $0xf0] sm:$0xf]
        %v5344 = vld [vmem:[%s5013 + $0xf4] sm:$0xf]
        %v5345 = vld [vmem:[%s5013 + $0xf8] sm:$0xf]
        %v5346 = vld [vmem:[%s5013 + $0xfc] sm:$0xf]
        %v5379 = vunpack.c.l.b16 %v5315
        %v5380 = vunpack.c.l.b16 %v5316
        %v5381 = vunpack.c.l.b16 %v5317
        %v5382 = vunpack.c.l.b16 %v5318
        %v5383 = vunpack.c.l.b16 %v5319
        %v5384 = vunpack.c.l.b16 %v5320
        %v5385 = vunpack.c.l.b16 %v5321
        %v5386 = vunpack.c.l.b16 %v5322
        %v5387 = vunpack.c.l.b16 %v5323
        %v5388 = vunpack.c.l.b16 %v5324
        %v5389 = vunpack.c.l.b16 %v5325
        %v5390 = vunpack.c.l.b16 %v5326
        %v5391 = vunpack.c.l.b16 %v5327
        %v5392 = vunpack.c.l.b16 %v5328
        %v5393 = vunpack.c.l.b16 %v5329
        %v5394 = vunpack.c.l.b16 %v5330
        %v5395 = vunpack.c.l.b16 %v5331
        %v5396 = vunpack.c.l.b16 %v5332
        %v5397 = vunpack.c.l.b16 %v5333
        %v5398 = vunpack.c.l.b16 %v5334
        %v5399 = vunpack.c.l.b16 %v5335
        %v5400 = vunpack.c.l.b16 %v5336
        %v5401 = vunpack.c.l.b16 %v5337
        %v5402 = vunpack.c.l.b16 %v5338
        %v5403 = vunpack.c.l.b16 %v5339
        %v5404 = vunpack.c.l.b16 %v5340
        %v5405 = vunpack.c.l.b16 %v5341
        %v5406 = vunpack.c.l.b16 %v5342
        %v5407 = vunpack.c.l.b16 %v5343
        %v5408 = vunpack.c.l.b16 %v5344
        %v5409 = vunpack.c.l.b16 %v5345
        %v5410 = vunpack.c.l.b16 %v5346
        %v5411 = vpack.c.b16 %v5380, %v5379
        %v5412 = vpack.c.b16 %v5382, %v5381
        %v5413 = vpack.c.b16 %v5384, %v5383
        %v5414 = vpack.c.b16 %v5386, %v5385
        %v5415 = vpack.c.b16 %v5388, %v5387
        %v5416 = vpack.c.b16 %v5390, %v5389
        %v5417 = vpack.c.b16 %v5392, %v5391
        %v5418 = vpack.c.b16 %v5394, %v5393
        %v5419 = vpack.c.b16 %v5396, %v5395
        %v5420 = vpack.c.b16 %v5398, %v5397
        %v5421 = vpack.c.b16 %v5400, %v5399
        %v5422 = vpack.c.b16 %v5402, %v5401
        %v5423 = vpack.c.b16 %v5404, %v5403
        %v5424 = vpack.c.b16 %v5406, %v5405
        %v5425 = vpack.c.b16 %v5408, %v5407
        %v5426 = vpack.c.b16 %v5410, %v5409
        %5443 = vmatprep.subr.bf16.mxu0 0
        %5444 = vmatpush1.bf16.msra.mxu0 %v5418
        %5445 = vmatprep.subr.bf16.mxu0 0
        %5446 = vmatpush1.bf16.msra.mxu0 %v5417
        %5447 = vmatprep.subr.bf16.mxu0 0
        %5448 = vmatpush1.bf16.msra.mxu0 %v5416
        %5449 = vmatprep.subr.bf16.mxu0 0
        %5450 = vmatpush1.bf16.msra.mxu0 %v5415
        %5451 = vmatprep.subr.bf16.mxu0 0
        %5452 = vmatpush1.bf16.msra.mxu0 %v5414
        %5453 = vmatprep.subr.bf16.mxu0 0
        %5454 = vmatpush1.bf16.msra.mxu0 %v5413
        %5455 = vmatprep.subr.bf16.mxu0 0
        %5456 = vmatpush1.bf16.msra.mxu0 %v5412
        %5457 = vmatprep.subr.bf16.mxu0 0
        %5458 = vmatpush1.bf16.msra.mxu0 %v5411
        %5459 = vmatprep.subr.bf16.mxu0 0
        %5460 = vmatpush2.bf16.msra.mxu0 %v5426
        %5461 = vmatprep.subr.bf16.mxu0 0
        %5462 = vmatpush2.bf16.msra.mxu0 %v5425
        %5463 = vmatprep.subr.bf16.mxu0 0
        %5464 = vmatpush2.bf16.msra.mxu0 %v5424
        %5465 = vmatprep.subr.bf16.mxu0 0
        %5466 = vmatpush2.bf16.msra.mxu0 %v5423
        %5467 = vmatprep.subr.bf16.mxu0 0
        %5468 = vmatpush2.bf16.msra.mxu0 %v5422
        %5469 = vmatprep.subr.bf16.mxu0 0
        %5470 = vmatpush2.bf16.msra.mxu0 %v5421
        %5471 = vmatprep.subr.bf16.mxu0 0
        %5472 = vmatpush2.bf16.msra.mxu0 %v5420
        %5473 = vmatprep.subr.bf16.mxu0 0
        %5474 = vmatpush2.bf16.msra.mxu0 %v5419
        %5475 = vmatprep.mubr.bf16.mxu0 %v5300
        %5476 = vmatmul.mubr.bf16.gmra.mxu0 %v5299
        %v5477 = vpop.f32.mrf.mxu0
        %v5478 = vadd.f32 0.0, %v5477
        %v5479 = vpop.f32.mrf.mxu0
        %v5480 = vpop.f32.mrf.mxu0
        %v5481 = vadd.f32 0.0, %v5480
        %v5482 = vpop.f32.mrf.mxu0
        %5483 = vmatprep.mubr.bf16.mxu0 %v5302
        %5484 = vmatmul.mubr.bf16.gmra.mxu0 %v5301
        %v5485 = vpop.f32.mrf.mxu0
        %v5486 = vadd.f32 0.0, %v5485
        %v5487 = vpop.f32.mrf.mxu0
        %v5488 = vpop.f32.mrf.mxu0
        %v5489 = vadd.f32 0.0, %v5488
        %v5490 = vpop.f32.mrf.mxu0
        %5491 = vmatprep.mubr.bf16.mxu0 %v5304
        %5492 = vmatmul.mubr.bf16.gmra.mxu0 %v5303
        %v5493 = vpop.f32.mrf.mxu0
        %v5494 = vadd.f32 0.0, %v5493
        %v5495 = vpop.f32.mrf.mxu0
        %v5496 = vpop.f32.mrf.mxu0
        %v5497 = vadd.f32 0.0, %v5496
        %v5498 = vpop.f32.mrf.mxu0
        %5499 = vmatprep.mubr.bf16.mxu0 %v5306
        %5500 = vmatmul.mubr.bf16.gmra.mxu0 %v5305
        %v5501 = vpop.f32.mrf.mxu0
        %v5502 = vadd.f32 0.0, %v5501
        %v5503 = vpop.f32.mrf.mxu0
        %v5504 = vpop.f32.mrf.mxu0
        %v5505 = vadd.f32 0.0, %v5504
        %v5506 = vpop.f32.mrf.mxu0
        %5507 = vmatprep.mubr.bf16.mxu0 %v5308
        %5508 = vmatmul.mubr.bf16.gmra.mxu0 %v5307
        %v5509 = vpop.f32.mrf.mxu0
        %v5510 = vadd.f32 0.0, %v5509
        %v5511 = vpop.f32.mrf.mxu0
        %v5512 = vpop.f32.mrf.mxu0
        %v5513 = vadd.f32 0.0, %v5512
        %v5514 = vpop.f32.mrf.mxu0
        %5515 = vmatprep.mubr.bf16.mxu0 %v5310
        %5516 = vmatmul.mubr.bf16.gmra.mxu0 %v5309
        %v5517 = vpop.f32.mrf.mxu0
        %v5518 = vadd.f32 0.0, %v5517
        %v5519 = vpop.f32.mrf.mxu0
        %v5520 = vpop.f32.mrf.mxu0
        %v5521 = vadd.f32 0.0, %v5520
        %v5522 = vpop.f32.mrf.mxu0
        %5523 = vmatprep.mubr.bf16.mxu0 %v5312
        %5524 = vmatmul.mubr.bf16.gmra.mxu0 %v5311
        %v5525 = vpop.f32.mrf.mxu0
        %v5526 = vadd.f32 0.0, %v5525
        %v5527 = vpop.f32.mrf.mxu0
        %v5528 = vpop.f32.mrf.mxu0
        %v5529 = vadd.f32 0.0, %v5528
        %v5530 = vpop.f32.mrf.mxu0
        %5531 = vmatprep.mubr.bf16.mxu0 %v5314
        %5532 = vmatmul.mubr.bf16.gmra.mxu0 %v5313
        %v5533 = vpop.f32.mrf.mxu0
        %v5534 = vadd.f32 0.0, %v5533
        %v5535 = vpop.f32.mrf.mxu0
        %v5536 = vpop.f32.mrf.mxu0
        %v5537 = vadd.f32 0.0, %v5536
        %v5538 = vpop.f32.mrf.mxu0
        %5539 = vdwg.mxu0
        %v5572 = vunpack.c.l.b16 %v5014
        %v5573 = vunpack.c.l.b16 %v5015
        %v5574 = vunpack.c.l.b16 %v5016
        %v5575 = vunpack.c.l.b16 %v5017
        %v5576 = vunpack.c.l.b16 %v5018
        %v5577 = vunpack.c.l.b16 %v5019
        %v5578 = vunpack.c.l.b16 %v5020
        %v5579 = vunpack.c.l.b16 %v5021
        %v5580 = vunpack.c.l.b16 %v5022
        %v5581 = vunpack.c.l.b16 %v5023
        %v5582 = vunpack.c.l.b16 %v5024
        %v5583 = vunpack.c.l.b16 %v5025
        %v5584 = vunpack.c.l.b16 %v5026
        %v5585 = vunpack.c.l.b16 %v5027
        %v5586 = vunpack.c.l.b16 %v5028
        %v5587 = vunpack.c.l.b16 %v5029
        %v5588 = vunpack.c.l.b16 %v5030
        %v5589 = vunpack.c.l.b16 %v5031
        %v5590 = vunpack.c.l.b16 %v5032
        %v5591 = vunpack.c.l.b16 %v5033
        %v5592 = vunpack.c.l.b16 %v5034
        %v5593 = vunpack.c.l.b16 %v5035
        %v5594 = vunpack.c.l.b16 %v5036
        %v5595 = vunpack.c.l.b16 %v5037
        %v5596 = vunpack.c.l.b16 %v5038
        %v5597 = vunpack.c.l.b16 %v5039
        %v5598 = vunpack.c.l.b16 %v5040
        %v5599 = vunpack.c.l.b16 %v5041
        %v5600 = vunpack.c.l.b16 %v5042
        %v5601 = vunpack.c.l.b16 %v5043
        %v5602 = vunpack.c.l.b16 %v5044
        %v5603 = vunpack.c.l.b16 %v5045
        %v5604 = vpack.c.b16 %v5573, %v5572
        %v5605 = vpack.c.b16 %v5575, %v5574
        %v5606 = vpack.c.b16 %v5577, %v5576
        %v5607 = vpack.c.b16 %v5579, %v5578
        %v5608 = vpack.c.b16 %v5581, %v5580
        %v5609 = vpack.c.b16 %v5583, %v5582
        %v5610 = vpack.c.b16 %v5585, %v5584
        %v5611 = vpack.c.b16 %v5587, %v5586
        %v5612 = vpack.c.b16 %v5589, %v5588
        %v5613 = vpack.c.b16 %v5591, %v5590
        %v5614 = vpack.c.b16 %v5593, %v5592
        %v5615 = vpack.c.b16 %v5595, %v5594
        %v5616 = vpack.c.b16 %v5597, %v5596
        %v5617 = vpack.c.b16 %v5599, %v5598
        %v5618 = vpack.c.b16 %v5601, %v5600
        %v5619 = vpack.c.b16 %v5603, %v5602
        %5636 = vmatprep.subr.bf16.mxu0 0
        %5637 = vmatpush1.bf16.msra.mxu0 %v5611
        %5638 = vmatprep.subr.bf16.mxu0 0
        %5639 = vmatpush1.bf16.msra.mxu0 %v5610
        %5640 = vmatprep.subr.bf16.mxu0 0
        %5641 = vmatpush1.bf16.msra.mxu0 %v5609
        %5642 = vmatprep.subr.bf16.mxu0 0
        %5643 = vmatpush1.bf16.msra.mxu0 %v5608
        %5644 = vmatprep.subr.bf16.mxu0 0
        %5645 = vmatpush1.bf16.msra.mxu0 %v5607
        %5646 = vmatprep.subr.bf16.mxu0 0
        %5647 = vmatpush1.bf16.msra.mxu0 %v5606
        %5648 = vmatprep.subr.bf16.mxu0 0
        %5649 = vmatpush1.bf16.msra.mxu0 %v5605
        %5650 = vmatprep.subr.bf16.mxu0 0
        %5651 = vmatpush1.bf16.msra.mxu0 %v5604
        %5652 = vmatprep.subr.bf16.mxu0 0
        %5653 = vmatpush2.bf16.msra.mxu0 %v5619
        %5654 = vmatprep.subr.bf16.mxu0 0
        %5655 = vmatpush2.bf16.msra.mxu0 %v5618
        %5656 = vmatprep.subr.bf16.mxu0 0
        %5657 = vmatpush2.bf16.msra.mxu0 %v5617
        %5658 = vmatprep.subr.bf16.mxu0 0
        %5659 = vmatpush2.bf16.msra.mxu0 %v5616
        %5660 = vmatprep.subr.bf16.mxu0 0
        %5661 = vmatpush2.bf16.msra.mxu0 %v5615
        %5662 = vmatprep.subr.bf16.mxu0 0
        %5663 = vmatpush2.bf16.msra.mxu0 %v5614
        %5664 = vmatprep.subr.bf16.mxu0 0
        %5665 = vmatpush2.bf16.msra.mxu0 %v5613
        %5666 = vmatprep.subr.bf16.mxu0 0
        %5667 = vmatpush2.bf16.msra.mxu0 %v5612
        %5668 = vmatprep.mubr.bf16.mxu0 %v4998
        %5669 = vmatmul.mubr.bf16.gmra.mxu0 %v4997
        %v5670 = vpop.f32.mrf.mxu0
        %v5671 = vadd.f32 %v5478, %v5670
        %v5672 = vpop.f32.mrf.mxu0
        %v5673 = vpop.f32.mrf.mxu0
        %v5674 = vadd.f32 %v5481, %v5673
        %v5675 = vpop.f32.mrf.mxu0
        %5676 = vmatprep.mubr.bf16.mxu0 %v5000
        %5677 = vmatmul.mubr.bf16.gmra.mxu0 %v4999
        %v5678 = vpop.f32.mrf.mxu0
        %v5679 = vadd.f32 %v5486, %v5678
        %v5680 = vpop.f32.mrf.mxu0
        %v5681 = vpop.f32.mrf.mxu0
        %v5682 = vadd.f32 %v5489, %v5681
        %v5683 = vpop.f32.mrf.mxu0
        %5684 = vmatprep.mubr.bf16.mxu0 %v5002
        %5685 = vmatmul.mubr.bf16.gmra.mxu0 %v5001
        %v5686 = vpop.f32.mrf.mxu0
        %v5687 = vadd.f32 %v5494, %v5686
        %v5688 = vpop.f32.mrf.mxu0
        %v5689 = vpop.f32.mrf.mxu0
        %v5690 = vadd.f32 %v5497, %v5689
        %v5691 = vpop.f32.mrf.mxu0
        %5692 = vmatprep.mubr.bf16.mxu0 %v5004
        %5693 = vmatmul.mubr.bf16.gmra.mxu0 %v5003
        %v5694 = vpop.f32.mrf.mxu0
        %v5695 = vadd.f32 %v5502, %v5694
        %v5696 = vpop.f32.mrf.mxu0
        %v5697 = vpop.f32.mrf.mxu0
        %v5698 = vadd.f32 %v5505, %v5697
        %v5699 = vpop.f32.mrf.mxu0
        %5700 = vmatprep.mubr.bf16.mxu0 %v5006
        %5701 = vmatmul.mubr.bf16.gmra.mxu0 %v5005
        %v5702 = vpop.f32.mrf.mxu0
        %v5703 = vadd.f32 %v5510, %v5702
        %v5704 = vpop.f32.mrf.mxu0
        %v5705 = vpop.f32.mrf.mxu0
        %v5706 = vadd.f32 %v5513, %v5705
        %v5707 = vpop.f32.mrf.mxu0
        %5708 = vmatprep.mubr.bf16.mxu0 %v5008
        %5709 = vmatmul.mubr.bf16.gmra.mxu0 %v5007
        %v5710 = vpop.f32.mrf.mxu0
        %v5711 = vadd.f32 %v5518, %v5710
        %v5712 = vpop.f32.mrf.mxu0
        %v5713 = vpop.f32.mrf.mxu0
        %v5714 = vadd.f32 %v5521, %v5713
        %v5715 = vpop.f32.mrf.mxu0
        %5716 = vmatprep.mubr.bf16.mxu0 %v5010
        %5717 = vmatmul.mubr.bf16.gmra.mxu0 %v5009
        %v5718 = vpop.f32.mrf.mxu0
        %v5719 = vadd.f32 %v5526, %v5718
        %v5720 = vpop.f32.mrf.mxu0
        %v5721 = vpop.f32.mrf.mxu0
        %v5722 = vadd.f32 %v5529, %v5721
        %v5723 = vpop.f32.mrf.mxu0
        %5724 = vmatprep.mubr.bf16.mxu0 %v5012
        %5725 = vmatmul.mubr.bf16.gmra.mxu0 %v5011
        %v5726 = vpop.f32.mrf.mxu0
        %v5727 = vadd.f32 %v5534, %v5726
        %v5728 = vpop.f32.mrf.mxu0
        %v5729 = vpop.f32.mrf.mxu0
        %v5730 = vadd.f32 %v5537, %v5729
        %v5731 = vpop.f32.mrf.mxu0
        %5732 = vdwg.mxu0
        %s5733 = scalar_lea.vmem %s8, 3
        %v5734 = vld [vmem:[%s5733] sm:$0x1]
        %v5736 = vlaneseq
        %v5737 = vshrl.u32 %v5736, 7
        %v5738 = vsub.s32 0, %v5737
        %v5739 = vrot.slane %v5734, %v5738
        %v5741 = vadd.f32 %v5671, %v5739
        %v5742 = vadd.f32 %v5674, %v5739
        %v5743 = vadd.f32 %v5679, %v5739
        %v5744 = vadd.f32 %v5682, %v5739
        %v5745 = vadd.f32 %v5687, %v5739
        %v5746 = vadd.f32 %v5690, %v5739
        %v5747 = vadd.f32 %v5695, %v5739
        %v5748 = vadd.f32 %v5698, %v5739
        %v5749 = vadd.f32 %v5703, %v5739
        %v5750 = vadd.f32 %v5706, %v5739
        %v5751 = vadd.f32 %v5711, %v5739
        %v5752 = vadd.f32 %v5714, %v5739
        %v5753 = vadd.f32 %v5719, %v5739
        %v5754 = vadd.f32 %v5722, %v5739
        %v5755 = vadd.f32 %v5727, %v5739
        %v5756 = vadd.f32 %v5730, %v5739
        %v5757 = vadd.f32 %v5741, %v4494
        %v5758 = vadd.f32 %v5742, %v4495
        %v5759 = vadd.f32 %v5743, %v4496
        %v5760 = vadd.f32 %v5744, %v4497
        %v5761 = vadd.f32 %v5745, %v4498
        %v5762 = vadd.f32 %v5746, %v4499
        %v5763 = vadd.f32 %v5747, %v4500
        %v5764 = vadd.f32 %v5748, %v4501
        %v5765 = vadd.f32 %v5749, %v4502
        %v5766 = vadd.f32 %v5750, %v4503
        %v5767 = vadd.f32 %v5751, %v4504
        %v5768 = vadd.f32 %v5752, %v4505
        %v5769 = vadd.f32 %v5753, %v4506
        %v5770 = vadd.f32 %v5754, %v4507
        %v5771 = vadd.f32 %v5755, %v4508
        %v5772 = vadd.f32 %v5756, %v4509
        %5773 = vst [vmem:[#allocation2] sm:$0xff] %v5757
        %5774 = vst [vmem:[#allocation2 + $0x8] sm:$0xff] %v5758
        %5775 = vst [vmem:[#allocation2 + $0x10] sm:$0xff] %v5759
        %5776 = vst [vmem:[#allocation2 + $0x18] sm:$0xff] %v5760
        %5777 = vst [vmem:[#allocation2 + $0x20] sm:$0xff] %v5761
        %5778 = vst [vmem:[#allocation2 + $0x28] sm:$0xff] %v5762
        %5779 = vst [vmem:[#allocation2 + $0x30] sm:$0xff] %v5763
        %5780 = vst [vmem:[#allocation2 + $0x38] sm:$0xff] %v5764
        %5781 = vst [vmem:[#allocation2 + $0x40] sm:$0xff] %v5765
        %5782 = vst [vmem:[#allocation2 + $0x48] sm:$0xff] %v5766
        %5783 = vst [vmem:[#allocation2 + $0x50] sm:$0xff] %v5767
        %5784 = vst [vmem:[#allocation2 + $0x58] sm:$0xff] %v5768
        %5785 = vst [vmem:[#allocation2 + $0x60] sm:$0xff] %v5769
        %5786 = vst [vmem:[#allocation2 + $0x68] sm:$0xff] %v5770
        %5787 = vst [vmem:[#allocation2 + $0x70] sm:$0xff] %v5771
        %5788 = vst [vmem:[#allocation2 + $0x78] sm:$0xff] %v5772
        %v5789 = vld [vmem:[#allocation2] sm:$0xff]
        %v5790 = vld [vmem:[#allocation2 + $0x8] sm:$0xff]
        %v5791 = vld [vmem:[#allocation2 + $0x10] sm:$0xff]
        %v5792 = vld [vmem:[#allocation2 + $0x18] sm:$0xff]
        %v5793 = vld [vmem:[#allocation2 + $0x20] sm:$0xff]
        %v5794 = vld [vmem:[#allocation2 + $0x28] sm:$0xff]
        %v5795 = vld [vmem:[#allocation2 + $0x30] sm:$0xff]
        %v5796 = vld [vmem:[#allocation2 + $0x38] sm:$0xff]
        %v5797 = vld [vmem:[#allocation2 + $0x40] sm:$0xff]
        %v5798 = vld [vmem:[#allocation2 + $0x48] sm:$0xff]
        %v5799 = vld [vmem:[#allocation2 + $0x50] sm:$0xff]
        %v5800 = vld [vmem:[#allocation2 + $0x58] sm:$0xff]
        %v5801 = vld [vmem:[#allocation2 + $0x60] sm:$0xff]
        %v5802 = vld [vmem:[#allocation2 + $0x68] sm:$0xff]
        %v5803 = vld [vmem:[#allocation2 + $0x70] sm:$0xff]
        %v5804 = vld [vmem:[#allocation2 + $0x78] sm:$0xff]
        %v5805 = vpack.c.bf16 %v5790, %v5789
        %v5806 = vpack.c.bf16 %v5792, %v5791
        %v5807 = vpack.c.bf16 %v5794, %v5793
        %v5808 = vpack.c.bf16 %v5796, %v5795
        %v5809 = vpack.c.bf16 %v5798, %v5797
        %v5810 = vpack.c.bf16 %v5800, %v5799
        %v5811 = vpack.c.bf16 %v5802, %v5801
        %v5812 = vpack.c.bf16 %v5804, %v5803
        %v5813 = vld [vmem:[%s9] sm:$0xf]
        %v5814 = vld [vmem:[%s9 + $0x4] sm:$0xf]
        %v5815 = vld [vmem:[%s9 + $0x8] sm:$0xf]
        %v5816 = vld [vmem:[%s9 + $0xc] sm:$0xf]
        %v5817 = vld [vmem:[%s9 + $0x10] sm:$0xf]
        %v5818 = vld [vmem:[%s9 + $0x14] sm:$0xf]
        %v5819 = vld [vmem:[%s9 + $0x18] sm:$0xf]
        %v5820 = vld [vmem:[%s9 + $0x1c] sm:$0xf]
        %v5821 = vld [vmem:[%s9 + $0x20] sm:$0xf]
        %v5822 = vld [vmem:[%s9 + $0x24] sm:$0xf]
        %v5823 = vld [vmem:[%s9 + $0x28] sm:$0xf]
        %v5824 = vld [vmem:[%s9 + $0x2c] sm:$0xf]
        %v5825 = vld [vmem:[%s9 + $0x30] sm:$0xf]
        %v5826 = vld [vmem:[%s9 + $0x34] sm:$0xf]
        %v5827 = vld [vmem:[%s9 + $0x38] sm:$0xf]
        %v5828 = vld [vmem:[%s9 + $0x3c] sm:$0xf]
        %v5829 = vld [vmem:[%s10] sm:$0x1]
        %v5831 = vlaneseq
        %v5832 = vshrl.u32 %v5831, 7
        %v5833 = vsub.s32 0, %v5832
        %v5834 = vrot.slane %v5829, %v5833
        %v5852 = vunpack.c.l.b16 %v5813
        %v5853 = vunpack.c.l.b16 %v5814
        %v5854 = vunpack.c.l.b16 %v5815
        %v5855 = vunpack.c.l.b16 %v5816
        %v5856 = vunpack.c.l.b16 %v5817
        %v5857 = vunpack.c.l.b16 %v5818
        %v5858 = vunpack.c.l.b16 %v5819
        %v5859 = vunpack.c.l.b16 %v5820
        %v5860 = vunpack.c.l.b16 %v5821
        %v5861 = vunpack.c.l.b16 %v5822
        %v5862 = vunpack.c.l.b16 %v5823
        %v5863 = vunpack.c.l.b16 %v5824
        %v5864 = vunpack.c.l.b16 %v5825
        %v5865 = vunpack.c.l.b16 %v5826
        %v5866 = vunpack.c.l.b16 %v5827
        %v5867 = vunpack.c.l.b16 %v5828
        %v5868 = vpack.c.b16 %v5853, %v5852
        %v5869 = vpack.c.b16 %v5855, %v5854
        %v5870 = vpack.c.b16 %v5857, %v5856
        %v5871 = vpack.c.b16 %v5859, %v5858
        %v5872 = vpack.c.b16 %v5861, %v5860
        %v5873 = vpack.c.b16 %v5863, %v5862
        %v5874 = vpack.c.b16 %v5865, %v5864
        %v5875 = vpack.c.b16 %v5867, %v5866
        %5884 = vmatprep.subr.bf16.mxu0 0
        %5885 = vmatpush1.bf16.msra.mxu0 %v5875
        %5886 = vmatprep.subr.bf16.mxu0 0
        %5887 = vmatpush1.bf16.msra.mxu0 %v5874
        %5888 = vmatprep.subr.bf16.mxu0 0
        %5889 = vmatpush1.bf16.msra.mxu0 %v5873
        %5890 = vmatprep.subr.bf16.mxu0 0
        %5891 = vmatpush1.bf16.msra.mxu0 %v5872
        %5892 = vmatprep.subr.bf16.mxu0 0
        %5893 = vmatpush1.bf16.msra.mxu0 %v5871
        %5894 = vmatprep.subr.bf16.mxu0 0
        %5895 = vmatpush1.bf16.msra.mxu0 %v5870
        %5896 = vmatprep.subr.bf16.mxu0 0
        %5897 = vmatpush1.bf16.msra.mxu0 %v5869
        %5898 = vmatprep.subr.bf16.mxu0 0
        %5899 = vmatpush1.bf16.msra.mxu0 %v5868
        %5900 = vmatprep.subr.bf16.mxu0 0
        %5901 = vmatpush2.bf16.msra.mxu0 0
        %5902 = vmatprep.subr.bf16.mxu0 0
        %5903 = vmatpush2.bf16.msra.mxu0 0
        %5904 = vmatprep.subr.bf16.mxu0 0
        %5905 = vmatpush2.bf16.msra.mxu0 0
        %5906 = vmatprep.subr.bf16.mxu0 0
        %5907 = vmatpush2.bf16.msra.mxu0 0
        %5908 = vmatprep.subr.bf16.mxu0 0
        %5909 = vmatpush2.bf16.msra.mxu0 0
        %5910 = vmatprep.subr.bf16.mxu0 0
        %5911 = vmatpush2.bf16.msra.mxu0 0
        %5912 = vmatprep.subr.bf16.mxu0 0
        %5913 = vmatpush2.bf16.msra.mxu0 0
        %5914 = vmatprep.subr.bf16.mxu0 0
        %5915 = vmatpush2.bf16.msra.mxu0 0
        %5916 = vmatprep.mubr.bf16.mxu0 0
        %5917 = vmatmul.mubr.bf16.gmra.mxu0 %v5805
        %v5918 = vpop.f32.mrf.mxu0
        %v5919 = vadd.f32 %v5834, %v5918
        %v5920 = vpop.f32.mrf.mxu0
        %v5921 = vpop.f32.mrf.mxu0
        %v5922 = vadd.f32 %v5834, %v5921
        %v5923 = vpop.f32.mrf.mxu0
        %5924 = vmatprep.mubr.bf16.mxu0 0
        %5925 = vmatmul.mubr.bf16.gmra.mxu0 %v5806
        %v5926 = vpop.f32.mrf.mxu0
        %v5927 = vadd.f32 %v5834, %v5926
        %v5928 = vpop.f32.mrf.mxu0
        %v5929 = vpop.f32.mrf.mxu0
        %v5930 = vadd.f32 %v5834, %v5929
        %v5931 = vpop.f32.mrf.mxu0
        %5932 = vmatprep.mubr.bf16.mxu0 0
        %5933 = vmatmul.mubr.bf16.gmra.mxu0 %v5807
        %v5934 = vpop.f32.mrf.mxu0
        %v5935 = vadd.f32 %v5834, %v5934
        %v5936 = vpop.f32.mrf.mxu0
        %v5937 = vpop.f32.mrf.mxu0
        %v5938 = vadd.f32 %v5834, %v5937
        %v5939 = vpop.f32.mrf.mxu0
        %5940 = vmatprep.mubr.bf16.mxu0 0
        %5941 = vmatmul.mubr.bf16.gmra.mxu0 %v5808
        %v5942 = vpop.f32.mrf.mxu0
        %v5943 = vadd.f32 %v5834, %v5942
        %v5944 = vpop.f32.mrf.mxu0
        %v5945 = vpop.f32.mrf.mxu0
        %v5946 = vadd.f32 %v5834, %v5945
        %v5947 = vpop.f32.mrf.mxu0
        %5948 = vmatprep.mubr.bf16.mxu0 0
        %5949 = vmatmul.mubr.bf16.gmra.mxu0 %v5809
        %v5950 = vpop.f32.mrf.mxu0
        %v5951 = vadd.f32 %v5834, %v5950
        %v5952 = vpop.f32.mrf.mxu0
        %v5953 = vpop.f32.mrf.mxu0
        %v5954 = vadd.f32 %v5834, %v5953
        %v5955 = vpop.f32.mrf.mxu0
        %5956 = vmatprep.mubr.bf16.mxu0 0
        %5957 = vmatmul.mubr.bf16.gmra.mxu0 %v5810
        %v5958 = vpop.f32.mrf.mxu0
        %v5959 = vadd.f32 %v5834, %v5958
        %v5960 = vpop.f32.mrf.mxu0
        %v5961 = vpop.f32.mrf.mxu0
        %v5962 = vadd.f32 %v5834, %v5961
        %v5963 = vpop.f32.mrf.mxu0
        %5964 = vmatprep.mubr.bf16.mxu0 0
        %5965 = vmatmul.mubr.bf16.gmra.mxu0 %v5811
        %v5966 = vpop.f32.mrf.mxu0
        %v5967 = vadd.f32 %v5834, %v5966
        %v5968 = vpop.f32.mrf.mxu0
        %v5969 = vpop.f32.mrf.mxu0
        %v5970 = vadd.f32 %v5834, %v5969
        %v5971 = vpop.f32.mrf.mxu0
        %5972 = vmatprep.mubr.bf16.mxu0 0
        %5973 = vmatmul.mubr.bf16.gmra.mxu0 %v5812
        %v5974 = vpop.f32.mrf.mxu0
        %v5975 = vadd.f32 %v5834, %v5974
        %v5976 = vpop.f32.mrf.mxu0
        %v5977 = vpop.f32.mrf.mxu0
        %v5978 = vadd.f32 %v5834, %v5977
        %v5979 = vpop.f32.mrf.mxu0
        %5980 = vdwg.mxu0
        %5981 = vst [vmem:[%s403] sm:$0xff] %v5919
        %5982 = vst [vmem:[%s403 + $0x8] sm:$0xff] %v5922
        %5983 = vst [vmem:[%s403 + $0x10] sm:$0xff] %v5927
        %5984 = vst [vmem:[%s403 + $0x18] sm:$0xff] %v5930
        %5985 = vst [vmem:[%s403 + $0x20] sm:$0xff] %v5935
        %5986 = vst [vmem:[%s403 + $0x28] sm:$0xff] %v5938
        %5987 = vst [vmem:[%s403 + $0x30] sm:$0xff] %v5943
        %5988 = vst [vmem:[%s403 + $0x38] sm:$0xff] %v5946
        %5989 = vst [vmem:[%s403 + $0x40] sm:$0xff] %v5951
        %5990 = vst [vmem:[%s403 + $0x48] sm:$0xff] %v5954
        %5991 = vst [vmem:[%s403 + $0x50] sm:$0xff] %v5959
        %5992 = vst [vmem:[%s403 + $0x58] sm:$0xff] %v5962
        %5993 = vst [vmem:[%s403 + $0x60] sm:$0xff] %v5967
        %5994 = vst [vmem:[%s403 + $0x68] sm:$0xff] %v5970
        %5995 = vst [vmem:[%s403 + $0x70] sm:$0xff] %v5975
        %5996 = vst [vmem:[%s403 + $0x78] sm:$0xff] %v5978
        %s5997 = smul.u32 16, %s23
        %p5998 = scmp.lt.s32.totalorder %s5997, 31
        %s5999 = scalar_select %p5998, %s5997, 31
        %s6000 = smul.addr %s5999, 8
        %s6001 = scalar_lea.vmem %s11, %s6000
        // Predicated region
        $region69: #{fc_net_forward.1} parent=63 // pred_check
          %p6002 = pneg %p277
        $region70: #{fc_net_forward.1} parent=63 // pred_check_branch
          %6004 = sbr.rel (%p6002) target = $region72
        $region71: #{fc_net_forward.1} parent=63 // pred_region
          %s6005 = smul.u32 16, %s23
        $region72: #{fc_net_forward.1} parent=63 // pred_fallthru
          _
      $region64: #{fc_net_forward.1} parent=5 // pred_fallthru
        _
      %p6006 = scmp.le.s32.totalorder 2, %s18
      // Predicated region
      $region73: #{fc_net_forward.1} parent=5 // pred_check
        %p6007 = pneg %p6006
      $region74: #{fc_net_forward.1} parent=5 // pred_check_branch
        %6009 = sbr.rel (%p6007) target = $region76
      $region75: #{fc_net_forward.1} parent=5 // pred_region
        %s6010 = ssub.s32 %s18, 2
        // Predicated region
        $region77: #{fc_net_forward.1} parent=75 // pred_check
          %p6011 = pneg %p283
        $region78: #{fc_net_forward.1} parent=75 // pred_check_branch
          %6013 = sbr.rel (%p6011) target = $region80
        $region79: #{fc_net_forward.1} parent=75 // pred_region
          %s6014 = smul.u32 16, %s24
          %p6015 = scmp.lt.s32.totalorder %s6014, 31
          %s6016 = scalar_select %p6015, %s6014, 31
          %s6017 = smul.addr %s6016, 8
          %s6018 = scalar_lea.vmem %s11, %s6017
        $region80: #{fc_net_forward.1} parent=75 // pred_fallthru
          _
      $region76: #{fc_net_forward.1} parent=5 // pred_fallthru
        _
    $region6: #{fc_net_forward.1} parent=1 // loop_footer
      %s22 = sadd.s32 1, %s18
    $region7: #{fc_net_forward.1} parent=1 // loop_footer_branch
      %17 = sbr.rel target = $region3
    $region8: #{fc_net_forward.1} parent=1 // loop_exit
      _
    %6019 = vsyncpa [#allocation4], 1
    %s6020 = scalar_lea.sflag [#allocation4], 1
    %6021 = vsyncpa %s6020, 1

</llo_original>
